<compile_context>
chip_gen: v6e
topology: v6e:2x2x1
jax: 0.10.0
libtpu: 0.0.40
codegen_flags: <defaults>
</compile_context>

<pallas_src>
import math

import jax
import jax.numpy as jnp
from jax.experimental import pallas as pl
from jax.experimental.pallas import tpu as pltpu


def linear_kernel(x_ref, wt_ref, b_ref, o_ref):
    # grid = (N_tiles,) -- full-K GEMV per tile, single MXU pass, f32 accumulate.
    acc = jnp.dot(x_ref[...], wt_ref[...], preferred_element_type=jnp.float32)
    o_ref[...] = (acc + b_ref[...]).astype(o_ref.dtype)


def prepare_params(weight, bias, lane=128):
    """One-time parameter prep (NOT in the per-call hot path).

    weight: [N, K] (PyTorch Linear layout), bias: [N].
    Returns the weight transposed to [K, N_pad] in bf16 and the bias as a
    [1, N_pad] f32 row, with N padded up to a multiple of `lane` so the
    kernel's output/weight lane dim is dense.
    """
    N, K = weight.shape
    n_pad = ((N + lane - 1) // lane) * lane
    wt = jnp.zeros((K, n_pad), jnp.bfloat16).at[:, :N].set(
        weight.T.astype(jnp.bfloat16)
    )
    b2d = jnp.zeros((1, n_pad), jnp.float32).at[0, :N].set(bias.astype(jnp.float32))
    return wt, b2d, N


def flatten_linear(x, wt_padded, bias_padded, n_out, *, tn=512):
    """x: [B, C, H, W] or [B, K]; wt_padded: [K, N_pad] bf16; bias_padded: [1, N_pad] f32."""
    B = x.shape[0]
    x2d = x.reshape(B, -1).astype(jnp.bfloat16)  # flatten(start_dim=1) + bf16 cast
    K, n_pad = wt_padded.shape

    # Robust tile choice: n_pad is always a multiple of 128, so gcd >= 128 and
    # always divides n_pad exactly (fixes the brittle min()+assert pattern).
    tn = math.gcd(min(tn, n_pad), n_pad)
    grid = (n_pad // tn,)

    out = pl.pallas_call(
        linear_kernel,
        out_shape=jax.ShapeDtypeStruct((B, n_pad), jnp.float32),
        grid_spec=pltpu.PrefetchScalarGridSpec(
            num_scalar_prefetch=0,
            grid=grid,
            in_specs=[
                pl.BlockSpec((B, K), lambda j: (0, 0)),      # activations, resident
                pl.BlockSpec((K, tn), lambda j: (0, j)),     # bf16 weight (pre-T)
                pl.BlockSpec((1, tn), lambda j: (0, j)),     # bias
            ],
            out_specs=pl.BlockSpec((B, tn), lambda j: (0, j)),
        ),
        compiler_params=pltpu.CompilerParams(
            dimension_semantics=("parallel",),
        ),
    )(x2d, wt_padded, bias_padded)
    return out[:, :n_out]


if __name__ == "__main__":
    key = jax.random.PRNGKey(0)
    kx, kw, kb = jax.random.split(key, 3)

    # Shapes implied by the module: flatten([1, 2048, 1, 1]) -> Linear(2048, 1000)
    B, C, H, W = 1, 2048, 1, 1
    N = 1000

    x = jax.random.normal(kx, (B, C, H, W), dtype=jnp.float32)
    bound = 1.0 / jnp.sqrt(jnp.float32(C))
    weight = jax.random.uniform(
        kw, (N, C), minval=-bound, maxval=bound, dtype=jnp.float32
    )
    bias = jax.random.uniform(
        kb, (N,), minval=-bound, maxval=bound, dtype=jnp.float32
    )

    # One-time parameter prep (transpose + lane padding + bf16 cast) -- cold path.
    wt_padded, bias_padded, n_out = prepare_params(weight, bias)

    out = flatten_linear(x, wt_padded, bias_padded, n_out)
    out = jax.block_until_ready(out)

    # Reference check in plain JAX (same semantics as torch.nn.Linear).
    # Tolerance relaxed vs the f32 reference because weights/activations are bf16.
    ref = x.reshape(B, -1) @ weight.T + bias
    assert out.shape == (B, N)
    assert jnp.allclose(out, ref, atol=5e-2, rtol=5e-2)

    print("KERNEL_OK")
</pallas_src>

<mosaic_0001>
module attributes {stable_mosaic.version = 11 : i64} {
  func.func @linear_kernel(%arg0: i32, %arg1: memref<1x2048xbf16, #tpu.memory_space<vmem>>, %arg2: memref<2048x512xbf16, #tpu.memory_space<vmem>>, %arg3: memref<1x512xf32, #tpu.memory_space<vmem>>, %arg4: memref<1x512xf32, #tpu.memory_space<vmem>>) attributes {dimension_semantics = [#tpu.dimension_semantics<parallel>], iteration_bounds = array<i64: 2>, scalar_prefetch = 0 : i64, scratch_operands = 0 : i64, tpu.core_type = #tpu.core_type<tc>, window_params = [{pipeline_mode = #tpu.pipeline_mode<synchronous>, transform_indices = @transform_0, window_bounds = array<i64: 1, 2048>}, {transform_indices = @transform_1, window_bounds = array<i64: 2048, 512>}, {transform_indices = @transform_2, window_bounds = array<i64: 1, 512>}, {transform_indices = @transform_3, window_bounds = array<i64: 1, 512>}]} {
    %c0 = arith.constant 0 : index
    %c0_0 = arith.constant 0 : index
    %0 = vector.load %arg1[%c0, %c0_0] : memref<1x2048xbf16, #tpu.memory_space<vmem>>, vector<1x2048xbf16>
    %c0_1 = arith.constant 0 : index
    %c0_2 = arith.constant 0 : index
    %1 = vector.load %arg2[%c0_1, %c0_2] : memref<2048x512xbf16, #tpu.memory_space<vmem>>, vector<2048x512xbf16>
    %cst = arith.constant dense<0.000000e+00> : vector<1x512xf32>
    %2 = tpu.matmul %0, %1, %cst {dimension_numbers = #tpu.dot_dimension_numbers<[1], [0], [0], [1], [0, 0, 1, 1], [], []>} : vector<1x2048xbf16>, vector<2048x512xbf16>, vector<1x512xf32> -> vector<1x512xf32>
    %c0_3 = arith.constant 0 : index
    %c0_4 = arith.constant 0 : index
    %3 = vector.load %arg3[%c0_3, %c0_4] : memref<1x512xf32, #tpu.memory_space<vmem>>, vector<1x512xf32>
    %4 = arith.addf %2, %3 : vector<1x512xf32>
    %c0_5 = arith.constant 0 : index
    %c0_6 = arith.constant 0 : index
    %5 = vector.load %arg4[%c0_5, %c0_6] : memref<1x512xf32, #tpu.memory_space<vmem>>, vector<1x512xf32>
    tpu.vector_store %arg4[%c0_5, %c0_6], %4 {strides = array<i32>} : memref<1x512xf32, #tpu.memory_space<vmem>>, vector<1x512xf32>,
    return
  }
  func.func @transform_0(%arg0: i32) -> (i32, i32) {
    %c0_i32 = arith.constant 0 : i32
    %c0_i32_0 = arith.constant 0 : i32
    %c0_i32_1 = arith.constant 0 : i32
    return %c0_i32, %c0_i32_0 : i32, i32
  }
  func.func @transform_1(%arg0: i32) -> (i32, i32) {
    %c0_i32 = arith.constant 0 : i32
    %c0_i32_0 = arith.constant 0 : i32
    return %c0_i32, %arg0 : i32, i32
  }
  func.func @transform_2(%arg0: i32) -> (i32, i32) {
    %c0_i32 = arith.constant 0 : i32
    %c0_i32_0 = arith.constant 0 : i32
    return %c0_i32, %arg0 : i32, i32
  }
  func.func @transform_3(%arg0: i32) -> (i32, i32) {
    %c0_i32 = arith.constant 0 : i32
    %c0_i32_0 = arith.constant 0 : i32
    return %c0_i32, %arg0 : i32, i32
  }
}

</mosaic_0001>

<llo_original>
// kernel: tpu_custom_call.1
$region0: #{tpu_custom_call.1}
  #allocation0 [shape = 'u32[]', space=smem, size = 0x4, offset = 0x4, fixed_abs, tag = 'smem constant byte address 0x4 - core index']
  #allocation1 [shape = 'u32[144,128]{1,0:T(1,128)}', space=vmem, size = 0x12000, scoped, tag = 'internal scratch']
  %s0 = inlined_call_operand.hbm [shape: bf16[1,2048], index: 0, kind: input, shape index: {}]
  %s1 = inlined_call_operand.hbm [shape: bf16[2048,1024], index: 1, kind: input, shape index: {}]
  %s2 = inlined_call_operand.hbm [shape: f32[1,1024], index: 2, kind: input, shape index: {}]
  %s3 = inlined_call_operand.hbm [shape: f32[1,1024], index: 3, kind: output, shape index: {}]
  %s4 = sld [smem:[#allocation0]]
  $region57: #{tpu_custom_call.1} parent=0
    _
  %s6 = ssub.s32 1, %s4
  %s7 = scalar_select 0, %s6, %s4
  $region1: #{tpu_custom_call.1} parent=0
    #allocation2 [shape = 'u8[8192]{0}', space=vmem, size = 0x2000, scoped, tag = 'input window, operand 0, single buffered']
    #allocation3 [shape = 's32[2]{0}', space=sflag, size = 0x8, scoped, tag = 'scoped memory for tpu_custom_call.1']
    #allocation4 [shape = 's32[2]{0}', space=sflag, size = 0x8, scoped, tag = 'scoped memory for tpu_custom_call.1']
    #allocation5 [shape = 'u8[4194304]{0}', space=vmem, size = 0x400000, scoped, tag = 'input window, operand 1']
    #allocation6 [shape = 's32[2]{0}', space=sflag, size = 0x8, scoped, tag = 'scoped memory for tpu_custom_call.1']
    #allocation7 [shape = 'u8[4096]{0}', space=vmem, size = 0x1000, scoped, tag = 'input window, operand 2']
    #allocation8 [shape = 'u8[4096]{0}', space=vmem, size = 0x1000, scoped, tag = 'output window, operand 0']
    %8 = vsyncpa [#allocation3], 0
    %9 = vsyncpa [#allocation6], 0
    %s10 = scalar_lea.sflag [#allocation6], 1
    %11 = vsyncpa %s10, 0
    %12 = vsyncpa [#allocation4], 0
    %s13 = scalar_lea.sflag [#allocation4], 1
    %14 = vsyncpa %s13, 0
    loop: start=0, step=1, limit=4
    $region2: #{tpu_custom_call.1} parent=1 // loop_pre_header
      _
    $region3: #{tpu_custom_call.1} parent=1 // loop_header
      %s16 = sphi 0, %s20
      %p17 = scmp.ge.s32.totalorder %s16, 4
      %s24 = sphi 0, %s24
      %s26 = sphi 0, %s24
      %s27 = sphi 0, %s26
      %s41 = sphi 0, %s27
      %s47 = sphi 0, %s49
      %s50 = sphi 0, %s47
      %s51 = sphi 0, %s50
      %s67 = sphi 0, %s51
      %s73 = sphi 0, %s75
      %s76 = sphi 0, %s73
      %s77 = sphi 0, %s76
      %s93 = sphi 0, %s77
      %s99 = sphi 0, %s101
      %s102 = sphi 0, %s99
      %s103 = sphi 0, %s102
      %s119 = sphi 0, %s103
    $region4: #{tpu_custom_call.1} parent=1 // loop_header_branch
      %19 = sbr.rel (%p17) target = $region8
    $region5: #{tpu_custom_call.1} parent=1 // loop_body
      %s21 = ssub.s32 %s16, 1
      %s22 = ssub.s32 %s16, 2
      %s23 = sadd.s32 %s16, 1
      %s25 = sadd.s32 %s24, 1
      %p28 = scmp.eq.s32.totalorder %s16, 1
      %p29 = scmp.ne.s32.totalorder %s24, %s26
      %p30 = scmp.eq.s32.totalorder %s16, 0
      %p31 = por %p29, %p30
      %p32 = scmp.ne.s32.totalorder %s24, %s26
      %p33 = scmp.eq.s32.totalorder %s21, 1
      %p34 = por %p32, %p33
      %p35 = scmp.ne.s32.totalorder %s26, %s27
      %p36 = scmp.eq.s32.totalorder %s21, 0
      %p37 = por %p35, %p36
      %p38 = scmp.ne.s32.totalorder %s26, %s27
      %p39 = scmp.eq.s32.totalorder %s22, 1
      %p40 = por %p38, %p39
      %p42 = scmp.ne.s32.totalorder %s27, %s41
      %p43 = scmp.eq.s32.totalorder %s22, 0
      %p44 = por %p42, %p43
      %s45 = ssub.s32 %s16, %s23
      %p46 = scmp.eq.s32.totalorder %s45, 0
      %s48 = sadd.s32 %s47, 1
      %s49 = scalar_select %p46, %s47, %s48
      %p52 = pneg %p46
      %p53 = scmp.eq.s32.totalorder %s16, 1
      %p54 = por %p52, %p53
      %p55 = scmp.ne.s32.totalorder %s47, %s50
      %p56 = scmp.eq.s32.totalorder %s16, 0
      %p57 = por %p55, %p56
      %p58 = scmp.ne.s32.totalorder %s47, %s50
      %p59 = scmp.eq.s32.totalorder %s21, 1
      %p60 = por %p58, %p59
      %p61 = scmp.ne.s32.totalorder %s50, %s51
      %p62 = scmp.eq.s32.totalorder %s21, 0
      %p63 = por %p61, %p62
      %p64 = scmp.ne.s32.totalorder %s50, %s51
      %p65 = scmp.eq.s32.totalorder %s22, 1
      %p66 = por %p64, %p65
      %p68 = scmp.ne.s32.totalorder %s51, %s67
      %p69 = scmp.eq.s32.totalorder %s22, 0
      %p70 = por %p68, %p69
      %s71 = ssub.s32 %s16, %s23
      %p72 = scmp.eq.s32.totalorder %s71, 0
      %s74 = sadd.s32 %s73, 1
      %s75 = scalar_select %p72, %s73, %s74
      %p78 = pneg %p72
      %p79 = scmp.eq.s32.totalorder %s16, 1
      %p80 = por %p78, %p79
      %p81 = scmp.ne.s32.totalorder %s73, %s76
      %p82 = scmp.eq.s32.totalorder %s16, 0
      %p83 = por %p81, %p82
      %p84 = scmp.ne.s32.totalorder %s73, %s76
      %p85 = scmp.eq.s32.totalorder %s21, 1
      %p86 = por %p84, %p85
      %p87 = scmp.ne.s32.totalorder %s76, %s77
      %p88 = scmp.eq.s32.totalorder %s21, 0
      %p89 = por %p87, %p88
      %p90 = scmp.ne.s32.totalorder %s76, %s77
      %p91 = scmp.eq.s32.totalorder %s22, 1
      %p92 = por %p90, %p91
      %p94 = scmp.ne.s32.totalorder %s77, %s93
      %p95 = scmp.eq.s32.totalorder %s22, 0
      %p96 = por %p94, %p95
      %s97 = ssub.s32 %s16, %s23
      %p98 = scmp.eq.s32.totalorder %s97, 0
      %s100 = sadd.s32 %s99, 1
      %s101 = scalar_select %p98, %s99, %s100
      %p104 = pneg %p98
      %p105 = scmp.eq.s32.totalorder %s16, 1
      %p106 = por %p104, %p105
      %p107 = scmp.ne.s32.totalorder %s99, %s102
      %p108 = scmp.eq.s32.totalorder %s16, 0
      %p109 = por %p107, %p108
      %p110 = scmp.ne.s32.totalorder %s99, %s102
      %p111 = scmp.eq.s32.totalorder %s21, 1
      %p112 = por %p110, %p111
      %p113 = scmp.ne.s32.totalorder %s102, %s103
      %p114 = scmp.eq.s32.totalorder %s21, 0
      %p115 = por %p113, %p114
      %p116 = scmp.ne.s32.totalorder %s102, %s103
      %p117 = scmp.eq.s32.totalorder %s22, 1
      %p118 = por %p116, %p117
      %p120 = scmp.ne.s32.totalorder %s103, %s119
      %p121 = scmp.eq.s32.totalorder %s22, 0
      %p122 = por %p120, %p121
      %p123 = scmp.le.s32.totalorder 1, %s16
      %p124 = scmp.lt.s32.totalorder %s16, 3
      %p125 = pnand %p123, %p124
      %p126 = pneg %p125
      // Predicated region
      $region9: #{tpu_custom_call.1} parent=5 // pred_check
        _
      $region10: #{tpu_custom_call.1} parent=5 // pred_check_branch
        %128 = sbr.rel (%p125) target = $region12
      $region11: #{tpu_custom_call.1} parent=5 // pred_region
        %s129 = ssub.s32 %s16, 1
        // Predicated region
        $region13: #{tpu_custom_call.1} parent=11 // pred_check
          %p130 = pneg %p37
        $region14: #{tpu_custom_call.1} parent=11 // pred_check_branch
          %132 = sbr.rel (%p130) target = $region16
        $region15: #{tpu_custom_call.1} parent=11 // pred_region
          %s134 = ssub.s32 256, 256
          %135 = vsyncadd [#allocation3], %s134
          %s137 = sshll.u32 [#allocation2], 4
          %s138 = int_to_ptr.vmem [resolvable:$true] %s137
          %140 = dma.hbm_to_vmem [thread:$0]  %s0, 256, %s138, [#allocation3]
        $region16: #{tpu_custom_call.1} parent=11 // pred_fallthru
          _
      $region12: #{tpu_custom_call.1} parent=5 // pred_fallthru
        _
      %p141 = scmp.lt.s32.totalorder %s16, 2
      // Predicated region
      $region17: #{tpu_custom_call.1} parent=5 // pred_check
        %p142 = pneg %p141
      $region18: #{tpu_custom_call.1} parent=5 // pred_check_branch
        %144 = sbr.rel (%p142) target = $region20
      $region19: #{tpu_custom_call.1} parent=5 // pred_region
        // Predicated region
        $region21: #{tpu_custom_call.1} parent=19 // pred_check
          %p145 = pneg %p57
        $region22: #{tpu_custom_call.1} parent=19 // pred_check_branch
          %147 = sbr.rel (%p145) target = $region24
        $region23: #{tpu_custom_call.1} parent=19 // pred_region
          %s148 = sand.u32 %s16, 1
          %s149 = scalar_lea.sflag [#allocation6], %s148
          %s150 = sand.u32 %s47, 1
          %s151 = smul.addr %s150, 4096
          %s152 = scalar_lea.vmem [#allocation5], %s151
          %s153 = smul.u32 4, %s16
          %s155 = ssub.s32 65536, 65536
          %156 = vsyncadd %s149, %s155
          %s157 = smul.addr %s153, 64
          %s158 = scalar_lea.hbm %s1, %s157
          %s159 = sshll.u32 %s152, 4
          %s160 = int_to_ptr.vmem [resolvable:$true] %s159
          %165 = dma.hbm_to_vmem [thread:$0]  %s158, 65536, %s160, %s149, 512, 256, 16
        $region24: #{tpu_custom_call.1} parent=19 // pred_fallthru
          _
        // Predicated region
        $region25: #{tpu_custom_call.1} parent=19 // pred_check
          %p166 = pneg %p83
        $region26: #{tpu_custom_call.1} parent=19 // pred_check_branch
          %168 = sbr.rel (%p166) target = $region28
        $region27: #{tpu_custom_call.1} parent=19 // pred_region
          %s169 = sand.u32 %s16, 1
          %s170 = scalar_lea.sflag [#allocation6], %s169
          %s171 = sand.u32 %s73, 1
          %s172 = smul.addr %s171, 4
          %s173 = scalar_lea.vmem [#allocation7], %s172
          %s174 = smul.u32 4, %s16
          %s176 = ssub.s32 64, 64
          %177 = vsyncadd %s170, %s176
          %s178 = smul.addr %s174, 16
          %s179 = scalar_lea.hbm %s2, %s178
          %s181 = sshll.u32 %s173, 4
          %s182 = int_to_ptr.vmem [resolvable:$true] %s181
          %184 = dma.hbm_to_vmem [thread:$0]  %s179, 64, %s182, %s170
        $region28: #{tpu_custom_call.1} parent=19 // pred_fallthru
          _
      $region20: #{tpu_custom_call.1} parent=5 // pred_fallthru
        _
      %p185 = scmp.le.s32.totalorder 1, %s16
      %p186 = scmp.lt.s32.totalorder %s16, 3
      %p187 = pnand %p185, %p186
      %p188 = pneg %p187
      // Predicated region
      $region29: #{tpu_custom_call.1} parent=5 // pred_check
        _
      $region30: #{tpu_custom_call.1} parent=5 // pred_check_branch
        %190 = sbr.rel (%p187) target = $region32
      $region31: #{tpu_custom_call.1} parent=5 // pred_region
        %s191 = ssub.s32 %s16, 1
        // Predicated region
        $region33: #{tpu_custom_call.1} parent=31 // pred_check
          %p192 = pneg %p37
        $region34: #{tpu_custom_call.1} parent=31 // pred_check_branch
          %194 = sbr.rel (%p192) target = $region36
        $region35: #{tpu_custom_call.1} parent=31 // pred_region
          %195 = dma.done [#allocation3], 256
        $region36: #{tpu_custom_call.1} parent=31 // pred_fallthru
          _
        %s196 = sand.u32 %s21, 1
        %s197 = scalar_lea.sflag [#allocation6], %s196
        %s198 = sand.u32 %s50, 1
        %s199 = smul.addr %s198, 4096
        %s200 = scalar_lea.vmem [#allocation5], %s199
        // Predicated region
        $region37: #{tpu_custom_call.1} parent=31 // pred_check
          %p201 = pneg %p63
        $region38: #{tpu_custom_call.1} parent=31 // pred_check_branch
          %203 = sbr.rel (%p201) target = $region40
        $region39: #{tpu_custom_call.1} parent=31 // pred_region
          %204 = dma.done %s197, 65536
        $region40: #{tpu_custom_call.1} parent=31 // pred_fallthru
          _
        %s205 = sand.u32 %s21, 1
        %s206 = scalar_lea.sflag [#allocation6], %s205
        %s207 = sand.u32 %s76, 1
        %s208 = smul.addr %s207, 4
        %s209 = scalar_lea.vmem [#allocation7], %s208
        // Predicated region
        $region41: #{tpu_custom_call.1} parent=31 // pred_check
          %p210 = pneg %p89
        $region42: #{tpu_custom_call.1} parent=31 // pred_check_branch
          %212 = sbr.rel (%p210) target = $region44
        $region43: #{tpu_custom_call.1} parent=31 // pred_region
          %213 = dma.done %s206, 64
        $region44: #{tpu_custom_call.1} parent=31 // pred_fallthru
          _
        %p214 = pneg %p37
        %p215 = pneg %p34
        %s216 = sand.u32 %s21, 1
        %s217 = scalar_lea.sflag [#allocation6], %s216
        %s218 = sand.u32 %s50, 1
        %s219 = smul.addr %s218, 4096
        %s220 = scalar_lea.vmem [#allocation5], %s219
        %p221 = pneg %p63
        %p222 = pneg %p60
        %s223 = sand.u32 %s21, 1
        %s224 = scalar_lea.sflag [#allocation6], %s223
        %s225 = sand.u32 %s76, 1
        %s226 = smul.addr %s225, 4
        %s227 = scalar_lea.vmem [#allocation7], %s226
        %p228 = pneg %p89
        %p229 = pneg %p86
        %p230 = pneg %p115
        %p231 = pneg %p112
        %s232 = sand.u32 %s102, 1
        %s233 = scalar_lea.sflag [#allocation4], %s232
        %s234 = sand.u32 %s102, 1
        %s235 = smul.addr %s234, 4
        %s236 = scalar_lea.vmem [#allocation8], %s235
        %s237 = smul.u32 4, %s21
        %s238 = smul.u32 4, %s21
        %s239 = smul.u32 4, %s21
        %v240 = vld [vmem:[#allocation2] sm:$0xff]
        %v241 = vld [vmem:[#allocation2 + $0x8] sm:$0xff]
        %v242 = vld [vmem:[%s200] sm:$0xff]
        %v243 = vld [vmem:[%s200 + $0x8] sm:$0xff]
        %v244 = vld [vmem:[%s200 + $0x10] sm:$0xff]
        %v245 = vld [vmem:[%s200 + $0x18] sm:$0xff]
        %v246 = vld [vmem:[%s200 + $0x20] sm:$0xff]
        %v247 = vld [vmem:[%s200 + $0x28] sm:$0xff]
        %v248 = vld [vmem:[%s200 + $0x30] sm:$0xff]
        %v249 = vld [vmem:[%s200 + $0x38] sm:$0xff]
        %v250 = vld [vmem:[%s200 + $0x40] sm:$0xff]
        %v251 = vld [vmem:[%s200 + $0x48] sm:$0xff]
        %v252 = vld [vmem:[%s200 + $0x50] sm:$0xff]
        %v253 = vld [vmem:[%s200 + $0x58] sm:$0xff]
        %v254 = vld [vmem:[%s200 + $0x60] sm:$0xff]
        %v255 = vld [vmem:[%s200 + $0x68] sm:$0xff]
        %v256 = vld [vmem:[%s200 + $0x70] sm:$0xff]
        %v257 = vld [vmem:[%s200 + $0x78] sm:$0xff]
        %v258 = vld [vmem:[%s200 + $0x80] sm:$0xff]
        %v259 = vld [vmem:[%s200 + $0x88] sm:$0xff]
        %v260 = vld [vmem:[%s200 + $0x90] sm:$0xff]
        %v261 = vld [vmem:[%s200 + $0x98] sm:$0xff]
        %v262 = vld [vmem:[%s200 + $0xa0] sm:$0xff]
        %v263 = vld [vmem:[%s200 + $0xa8] sm:$0xff]
        %v264 = vld [vmem:[%s200 + $0xb0] sm:$0xff]
        %v265 = vld [vmem:[%s200 + $0xb8] sm:$0xff]
        %v266 = vld [vmem:[%s200 + $0xc0] sm:$0xff]
        %v267 = vld [vmem:[%s200 + $0xc8] sm:$0xff]
        %v268 = vld [vmem:[%s200 + $0xd0] sm:$0xff]
        %v269 = vld [vmem:[%s200 + $0xd8] sm:$0xff]
        %v270 = vld [vmem:[%s200 + $0xe0] sm:$0xff]
        %v271 = vld [vmem:[%s200 + $0xe8] sm:$0xff]
        %v272 = vld [vmem:[%s200 + $0xf0] sm:$0xff]
        %v273 = vld [vmem:[%s200 + $0xf8] sm:$0xff]
        %v274 = vld [vmem:[%s200 + $0x100] sm:$0xff]
        %v275 = vld [vmem:[%s200 + $0x108] sm:$0xff]
        %v276 = vld [vmem:[%s200 + $0x110] sm:$0xff]
        %v277 = vld [vmem:[%s200 + $0x118] sm:$0xff]
        %v278 = vld [vmem:[%s200 + $0x120] sm:$0xff]
        %v279 = vld [vmem:[%s200 + $0x128] sm:$0xff]
        %v280 = vld [vmem:[%s200 + $0x130] sm:$0xff]
        %v281 = vld [vmem:[%s200 + $0x138] sm:$0xff]
        %v282 = vld [vmem:[%s200 + $0x140] sm:$0xff]
        %v283 = vld [vmem:[%s200 + $0x148] sm:$0xff]
        %v284 = vld [vmem:[%s200 + $0x150] sm:$0xff]
        %v285 = vld [vmem:[%s200 + $0x158] sm:$0xff]
        %v286 = vld [vmem:[%s200 + $0x160] sm:$0xff]
        %v287 = vld [vmem:[%s200 + $0x168] sm:$0xff]
        %v288 = vld [vmem:[%s200 + $0x170] sm:$0xff]
        %v289 = vld [vmem:[%s200 + $0x178] sm:$0xff]
        %v290 = vld [vmem:[%s200 + $0x180] sm:$0xff]
        %v291 = vld [vmem:[%s200 + $0x188] sm:$0xff]
        %v292 = vld [vmem:[%s200 + $0x190] sm:$0xff]
        %v293 = vld [vmem:[%s200 + $0x198] sm:$0xff]
        %v294 = vld [vmem:[%s200 + $0x1a0] sm:$0xff]
        %v295 = vld [vmem:[%s200 + $0x1a8] sm:$0xff]
        %v296 = vld [vmem:[%s200 + $0x1b0] sm:$0xff]
        %v297 = vld [vmem:[%s200 + $0x1b8] sm:$0xff]
        %v298 = vld [vmem:[%s200 + $0x1c0] sm:$0xff]
        %v299 = vld [vmem:[%s200 + $0x1c8] sm:$0xff]
        %v300 = vld [vmem:[%s200 + $0x1d0] sm:$0xff]
        %v301 = vld [vmem:[%s200 + $0x1d8] sm:$0xff]
        %v302 = vld [vmem:[%s200 + $0x1e0] sm:$0xff]
        %v303 = vld [vmem:[%s200 + $0x1e8] sm:$0xff]
        %v304 = vld [vmem:[%s200 + $0x1f0] sm:$0xff]
        %v305 = vld [vmem:[%s200 + $0x1f8] sm:$0xff]
        %v306 = vld [vmem:[%s200 + $0x200] sm:$0xff]
        %v307 = vld [vmem:[%s200 + $0x208] sm:$0xff]
        %v308 = vld [vmem:[%s200 + $0x210] sm:$0xff]
        %v309 = vld [vmem:[%s200 + $0x218] sm:$0xff]
        %v310 = vld [vmem:[%s200 + $0x220] sm:$0xff]
        %v311 = vld [vmem:[%s200 + $0x228] sm:$0xff]
        %v312 = vld [vmem:[%s200 + $0x230] sm:$0xff]
        %v313 = vld [vmem:[%s200 + $0x238] sm:$0xff]
        %v314 = vld [vmem:[%s200 + $0x240] sm:$0xff]
        %v315 = vld [vmem:[%s200 + $0x248] sm:$0xff]
        %v316 = vld [vmem:[%s200 + $0x250] sm:$0xff]
        %v317 = vld [vmem:[%s200 + $0x258] sm:$0xff]
        %v318 = vld [vmem:[%s200 + $0x260] sm:$0xff]
        %v319 = vld [vmem:[%s200 + $0x268] sm:$0xff]
        %v320 = vld [vmem:[%s200 + $0x270] sm:$0xff]
        %v321 = vld [vmem:[%s200 + $0x278] sm:$0xff]
        %v322 = vld [vmem:[%s200 + $0x280] sm:$0xff]
        %v323 = vld [vmem:[%s200 + $0x288] sm:$0xff]
        %v324 = vld [vmem:[%s200 + $0x290] sm:$0xff]
        %v325 = vld [vmem:[%s200 + $0x298] sm:$0xff]
        %v326 = vld [vmem:[%s200 + $0x2a0] sm:$0xff]
        %v327 = vld [vmem:[%s200 + $0x2a8] sm:$0xff]
        %v328 = vld [vmem:[%s200 + $0x2b0] sm:$0xff]
        %v329 = vld [vmem:[%s200 + $0x2b8] sm:$0xff]
        %v330 = vld [vmem:[%s200 + $0x2c0] sm:$0xff]
        %v331 = vld [vmem:[%s200 + $0x2c8] sm:$0xff]
        %v332 = vld [vmem:[%s200 + $0x2d0] sm:$0xff]
        %v333 = vld [vmem:[%s200 + $0x2d8] sm:$0xff]
        %v334 = vld [vmem:[%s200 + $0x2e0] sm:$0xff]
        %v335 = vld [vmem:[%s200 + $0x2e8] sm:$0xff]
        %v336 = vld [vmem:[%s200 + $0x2f0] sm:$0xff]
        %v337 = vld [vmem:[%s200 + $0x2f8] sm:$0xff]
        %v338 = vld [vmem:[%s200 + $0x300] sm:$0xff]
        %v339 = vld [vmem:[%s200 + $0x308] sm:$0xff]
        %v340 = vld [vmem:[%s200 + $0x310] sm:$0xff]
        %v341 = vld [vmem:[%s200 + $0x318] sm:$0xff]
        %v342 = vld [vmem:[%s200 + $0x320] sm:$0xff]
        %v343 = vld [vmem:[%s200 + $0x328] sm:$0xff]
        %v344 = vld [vmem:[%s200 + $0x330] sm:$0xff]
        %v345 = vld [vmem:[%s200 + $0x338] sm:$0xff]
        %v346 = vld [vmem:[%s200 + $0x340] sm:$0xff]
        %v347 = vld [vmem:[%s200 + $0x348] sm:$0xff]
        %v348 = vld [vmem:[%s200 + $0x350] sm:$0xff]
        %v349 = vld [vmem:[%s200 + $0x358] sm:$0xff]
        %v350 = vld [vmem:[%s200 + $0x360] sm:$0xff]
        %v351 = vld [vmem:[%s200 + $0x368] sm:$0xff]
        %v352 = vld [vmem:[%s200 + $0x370] sm:$0xff]
        %v353 = vld [vmem:[%s200 + $0x378] sm:$0xff]
        %v354 = vld [vmem:[%s200 + $0x380] sm:$0xff]
        %v355 = vld [vmem:[%s200 + $0x388] sm:$0xff]
        %v356 = vld [vmem:[%s200 + $0x390] sm:$0xff]
        %v357 = vld [vmem:[%s200 + $0x398] sm:$0xff]
        %v358 = vld [vmem:[%s200 + $0x3a0] sm:$0xff]
        %v359 = vld [vmem:[%s200 + $0x3a8] sm:$0xff]
        %v360 = vld [vmem:[%s200 + $0x3b0] sm:$0xff]
        %v361 = vld [vmem:[%s200 + $0x3b8] sm:$0xff]
        %v362 = vld [vmem:[%s200 + $0x3c0] sm:$0xff]
        %v363 = vld [vmem:[%s200 + $0x3c8] sm:$0xff]
        %v364 = vld [vmem:[%s200 + $0x3d0] sm:$0xff]
        %v365 = vld [vmem:[%s200 + $0x3d8] sm:$0xff]
        %v366 = vld [vmem:[%s200 + $0x3e0] sm:$0xff]
        %v367 = vld [vmem:[%s200 + $0x3e8] sm:$0xff]
        %v368 = vld [vmem:[%s200 + $0x3f0] sm:$0xff]
        %v369 = vld [vmem:[%s200 + $0x3f8] sm:$0xff]
        %v370 = vld [vmem:[%s200 + $0x400] sm:$0xff]
        %v371 = vld [vmem:[%s200 + $0x408] sm:$0xff]
        %v372 = vld [vmem:[%s200 + $0x410] sm:$0xff]
        %v373 = vld [vmem:[%s200 + $0x418] sm:$0xff]
        %v374 = vld [vmem:[%s200 + $0x420] sm:$0xff]
        %v375 = vld [vmem:[%s200 + $0x428] sm:$0xff]
        %v376 = vld [vmem:[%s200 + $0x430] sm:$0xff]
        %v377 = vld [vmem:[%s200 + $0x438] sm:$0xff]
        %v378 = vld [vmem:[%s200 + $0x440] sm:$0xff]
        %v379 = vld [vmem:[%s200 + $0x448] sm:$0xff]
        %v380 = vld [vmem:[%s200 + $0x450] sm:$0xff]
        %v381 = vld [vmem:[%s200 + $0x458] sm:$0xff]
        %v382 = vld [vmem:[%s200 + $0x460] sm:$0xff]
        %v383 = vld [vmem:[%s200 + $0x468] sm:$0xff]
        %v384 = vld [vmem:[%s200 + $0x470] sm:$0xff]
        %v385 = vld [vmem:[%s200 + $0x478] sm:$0xff]
        %v386 = vld [vmem:[%s200 + $0x480] sm:$0xff]
        %v387 = vld [vmem:[%s200 + $0x488] sm:$0xff]
        %v388 = vld [vmem:[%s200 + $0x490] sm:$0xff]
        %v389 = vld [vmem:[%s200 + $0x498] sm:$0xff]
        %v390 = vld [vmem:[%s200 + $0x4a0] sm:$0xff]
        %v391 = vld [vmem:[%s200 + $0x4a8] sm:$0xff]
        %v392 = vld [vmem:[%s200 + $0x4b0] sm:$0xff]
        %v393 = vld [vmem:[%s200 + $0x4b8] sm:$0xff]
        %v394 = vld [vmem:[%s200 + $0x4c0] sm:$0xff]
        %v395 = vld [vmem:[%s200 + $0x4c8] sm:$0xff]
        %v396 = vld [vmem:[%s200 + $0x4d0] sm:$0xff]
        %v397 = vld [vmem:[%s200 + $0x4d8] sm:$0xff]
        %v398 = vld [vmem:[%s200 + $0x4e0] sm:$0xff]
        %v399 = vld [vmem:[%s200 + $0x4e8] sm:$0xff]
        %v400 = vld [vmem:[%s200 + $0x4f0] sm:$0xff]
        %v401 = vld [vmem:[%s200 + $0x4f8] sm:$0xff]
        %v402 = vld [vmem:[%s200 + $0x500] sm:$0xff]
        %v403 = vld [vmem:[%s200 + $0x508] sm:$0xff]
        %v404 = vld [vmem:[%s200 + $0x510] sm:$0xff]
        %v405 = vld [vmem:[%s200 + $0x518] sm:$0xff]
        %v406 = vld [vmem:[%s200 + $0x520] sm:$0xff]
        %v407 = vld [vmem:[%s200 + $0x528] sm:$0xff]
        %v408 = vld [vmem:[%s200 + $0x530] sm:$0xff]
        %v409 = vld [vmem:[%s200 + $0x538] sm:$0xff]
        %v410 = vld [vmem:[%s200 + $0x540] sm:$0xff]
        %v411 = vld [vmem:[%s200 + $0x548] sm:$0xff]
        %v412 = vld [vmem:[%s200 + $0x550] sm:$0xff]
        %v413 = vld [vmem:[%s200 + $0x558] sm:$0xff]
        %v414 = vld [vmem:[%s200 + $0x560] sm:$0xff]
        %v415 = vld [vmem:[%s200 + $0x568] sm:$0xff]
        %v416 = vld [vmem:[%s200 + $0x570] sm:$0xff]
        %v417 = vld [vmem:[%s200 + $0x578] sm:$0xff]
        %v418 = vld [vmem:[%s200 + $0x580] sm:$0xff]
        %v419 = vld [vmem:[%s200 + $0x588] sm:$0xff]
        %v420 = vld [vmem:[%s200 + $0x590] sm:$0xff]
        %v421 = vld [vmem:[%s200 + $0x598] sm:$0xff]
        %v422 = vld [vmem:[%s200 + $0x5a0] sm:$0xff]
        %v423 = vld [vmem:[%s200 + $0x5a8] sm:$0xff]
        %v424 = vld [vmem:[%s200 + $0x5b0] sm:$0xff]
        %v425 = vld [vmem:[%s200 + $0x5b8] sm:$0xff]
        %v426 = vld [vmem:[%s200 + $0x5c0] sm:$0xff]
        %v427 = vld [vmem:[%s200 + $0x5c8] sm:$0xff]
        %v428 = vld [vmem:[%s200 + $0x5d0] sm:$0xff]
        %v429 = vld [vmem:[%s200 + $0x5d8] sm:$0xff]
        %v430 = vld [vmem:[%s200 + $0x5e0] sm:$0xff]
        %v431 = vld [vmem:[%s200 + $0x5e8] sm:$0xff]
        %v432 = vld [vmem:[%s200 + $0x5f0] sm:$0xff]
        %v433 = vld [vmem:[%s200 + $0x5f8] sm:$0xff]
        %v434 = vld [vmem:[%s200 + $0x600] sm:$0xff]
        %v435 = vld [vmem:[%s200 + $0x608] sm:$0xff]
        %v436 = vld [vmem:[%s200 + $0x610] sm:$0xff]
        %v437 = vld [vmem:[%s200 + $0x618] sm:$0xff]
        %v438 = vld [vmem:[%s200 + $0x620] sm:$0xff]
        %v439 = vld [vmem:[%s200 + $0x628] sm:$0xff]
        %v440 = vld [vmem:[%s200 + $0x630] sm:$0xff]
        %v441 = vld [vmem:[%s200 + $0x638] sm:$0xff]
        %v442 = vld [vmem:[%s200 + $0x640] sm:$0xff]
        %v443 = vld [vmem:[%s200 + $0x648] sm:$0xff]
        %v444 = vld [vmem:[%s200 + $0x650] sm:$0xff]
        %v445 = vld [vmem:[%s200 + $0x658] sm:$0xff]
        %v446 = vld [vmem:[%s200 + $0x660] sm:$0xff]
        %v447 = vld [vmem:[%s200 + $0x668] sm:$0xff]
        %v448 = vld [vmem:[%s200 + $0x670] sm:$0xff]
        %v449 = vld [vmem:[%s200 + $0x678] sm:$0xff]
        %v450 = vld [vmem:[%s200 + $0x680] sm:$0xff]
        %v451 = vld [vmem:[%s200 + $0x688] sm:$0xff]
        %v452 = vld [vmem:[%s200 + $0x690] sm:$0xff]
        %v453 = vld [vmem:[%s200 + $0x698] sm:$0xff]
        %v454 = vld [vmem:[%s200 + $0x6a0] sm:$0xff]
        %v455 = vld [vmem:[%s200 + $0x6a8] sm:$0xff]
        %v456 = vld [vmem:[%s200 + $0x6b0] sm:$0xff]
        %v457 = vld [vmem:[%s200 + $0x6b8] sm:$0xff]
        %v458 = vld [vmem:[%s200 + $0x6c0] sm:$0xff]
        %v459 = vld [vmem:[%s200 + $0x6c8] sm:$0xff]
        %v460 = vld [vmem:[%s200 + $0x6d0] sm:$0xff]
        %v461 = vld [vmem:[%s200 + $0x6d8] sm:$0xff]
        %v462 = vld [vmem:[%s200 + $0x6e0] sm:$0xff]
        %v463 = vld [vmem:[%s200 + $0x6e8] sm:$0xff]
        %v464 = vld [vmem:[%s200 + $0x6f0] sm:$0xff]
        %v465 = vld [vmem:[%s200 + $0x6f8] sm:$0xff]
        %v466 = vld [vmem:[%s200 + $0x700] sm:$0xff]
        %v467 = vld [vmem:[%s200 + $0x708] sm:$0xff]
        %v468 = vld [vmem:[%s200 + $0x710] sm:$0xff]
        %v469 = vld [vmem:[%s200 + $0x718] sm:$0xff]
        %v470 = vld [vmem:[%s200 + $0x720] sm:$0xff]
        %v471 = vld [vmem:[%s200 + $0x728] sm:$0xff]
        %v472 = vld [vmem:[%s200 + $0x730] sm:$0xff]
        %v473 = vld [vmem:[%s200 + $0x738] sm:$0xff]
        %v474 = vld [vmem:[%s200 + $0x740] sm:$0xff]
        %v475 = vld [vmem:[%s200 + $0x748] sm:$0xff]
        %v476 = vld [vmem:[%s200 + $0x750] sm:$0xff]
        %v477 = vld [vmem:[%s200 + $0x758] sm:$0xff]
        %v478 = vld [vmem:[%s200 + $0x760] sm:$0xff]
        %v479 = vld [vmem:[%s200 + $0x768] sm:$0xff]
        %v480 = vld [vmem:[%s200 + $0x770] sm:$0xff]
        %v481 = vld [vmem:[%s200 + $0x778] sm:$0xff]
        %v482 = vld [vmem:[%s200 + $0x780] sm:$0xff]
        %v483 = vld [vmem:[%s200 + $0x788] sm:$0xff]
        %v484 = vld [vmem:[%s200 + $0x790] sm:$0xff]
        %v485 = vld [vmem:[%s200 + $0x798] sm:$0xff]
        %v486 = vld [vmem:[%s200 + $0x7a0] sm:$0xff]
        %v487 = vld [vmem:[%s200 + $0x7a8] sm:$0xff]
        %v488 = vld [vmem:[%s200 + $0x7b0] sm:$0xff]
        %v489 = vld [vmem:[%s200 + $0x7b8] sm:$0xff]
        %v490 = vld [vmem:[%s200 + $0x7c0] sm:$0xff]
        %v491 = vld [vmem:[%s200 + $0x7c8] sm:$0xff]
        %v492 = vld [vmem:[%s200 + $0x7d0] sm:$0xff]
        %v493 = vld [vmem:[%s200 + $0x7d8] sm:$0xff]
        %v494 = vld [vmem:[%s200 + $0x7e0] sm:$0xff]
        %v495 = vld [vmem:[%s200 + $0x7e8] sm:$0xff]
        %v496 = vld [vmem:[%s200 + $0x7f0] sm:$0xff]
        %v497 = vld [vmem:[%s200 + $0x7f8] sm:$0xff]
        %v498 = vld [vmem:[%s200 + $0x800] sm:$0xff]
        %v499 = vld [vmem:[%s200 + $0x808] sm:$0xff]
        %v500 = vld [vmem:[%s200 + $0x810] sm:$0xff]
        %v501 = vld [vmem:[%s200 + $0x818] sm:$0xff]
        %v502 = vld [vmem:[%s200 + $0x820] sm:$0xff]
        %v503 = vld [vmem:[%s200 + $0x828] sm:$0xff]
        %v504 = vld [vmem:[%s200 + $0x830] sm:$0xff]
        %v505 = vld [vmem:[%s200 + $0x838] sm:$0xff]
        %v506 = vld [vmem:[%s200 + $0x840] sm:$0xff]
        %v507 = vld [vmem:[%s200 + $0x848] sm:$0xff]
        %v508 = vld [vmem:[%s200 + $0x850] sm:$0xff]
        %v509 = vld [vmem:[%s200 + $0x858] sm:$0xff]
        %v510 = vld [vmem:[%s200 + $0x860] sm:$0xff]
        %v511 = vld [vmem:[%s200 + $0x868] sm:$0xff]
        %v512 = vld [vmem:[%s200 + $0x870] sm:$0xff]
        %v513 = vld [vmem:[%s200 + $0x878] sm:$0xff]
        %v514 = vld [vmem:[%s200 + $0x880] sm:$0xff]
        %v515 = vld [vmem:[%s200 + $0x888] sm:$0xff]
        %v516 = vld [vmem:[%s200 + $0x890] sm:$0xff]
        %v517 = vld [vmem:[%s200 + $0x898] sm:$0xff]
        %v518 = vld [vmem:[%s200 + $0x8a0] sm:$0xff]
        %v519 = vld [vmem:[%s200 + $0x8a8] sm:$0xff]
        %v520 = vld [vmem:[%s200 + $0x8b0] sm:$0xff]
        %v521 = vld [vmem:[%s200 + $0x8b8] sm:$0xff]
        %v522 = vld [vmem:[%s200 + $0x8c0] sm:$0xff]
        %v523 = vld [vmem:[%s200 + $0x8c8] sm:$0xff]
        %v524 = vld [vmem:[%s200 + $0x8d0] sm:$0xff]
        %v525 = vld [vmem:[%s200 + $0x8d8] sm:$0xff]
        %v526 = vld [vmem:[%s200 + $0x8e0] sm:$0xff]
        %v527 = vld [vmem:[%s200 + $0x8e8] sm:$0xff]
        %v528 = vld [vmem:[%s200 + $0x8f0] sm:$0xff]
        %v529 = vld [vmem:[%s200 + $0x8f8] sm:$0xff]
        %v530 = vld [vmem:[%s200 + $0x900] sm:$0xff]
        %v531 = vld [vmem:[%s200 + $0x908] sm:$0xff]
        %v532 = vld [vmem:[%s200 + $0x910] sm:$0xff]
        %v533 = vld [vmem:[%s200 + $0x918] sm:$0xff]
        %v534 = vld [vmem:[%s200 + $0x920] sm:$0xff]
        %v535 = vld [vmem:[%s200 + $0x928] sm:$0xff]
        %v536 = vld [vmem:[%s200 + $0x930] sm:$0xff]
        %v537 = vld [vmem:[%s200 + $0x938] sm:$0xff]
        %v538 = vld [vmem:[%s200 + $0x940] sm:$0xff]
        %v539 = vld [vmem:[%s200 + $0x948] sm:$0xff]
        %v540 = vld [vmem:[%s200 + $0x950] sm:$0xff]
        %v541 = vld [vmem:[%s200 + $0x958] sm:$0xff]
        %v542 = vld [vmem:[%s200 + $0x960] sm:$0xff]
        %v543 = vld [vmem:[%s200 + $0x968] sm:$0xff]
        %v544 = vld [vmem:[%s200 + $0x970] sm:$0xff]
        %v545 = vld [vmem:[%s200 + $0x978] sm:$0xff]
        %v546 = vld [vmem:[%s200 + $0x980] sm:$0xff]
        %v547 = vld [vmem:[%s200 + $0x988] sm:$0xff]
        %v548 = vld [vmem:[%s200 + $0x990] sm:$0xff]
        %v549 = vld [vmem:[%s200 + $0x998] sm:$0xff]
        %v550 = vld [vmem:[%s200 + $0x9a0] sm:$0xff]
        %v551 = vld [vmem:[%s200 + $0x9a8] sm:$0xff]
        %v552 = vld [vmem:[%s200 + $0x9b0] sm:$0xff]
        %v553 = vld [vmem:[%s200 + $0x9b8] sm:$0xff]
        %v554 = vld [vmem:[%s200 + $0x9c0] sm:$0xff]
        %v555 = vld [vmem:[%s200 + $0x9c8] sm:$0xff]
        %v556 = vld [vmem:[%s200 + $0x9d0] sm:$0xff]
        %v557 = vld [vmem:[%s200 + $0x9d8] sm:$0xff]
        %v558 = vld [vmem:[%s200 + $0x9e0] sm:$0xff]
        %v559 = vld [vmem:[%s200 + $0x9e8] sm:$0xff]
        %v560 = vld [vmem:[%s200 + $0x9f0] sm:$0xff]
        %v561 = vld [vmem:[%s200 + $0x9f8] sm:$0xff]
        %v562 = vld [vmem:[%s200 + $0xa00] sm:$0xff]
        %v563 = vld [vmem:[%s200 + $0xa08] sm:$0xff]
        %v564 = vld [vmem:[%s200 + $0xa10] sm:$0xff]
        %v565 = vld [vmem:[%s200 + $0xa18] sm:$0xff]
        %v566 = vld [vmem:[%s200 + $0xa20] sm:$0xff]
        %v567 = vld [vmem:[%s200 + $0xa28] sm:$0xff]
        %v568 = vld [vmem:[%s200 + $0xa30] sm:$0xff]
        %v569 = vld [vmem:[%s200 + $0xa38] sm:$0xff]
        %v570 = vld [vmem:[%s200 + $0xa40] sm:$0xff]
        %v571 = vld [vmem:[%s200 + $0xa48] sm:$0xff]
        %v572 = vld [vmem:[%s200 + $0xa50] sm:$0xff]
        %v573 = vld [vmem:[%s200 + $0xa58] sm:$0xff]
        %v574 = vld [vmem:[%s200 + $0xa60] sm:$0xff]
        %v575 = vld [vmem:[%s200 + $0xa68] sm:$0xff]
        %v576 = vld [vmem:[%s200 + $0xa70] sm:$0xff]
        %v577 = vld [vmem:[%s200 + $0xa78] sm:$0xff]
        %v578 = vld [vmem:[%s200 + $0xa80] sm:$0xff]
        %v579 = vld [vmem:[%s200 + $0xa88] sm:$0xff]
        %v580 = vld [vmem:[%s200 + $0xa90] sm:$0xff]
        %v581 = vld [vmem:[%s200 + $0xa98] sm:$0xff]
        %v582 = vld [vmem:[%s200 + $0xaa0] sm:$0xff]
        %v583 = vld [vmem:[%s200 + $0xaa8] sm:$0xff]
        %v584 = vld [vmem:[%s200 + $0xab0] sm:$0xff]
        %v585 = vld [vmem:[%s200 + $0xab8] sm:$0xff]
        %v586 = vld [vmem:[%s200 + $0xac0] sm:$0xff]
        %v587 = vld [vmem:[%s200 + $0xac8] sm:$0xff]
        %v588 = vld [vmem:[%s200 + $0xad0] sm:$0xff]
        %v589 = vld [vmem:[%s200 + $0xad8] sm:$0xff]
        %v590 = vld [vmem:[%s200 + $0xae0] sm:$0xff]
        %v591 = vld [vmem:[%s200 + $0xae8] sm:$0xff]
        %v592 = vld [vmem:[%s200 + $0xaf0] sm:$0xff]
        %v593 = vld [vmem:[%s200 + $0xaf8] sm:$0xff]
        %v594 = vld [vmem:[%s200 + $0xb00] sm:$0xff]
        %v595 = vld [vmem:[%s200 + $0xb08] sm:$0xff]
        %v596 = vld [vmem:[%s200 + $0xb10] sm:$0xff]
        %v597 = vld [vmem:[%s200 + $0xb18] sm:$0xff]
        %v598 = vld [vmem:[%s200 + $0xb20] sm:$0xff]
        %v599 = vld [vmem:[%s200 + $0xb28] sm:$0xff]
        %v600 = vld [vmem:[%s200 + $0xb30] sm:$0xff]
        %v601 = vld [vmem:[%s200 + $0xb38] sm:$0xff]
        %v602 = vld [vmem:[%s200 + $0xb40] sm:$0xff]
        %v603 = vld [vmem:[%s200 + $0xb48] sm:$0xff]
        %v604 = vld [vmem:[%s200 + $0xb50] sm:$0xff]
        %v605 = vld [vmem:[%s200 + $0xb58] sm:$0xff]
        %v606 = vld [vmem:[%s200 + $0xb60] sm:$0xff]
        %v607 = vld [vmem:[%s200 + $0xb68] sm:$0xff]
        %v608 = vld [vmem:[%s200 + $0xb70] sm:$0xff]
        %v609 = vld [vmem:[%s200 + $0xb78] sm:$0xff]
        %v610 = vld [vmem:[%s200 + $0xb80] sm:$0xff]
        %v611 = vld [vmem:[%s200 + $0xb88] sm:$0xff]
        %v612 = vld [vmem:[%s200 + $0xb90] sm:$0xff]
        %v613 = vld [vmem:[%s200 + $0xb98] sm:$0xff]
        %v614 = vld [vmem:[%s200 + $0xba0] sm:$0xff]
        %v615 = vld [vmem:[%s200 + $0xba8] sm:$0xff]
        %v616 = vld [vmem:[%s200 + $0xbb0] sm:$0xff]
        %v617 = vld [vmem:[%s200 + $0xbb8] sm:$0xff]
        %v618 = vld [vmem:[%s200 + $0xbc0] sm:$0xff]
        %v619 = vld [vmem:[%s200 + $0xbc8] sm:$0xff]
        %v620 = vld [vmem:[%s200 + $0xbd0] sm:$0xff]
        %v621 = vld [vmem:[%s200 + $0xbd8] sm:$0xff]
        %v622 = vld [vmem:[%s200 + $0xbe0] sm:$0xff]
        %v623 = vld [vmem:[%s200 + $0xbe8] sm:$0xff]
        %v624 = vld [vmem:[%s200 + $0xbf0] sm:$0xff]
        %v625 = vld [vmem:[%s200 + $0xbf8] sm:$0xff]
        %v626 = vld [vmem:[%s200 + $0xc00] sm:$0xff]
        %v627 = vld [vmem:[%s200 + $0xc08] sm:$0xff]
        %v628 = vld [vmem:[%s200 + $0xc10] sm:$0xff]
        %v629 = vld [vmem:[%s200 + $0xc18] sm:$0xff]
        %v630 = vld [vmem:[%s200 + $0xc20] sm:$0xff]
        %v631 = vld [vmem:[%s200 + $0xc28] sm:$0xff]
        %v632 = vld [vmem:[%s200 + $0xc30] sm:$0xff]
        %v633 = vld [vmem:[%s200 + $0xc38] sm:$0xff]
        %v634 = vld [vmem:[%s200 + $0xc40] sm:$0xff]
        %v635 = vld [vmem:[%s200 + $0xc48] sm:$0xff]
        %v636 = vld [vmem:[%s200 + $0xc50] sm:$0xff]
        %v637 = vld [vmem:[%s200 + $0xc58] sm:$0xff]
        %v638 = vld [vmem:[%s200 + $0xc60] sm:$0xff]
        %v639 = vld [vmem:[%s200 + $0xc68] sm:$0xff]
        %v640 = vld [vmem:[%s200 + $0xc70] sm:$0xff]
        %v641 = vld [vmem:[%s200 + $0xc78] sm:$0xff]
        %v642 = vld [vmem:[%s200 + $0xc80] sm:$0xff]
        %v643 = vld [vmem:[%s200 + $0xc88] sm:$0xff]
        %v644 = vld [vmem:[%s200 + $0xc90] sm:$0xff]
        %v645 = vld [vmem:[%s200 + $0xc98] sm:$0xff]
        %v646 = vld [vmem:[%s200 + $0xca0] sm:$0xff]
        %v647 = vld [vmem:[%s200 + $0xca8] sm:$0xff]
        %v648 = vld [vmem:[%s200 + $0xcb0] sm:$0xff]
        %v649 = vld [vmem:[%s200 + $0xcb8] sm:$0xff]
        %v650 = vld [vmem:[%s200 + $0xcc0] sm:$0xff]
        %v651 = vld [vmem:[%s200 + $0xcc8] sm:$0xff]
        %v652 = vld [vmem:[%s200 + $0xcd0] sm:$0xff]
        %v653 = vld [vmem:[%s200 + $0xcd8] sm:$0xff]
        %v654 = vld [vmem:[%s200 + $0xce0] sm:$0xff]
        %v655 = vld [vmem:[%s200 + $0xce8] sm:$0xff]
        %v656 = vld [vmem:[%s200 + $0xcf0] sm:$0xff]
        %v657 = vld [vmem:[%s200 + $0xcf8] sm:$0xff]
        %v658 = vld [vmem:[%s200 + $0xd00] sm:$0xff]
        %v659 = vld [vmem:[%s200 + $0xd08] sm:$0xff]
        %v660 = vld [vmem:[%s200 + $0xd10] sm:$0xff]
        %v661 = vld [vmem:[%s200 + $0xd18] sm:$0xff]
        %v662 = vld [vmem:[%s200 + $0xd20] sm:$0xff]
        %v663 = vld [vmem:[%s200 + $0xd28] sm:$0xff]
        %v664 = vld [vmem:[%s200 + $0xd30] sm:$0xff]
        %v665 = vld [vmem:[%s200 + $0xd38] sm:$0xff]
        %v666 = vld [vmem:[%s200 + $0xd40] sm:$0xff]
        %v667 = vld [vmem:[%s200 + $0xd48] sm:$0xff]
        %v668 = vld [vmem:[%s200 + $0xd50] sm:$0xff]
        %v669 = vld [vmem:[%s200 + $0xd58] sm:$0xff]
        %v670 = vld [vmem:[%s200 + $0xd60] sm:$0xff]
        %v671 = vld [vmem:[%s200 + $0xd68] sm:$0xff]
        %v672 = vld [vmem:[%s200 + $0xd70] sm:$0xff]
        %v673 = vld [vmem:[%s200 + $0xd78] sm:$0xff]
        %v674 = vld [vmem:[%s200 + $0xd80] sm:$0xff]
        %v675 = vld [vmem:[%s200 + $0xd88] sm:$0xff]
        %v676 = vld [vmem:[%s200 + $0xd90] sm:$0xff]
        %v677 = vld [vmem:[%s200 + $0xd98] sm:$0xff]
        %v678 = vld [vmem:[%s200 + $0xda0] sm:$0xff]
        %v679 = vld [vmem:[%s200 + $0xda8] sm:$0xff]
        %v680 = vld [vmem:[%s200 + $0xdb0] sm:$0xff]
        %v681 = vld [vmem:[%s200 + $0xdb8] sm:$0xff]
        %v682 = vld [vmem:[%s200 + $0xdc0] sm:$0xff]
        %v683 = vld [vmem:[%s200 + $0xdc8] sm:$0xff]
        %v684 = vld [vmem:[%s200 + $0xdd0] sm:$0xff]
        %v685 = vld [vmem:[%s200 + $0xdd8] sm:$0xff]
        %v686 = vld [vmem:[%s200 + $0xde0] sm:$0xff]
        %v687 = vld [vmem:[%s200 + $0xde8] sm:$0xff]
        %v688 = vld [vmem:[%s200 + $0xdf0] sm:$0xff]
        %v689 = vld [vmem:[%s200 + $0xdf8] sm:$0xff]
        %v690 = vld [vmem:[%s200 + $0xe00] sm:$0xff]
        %v691 = vld [vmem:[%s200 + $0xe08] sm:$0xff]
        %v692 = vld [vmem:[%s200 + $0xe10] sm:$0xff]
        %v693 = vld [vmem:[%s200 + $0xe18] sm:$0xff]
        %v694 = vld [vmem:[%s200 + $0xe20] sm:$0xff]
        %v695 = vld [vmem:[%s200 + $0xe28] sm:$0xff]
        %v696 = vld [vmem:[%s200 + $0xe30] sm:$0xff]
        %v697 = vld [vmem:[%s200 + $0xe38] sm:$0xff]
        %v698 = vld [vmem:[%s200 + $0xe40] sm:$0xff]
        %v699 = vld [vmem:[%s200 + $0xe48] sm:$0xff]
        %v700 = vld [vmem:[%s200 + $0xe50] sm:$0xff]
        %v701 = vld [vmem:[%s200 + $0xe58] sm:$0xff]
        %v702 = vld [vmem:[%s200 + $0xe60] sm:$0xff]
        %v703 = vld [vmem:[%s200 + $0xe68] sm:$0xff]
        %v704 = vld [vmem:[%s200 + $0xe70] sm:$0xff]
        %v705 = vld [vmem:[%s200 + $0xe78] sm:$0xff]
        %v706 = vld [vmem:[%s200 + $0xe80] sm:$0xff]
        %v707 = vld [vmem:[%s200 + $0xe88] sm:$0xff]
        %v708 = vld [vmem:[%s200 + $0xe90] sm:$0xff]
        %v709 = vld [vmem:[%s200 + $0xe98] sm:$0xff]
        %v710 = vld [vmem:[%s200 + $0xea0] sm:$0xff]
        %v711 = vld [vmem:[%s200 + $0xea8] sm:$0xff]
        %v712 = vld [vmem:[%s200 + $0xeb0] sm:$0xff]
        %v713 = vld [vmem:[%s200 + $0xeb8] sm:$0xff]
        %v714 = vld [vmem:[%s200 + $0xec0] sm:$0xff]
        %v715 = vld [vmem:[%s200 + $0xec8] sm:$0xff]
        %v716 = vld [vmem:[%s200 + $0xed0] sm:$0xff]
        %v717 = vld [vmem:[%s200 + $0xed8] sm:$0xff]
        %v718 = vld [vmem:[%s200 + $0xee0] sm:$0xff]
        %v719 = vld [vmem:[%s200 + $0xee8] sm:$0xff]
        %v720 = vld [vmem:[%s200 + $0xef0] sm:$0xff]
        %v721 = vld [vmem:[%s200 + $0xef8] sm:$0xff]
        %v722 = vld [vmem:[%s200 + $0xf00] sm:$0xff]
        %v723 = vld [vmem:[%s200 + $0xf08] sm:$0xff]
        %v724 = vld [vmem:[%s200 + $0xf10] sm:$0xff]
        %v725 = vld [vmem:[%s200 + $0xf18] sm:$0xff]
        %v726 = vld [vmem:[%s200 + $0xf20] sm:$0xff]
        %v727 = vld [vmem:[%s200 + $0xf28] sm:$0xff]
        %v728 = vld [vmem:[%s200 + $0xf30] sm:$0xff]
        %v729 = vld [vmem:[%s200 + $0xf38] sm:$0xff]
        %v730 = vld [vmem:[%s200 + $0xf40] sm:$0xff]
        %v731 = vld [vmem:[%s200 + $0xf48] sm:$0xff]
        %v732 = vld [vmem:[%s200 + $0xf50] sm:$0xff]
        %v733 = vld [vmem:[%s200 + $0xf58] sm:$0xff]
        %v734 = vld [vmem:[%s200 + $0xf60] sm:$0xff]
        %v735 = vld [vmem:[%s200 + $0xf68] sm:$0xff]
        %v736 = vld [vmem:[%s200 + $0xf70] sm:$0xff]
        %v737 = vld [vmem:[%s200 + $0xf78] sm:$0xff]
        %v738 = vld [vmem:[%s200 + $0xf80] sm:$0xff]
        %v739 = vld [vmem:[%s200 + $0xf88] sm:$0xff]
        %v740 = vld [vmem:[%s200 + $0xf90] sm:$0xff]
        %v741 = vld [vmem:[%s200 + $0xf98] sm:$0xff]
        %v742 = vld [vmem:[%s200 + $0xfa0] sm:$0xff]
        %v743 = vld [vmem:[%s200 + $0xfa8] sm:$0xff]
        %v744 = vld [vmem:[%s200 + $0xfb0] sm:$0xff]
        %v745 = vld [vmem:[%s200 + $0xfb8] sm:$0xff]
        %v746 = vld [vmem:[%s200 + $0xfc0] sm:$0xff]
        %v747 = vld [vmem:[%s200 + $0xfc8] sm:$0xff]
        %v748 = vld [vmem:[%s200 + $0xfd0] sm:$0xff]
        %v749 = vld [vmem:[%s200 + $0xfd8] sm:$0xff]
        %v750 = vld [vmem:[%s200 + $0xfe0] sm:$0xff]
        %v751 = vld [vmem:[%s200 + $0xfe8] sm:$0xff]
        %v752 = vld [vmem:[%s200 + $0xff0] sm:$0xff]
        %v753 = vld [vmem:[%s200 + $0xff8] sm:$0xff]
        %v754 = vld [vmem:[%s209] sm:$0xf]
        %v757 = vcombine.high %v240, %v240
        %v759 = vunpack.c.l.s4 1966171168
        %v760 = vunpack.c.0.s8 %v759
        %v761 = vlaneseq
        %v762 = vshrl.u32 %v761, 7
        %v763 = vsub.s32 %v760, %v762
        %v764 = vrot.slane %v240, %v763
        %v766 = vunpack.c.l.s4 1966171168
        %v767 = vunpack.c.0.s8 %v766
        %v768 = vlaneseq
        %v769 = vshrl.u32 %v768, 7
        %v770 = vsub.s32 %v767, %v769
        %v771 = vrot.slane %v757, %v770
        %v772 = vcombine.high %v764, %v764
        %v773 = vcombine.high %v771, %v771
        %v775 = vunpack.c.l.s4 1966171168
        %v776 = vunpack.c.0.s8 %v775
        %v777 = vlaneseq
        %v778 = vshrl.u32 %v777, 7
        %v779 = vsub.s32 %v776, %v778
        %v780 = vrot.slane %v764, %v779
        %v782 = vunpack.c.l.s4 1966171168
        %v783 = vunpack.c.0.s8 %v782
        %v784 = vlaneseq
        %v785 = vshrl.u32 %v784, 7
        %v786 = vsub.s32 %v783, %v785
        %v787 = vrot.slane %v771, %v786
        %v789 = vunpack.c.l.s4 1966171168
        %v790 = vunpack.c.0.s8 %v789
        %v791 = vlaneseq
        %v792 = vshrl.u32 %v791, 7
        %v793 = vsub.s32 %v790, %v792
        %v794 = vrot.slane %v772, %v793
        %v796 = vunpack.c.l.s4 1966171168
        %v797 = vunpack.c.0.s8 %v796
        %v798 = vlaneseq
        %v799 = vshrl.u32 %v798, 7
        %v800 = vsub.s32 %v797, %v799
        %v801 = vrot.slane %v773, %v800
        %v802 = vcombine.high %v780, %v780
        %v803 = vcombine.high %v787, %v787
        %v804 = vcombine.high %v794, %v794
        %v805 = vcombine.high %v801, %v801
        %v806 = vcombine.high %v241, %v241
        %v808 = vunpack.c.l.s4 1966171168
        %v809 = vunpack.c.0.s8 %v808
        %v810 = vlaneseq
        %v811 = vshrl.u32 %v810, 7
        %v812 = vsub.s32 %v809, %v811
        %v813 = vrot.slane %v241, %v812
        %v815 = vunpack.c.l.s4 1966171168
        %v816 = vunpack.c.0.s8 %v815
        %v817 = vlaneseq
        %v818 = vshrl.u32 %v817, 7
        %v819 = vsub.s32 %v816, %v818
        %v820 = vrot.slane %v806, %v819
        %v821 = vcombine.high %v813, %v813
        %v822 = vcombine.high %v820, %v820
        %v824 = vunpack.c.l.s4 1966171168
        %v825 = vunpack.c.0.s8 %v824
        %v826 = vlaneseq
        %v827 = vshrl.u32 %v826, 7
        %v828 = vsub.s32 %v825, %v827
        %v829 = vrot.slane %v813, %v828
        %v831 = vunpack.c.l.s4 1966171168
        %v832 = vunpack.c.0.s8 %v831
        %v833 = vlaneseq
        %v834 = vshrl.u32 %v833, 7
        %v835 = vsub.s32 %v832, %v834
        %v836 = vrot.slane %v820, %v835
        %v838 = vunpack.c.l.s4 1966171168
        %v839 = vunpack.c.0.s8 %v838
        %v840 = vlaneseq
        %v841 = vshrl.u32 %v840, 7
        %v842 = vsub.s32 %v839, %v841
        %v843 = vrot.slane %v821, %v842
        %v845 = vunpack.c.l.s4 1966171168
        %v846 = vunpack.c.0.s8 %v845
        %v847 = vlaneseq
        %v848 = vshrl.u32 %v847, 7
        %v849 = vsub.s32 %v846, %v848
        %v850 = vrot.slane %v822, %v849
        %v851 = vcombine.high %v829, %v829
        %v852 = vcombine.high %v836, %v836
        %v853 = vcombine.high %v843, %v843
        %v854 = vcombine.high %v850, %v850
        %v1383 = vunpack.c.l.b16 %v242
        %v1384 = vunpack.c.h.b16 %v242
        %v1385 = vunpack.c.l.b16 %v243
        %v1386 = vunpack.c.h.b16 %v243
        %v1387 = vunpack.c.l.b16 %v244
        %v1388 = vunpack.c.h.b16 %v244
        %v1389 = vunpack.c.l.b16 %v245
        %v1390 = vunpack.c.h.b16 %v245
        %v1391 = vunpack.c.l.b16 %v246
        %v1392 = vunpack.c.h.b16 %v246
        %v1393 = vunpack.c.l.b16 %v247
        %v1394 = vunpack.c.h.b16 %v247
        %v1395 = vunpack.c.l.b16 %v248
        %v1396 = vunpack.c.h.b16 %v248
        %v1397 = vunpack.c.l.b16 %v249
        %v1398 = vunpack.c.h.b16 %v249
        %v1399 = vunpack.c.l.b16 %v250
        %v1400 = vunpack.c.h.b16 %v250
        %v1401 = vunpack.c.l.b16 %v251
        %v1402 = vunpack.c.h.b16 %v251
        %v1403 = vunpack.c.l.b16 %v252
        %v1404 = vunpack.c.h.b16 %v252
        %v1405 = vunpack.c.l.b16 %v253
        %v1406 = vunpack.c.h.b16 %v253
        %v1407 = vunpack.c.l.b16 %v254
        %v1408 = vunpack.c.h.b16 %v254
        %v1409 = vunpack.c.l.b16 %v255
        %v1410 = vunpack.c.h.b16 %v255
        %v1411 = vunpack.c.l.b16 %v256
        %v1412 = vunpack.c.h.b16 %v256
        %v1413 = vunpack.c.l.b16 %v257
        %v1414 = vunpack.c.h.b16 %v257
        %v1415 = vunpack.c.l.b16 %v258
        %v1416 = vunpack.c.h.b16 %v258
        %v1417 = vunpack.c.l.b16 %v259
        %v1418 = vunpack.c.h.b16 %v259
        %v1419 = vunpack.c.l.b16 %v260
        %v1420 = vunpack.c.h.b16 %v260
        %v1421 = vunpack.c.l.b16 %v261
        %v1422 = vunpack.c.h.b16 %v261
        %v1423 = vunpack.c.l.b16 %v262
        %v1424 = vunpack.c.h.b16 %v262
        %v1425 = vunpack.c.l.b16 %v263
        %v1426 = vunpack.c.h.b16 %v263
        %v1427 = vunpack.c.l.b16 %v264
        %v1428 = vunpack.c.h.b16 %v264
        %v1429 = vunpack.c.l.b16 %v265
        %v1430 = vunpack.c.h.b16 %v265
        %v1431 = vunpack.c.l.b16 %v266
        %v1432 = vunpack.c.h.b16 %v266
        %v1433 = vunpack.c.l.b16 %v267
        %v1434 = vunpack.c.h.b16 %v267
        %v1435 = vunpack.c.l.b16 %v268
        %v1436 = vunpack.c.h.b16 %v268
        %v1437 = vunpack.c.l.b16 %v269
        %v1438 = vunpack.c.h.b16 %v269
        %v1439 = vunpack.c.l.b16 %v270
        %v1440 = vunpack.c.h.b16 %v270
        %v1441 = vunpack.c.l.b16 %v271
        %v1442 = vunpack.c.h.b16 %v271
        %v1443 = vunpack.c.l.b16 %v272
        %v1444 = vunpack.c.h.b16 %v272
        %v1445 = vunpack.c.l.b16 %v273
        %v1446 = vunpack.c.h.b16 %v273
        %v1447 = vunpack.c.l.b16 %v274
        %v1448 = vunpack.c.h.b16 %v274
        %v1449 = vunpack.c.l.b16 %v275
        %v1450 = vunpack.c.h.b16 %v275
        %v1451 = vunpack.c.l.b16 %v276
        %v1452 = vunpack.c.h.b16 %v276
        %v1453 = vunpack.c.l.b16 %v277
        %v1454 = vunpack.c.h.b16 %v277
        %v1455 = vunpack.c.l.b16 %v278
        %v1456 = vunpack.c.h.b16 %v278
        %v1457 = vunpack.c.l.b16 %v279
        %v1458 = vunpack.c.h.b16 %v279
        %v1459 = vunpack.c.l.b16 %v280
        %v1460 = vunpack.c.h.b16 %v280
        %v1461 = vunpack.c.l.b16 %v281
        %v1462 = vunpack.c.h.b16 %v281
        %v1463 = vunpack.c.l.b16 %v282
        %v1464 = vunpack.c.h.b16 %v282
        %v1465 = vunpack.c.l.b16 %v283
        %v1466 = vunpack.c.h.b16 %v283
        %v1467 = vunpack.c.l.b16 %v284
        %v1468 = vunpack.c.h.b16 %v284
        %v1469 = vunpack.c.l.b16 %v285
        %v1470 = vunpack.c.h.b16 %v285
        %v1471 = vunpack.c.l.b16 %v286
        %v1472 = vunpack.c.h.b16 %v286
        %v1473 = vunpack.c.l.b16 %v287
        %v1474 = vunpack.c.h.b16 %v287
        %v1475 = vunpack.c.l.b16 %v288
        %v1476 = vunpack.c.h.b16 %v288
        %v1477 = vunpack.c.l.b16 %v289
        %v1478 = vunpack.c.h.b16 %v289
        %v1479 = vunpack.c.l.b16 %v290
        %v1480 = vunpack.c.h.b16 %v290
        %v1481 = vunpack.c.l.b16 %v291
        %v1482 = vunpack.c.h.b16 %v291
        %v1483 = vunpack.c.l.b16 %v292
        %v1484 = vunpack.c.h.b16 %v292
        %v1485 = vunpack.c.l.b16 %v293
        %v1486 = vunpack.c.h.b16 %v293
        %v1487 = vunpack.c.l.b16 %v294
        %v1488 = vunpack.c.h.b16 %v294
        %v1489 = vunpack.c.l.b16 %v295
        %v1490 = vunpack.c.h.b16 %v295
        %v1491 = vunpack.c.l.b16 %v296
        %v1492 = vunpack.c.h.b16 %v296
        %v1493 = vunpack.c.l.b16 %v297
        %v1494 = vunpack.c.h.b16 %v297
        %v1495 = vunpack.c.l.b16 %v298
        %v1496 = vunpack.c.h.b16 %v298
        %v1497 = vunpack.c.l.b16 %v299
        %v1498 = vunpack.c.h.b16 %v299
        %v1499 = vunpack.c.l.b16 %v300
        %v1500 = vunpack.c.h.b16 %v300
        %v1501 = vunpack.c.l.b16 %v301
        %v1502 = vunpack.c.h.b16 %v301
        %v1503 = vunpack.c.l.b16 %v302
        %v1504 = vunpack.c.h.b16 %v302
        %v1505 = vunpack.c.l.b16 %v303
        %v1506 = vunpack.c.h.b16 %v303
        %v1507 = vunpack.c.l.b16 %v304
        %v1508 = vunpack.c.h.b16 %v304
        %v1509 = vunpack.c.l.b16 %v305
        %v1510 = vunpack.c.h.b16 %v305
        %v1511 = vunpack.c.l.b16 %v306
        %v1512 = vunpack.c.h.b16 %v306
        %v1513 = vunpack.c.l.b16 %v307
        %v1514 = vunpack.c.h.b16 %v307
        %v1515 = vunpack.c.l.b16 %v308
        %v1516 = vunpack.c.h.b16 %v308
        %v1517 = vunpack.c.l.b16 %v309
        %v1518 = vunpack.c.h.b16 %v309
        %v1519 = vunpack.c.l.b16 %v310
        %v1520 = vunpack.c.h.b16 %v310
        %v1521 = vunpack.c.l.b16 %v311
        %v1522 = vunpack.c.h.b16 %v311
        %v1523 = vunpack.c.l.b16 %v312
        %v1524 = vunpack.c.h.b16 %v312
        %v1525 = vunpack.c.l.b16 %v313
        %v1526 = vunpack.c.h.b16 %v313
        %v1527 = vunpack.c.l.b16 %v314
        %v1528 = vunpack.c.h.b16 %v314
        %v1529 = vunpack.c.l.b16 %v315
        %v1530 = vunpack.c.h.b16 %v315
        %v1531 = vunpack.c.l.b16 %v316
        %v1532 = vunpack.c.h.b16 %v316
        %v1533 = vunpack.c.l.b16 %v317
        %v1534 = vunpack.c.h.b16 %v317
        %v1535 = vunpack.c.l.b16 %v318
        %v1536 = vunpack.c.h.b16 %v318
        %v1537 = vunpack.c.l.b16 %v319
        %v1538 = vunpack.c.h.b16 %v319
        %v1539 = vunpack.c.l.b16 %v320
        %v1540 = vunpack.c.h.b16 %v320
        %v1541 = vunpack.c.l.b16 %v321
        %v1542 = vunpack.c.h.b16 %v321
        %v1543 = vunpack.c.l.b16 %v322
        %v1544 = vunpack.c.h.b16 %v322
        %v1545 = vunpack.c.l.b16 %v323
        %v1546 = vunpack.c.h.b16 %v323
        %v1547 = vunpack.c.l.b16 %v324
        %v1548 = vunpack.c.h.b16 %v324
        %v1549 = vunpack.c.l.b16 %v325
        %v1550 = vunpack.c.h.b16 %v325
        %v1551 = vunpack.c.l.b16 %v326
        %v1552 = vunpack.c.h.b16 %v326
        %v1553 = vunpack.c.l.b16 %v327
        %v1554 = vunpack.c.h.b16 %v327
        %v1555 = vunpack.c.l.b16 %v328
        %v1556 = vunpack.c.h.b16 %v328
        %v1557 = vunpack.c.l.b16 %v329
        %v1558 = vunpack.c.h.b16 %v329
        %v1559 = vunpack.c.l.b16 %v330
        %v1560 = vunpack.c.h.b16 %v330
        %v1561 = vunpack.c.l.b16 %v331
        %v1562 = vunpack.c.h.b16 %v331
        %v1563 = vunpack.c.l.b16 %v332
        %v1564 = vunpack.c.h.b16 %v332
        %v1565 = vunpack.c.l.b16 %v333
        %v1566 = vunpack.c.h.b16 %v333
        %v1567 = vunpack.c.l.b16 %v334
        %v1568 = vunpack.c.h.b16 %v334
        %v1569 = vunpack.c.l.b16 %v335
        %v1570 = vunpack.c.h.b16 %v335
        %v1571 = vunpack.c.l.b16 %v336
        %v1572 = vunpack.c.h.b16 %v336
        %v1573 = vunpack.c.l.b16 %v337
        %v1574 = vunpack.c.h.b16 %v337
        %v1575 = vunpack.c.l.b16 %v338
        %v1576 = vunpack.c.h.b16 %v338
        %v1577 = vunpack.c.l.b16 %v339
        %v1578 = vunpack.c.h.b16 %v339
        %v1579 = vunpack.c.l.b16 %v340
        %v1580 = vunpack.c.h.b16 %v340
        %v1581 = vunpack.c.l.b16 %v341
        %v1582 = vunpack.c.h.b16 %v341
        %v1583 = vunpack.c.l.b16 %v342
        %v1584 = vunpack.c.h.b16 %v342
        %v1585 = vunpack.c.l.b16 %v343
        %v1586 = vunpack.c.h.b16 %v343
        %v1587 = vunpack.c.l.b16 %v344
        %v1588 = vunpack.c.h.b16 %v344
        %v1589 = vunpack.c.l.b16 %v345
        %v1590 = vunpack.c.h.b16 %v345
        %v1591 = vunpack.c.l.b16 %v346
        %v1592 = vunpack.c.h.b16 %v346
        %v1593 = vunpack.c.l.b16 %v347
        %v1594 = vunpack.c.h.b16 %v347
        %v1595 = vunpack.c.l.b16 %v348
        %v1596 = vunpack.c.h.b16 %v348
        %v1597 = vunpack.c.l.b16 %v349
        %v1598 = vunpack.c.h.b16 %v349
        %v1599 = vunpack.c.l.b16 %v350
        %v1600 = vunpack.c.h.b16 %v350
        %v1601 = vunpack.c.l.b16 %v351
        %v1602 = vunpack.c.h.b16 %v351
        %v1603 = vunpack.c.l.b16 %v352
        %v1604 = vunpack.c.h.b16 %v352
        %v1605 = vunpack.c.l.b16 %v353
        %v1606 = vunpack.c.h.b16 %v353
        %v1607 = vunpack.c.l.b16 %v354
        %v1608 = vunpack.c.h.b16 %v354
        %v1609 = vunpack.c.l.b16 %v355
        %v1610 = vunpack.c.h.b16 %v355
        %v1611 = vunpack.c.l.b16 %v356
        %v1612 = vunpack.c.h.b16 %v356
        %v1613 = vunpack.c.l.b16 %v357
        %v1614 = vunpack.c.h.b16 %v357
        %v1615 = vunpack.c.l.b16 %v358
        %v1616 = vunpack.c.h.b16 %v358
        %v1617 = vunpack.c.l.b16 %v359
        %v1618 = vunpack.c.h.b16 %v359
        %v1619 = vunpack.c.l.b16 %v360
        %v1620 = vunpack.c.h.b16 %v360
        %v1621 = vunpack.c.l.b16 %v361
        %v1622 = vunpack.c.h.b16 %v361
        %v1623 = vunpack.c.l.b16 %v362
        %v1624 = vunpack.c.h.b16 %v362
        %v1625 = vunpack.c.l.b16 %v363
        %v1626 = vunpack.c.h.b16 %v363
        %v1627 = vunpack.c.l.b16 %v364
        %v1628 = vunpack.c.h.b16 %v364
        %v1629 = vunpack.c.l.b16 %v365
        %v1630 = vunpack.c.h.b16 %v365
        %v1631 = vunpack.c.l.b16 %v366
        %v1632 = vunpack.c.h.b16 %v366
        %v1633 = vunpack.c.l.b16 %v367
        %v1634 = vunpack.c.h.b16 %v367
        %v1635 = vunpack.c.l.b16 %v368
        %v1636 = vunpack.c.h.b16 %v368
        %v1637 = vunpack.c.l.b16 %v369
        %v1638 = vunpack.c.h.b16 %v369
        %v1639 = vunpack.c.l.b16 %v370
        %v1640 = vunpack.c.h.b16 %v370
        %v1641 = vunpack.c.l.b16 %v371
        %v1642 = vunpack.c.h.b16 %v371
        %v1643 = vunpack.c.l.b16 %v372
        %v1644 = vunpack.c.h.b16 %v372
        %v1645 = vunpack.c.l.b16 %v373
        %v1646 = vunpack.c.h.b16 %v373
        %v1647 = vunpack.c.l.b16 %v374
        %v1648 = vunpack.c.h.b16 %v374
        %v1649 = vunpack.c.l.b16 %v375
        %v1650 = vunpack.c.h.b16 %v375
        %v1651 = vunpack.c.l.b16 %v376
        %v1652 = vunpack.c.h.b16 %v376
        %v1653 = vunpack.c.l.b16 %v377
        %v1654 = vunpack.c.h.b16 %v377
        %v1655 = vunpack.c.l.b16 %v378
        %v1656 = vunpack.c.h.b16 %v378
        %v1657 = vunpack.c.l.b16 %v379
        %v1658 = vunpack.c.h.b16 %v379
        %v1659 = vunpack.c.l.b16 %v380
        %v1660 = vunpack.c.h.b16 %v380
        %v1661 = vunpack.c.l.b16 %v381
        %v1662 = vunpack.c.h.b16 %v381
        %v1663 = vunpack.c.l.b16 %v382
        %v1664 = vunpack.c.h.b16 %v382
        %v1665 = vunpack.c.l.b16 %v383
        %v1666 = vunpack.c.h.b16 %v383
        %v1667 = vunpack.c.l.b16 %v384
        %v1668 = vunpack.c.h.b16 %v384
        %v1669 = vunpack.c.l.b16 %v385
        %v1670 = vunpack.c.h.b16 %v385
        %v1671 = vunpack.c.l.b16 %v386
        %v1672 = vunpack.c.h.b16 %v386
        %v1673 = vunpack.c.l.b16 %v387
        %v1674 = vunpack.c.h.b16 %v387
        %v1675 = vunpack.c.l.b16 %v388
        %v1676 = vunpack.c.h.b16 %v388
        %v1677 = vunpack.c.l.b16 %v389
        %v1678 = vunpack.c.h.b16 %v389
        %v1679 = vunpack.c.l.b16 %v390
        %v1680 = vunpack.c.h.b16 %v390
        %v1681 = vunpack.c.l.b16 %v391
        %v1682 = vunpack.c.h.b16 %v391
        %v1683 = vunpack.c.l.b16 %v392
        %v1684 = vunpack.c.h.b16 %v392
        %v1685 = vunpack.c.l.b16 %v393
        %v1686 = vunpack.c.h.b16 %v393
        %v1687 = vunpack.c.l.b16 %v394
        %v1688 = vunpack.c.h.b16 %v394
        %v1689 = vunpack.c.l.b16 %v395
        %v1690 = vunpack.c.h.b16 %v395
        %v1691 = vunpack.c.l.b16 %v396
        %v1692 = vunpack.c.h.b16 %v396
        %v1693 = vunpack.c.l.b16 %v397
        %v1694 = vunpack.c.h.b16 %v397
        %v1695 = vunpack.c.l.b16 %v398
        %v1696 = vunpack.c.h.b16 %v398
        %v1697 = vunpack.c.l.b16 %v399
        %v1698 = vunpack.c.h.b16 %v399
        %v1699 = vunpack.c.l.b16 %v400
        %v1700 = vunpack.c.h.b16 %v400
        %v1701 = vunpack.c.l.b16 %v401
        %v1702 = vunpack.c.h.b16 %v401
        %v1703 = vunpack.c.l.b16 %v402
        %v1704 = vunpack.c.h.b16 %v402
        %v1705 = vunpack.c.l.b16 %v403
        %v1706 = vunpack.c.h.b16 %v403
        %v1707 = vunpack.c.l.b16 %v404
        %v1708 = vunpack.c.h.b16 %v404
        %v1709 = vunpack.c.l.b16 %v405
        %v1710 = vunpack.c.h.b16 %v405
        %v1711 = vunpack.c.l.b16 %v406
        %v1712 = vunpack.c.h.b16 %v406
        %v1713 = vunpack.c.l.b16 %v407
        %v1714 = vunpack.c.h.b16 %v407
        %v1715 = vunpack.c.l.b16 %v408
        %v1716 = vunpack.c.h.b16 %v408
        %v1717 = vunpack.c.l.b16 %v409
        %v1718 = vunpack.c.h.b16 %v409
        %v1719 = vunpack.c.l.b16 %v410
        %v1720 = vunpack.c.h.b16 %v410
        %v1721 = vunpack.c.l.b16 %v411
        %v1722 = vunpack.c.h.b16 %v411
        %v1723 = vunpack.c.l.b16 %v412
        %v1724 = vunpack.c.h.b16 %v412
        %v1725 = vunpack.c.l.b16 %v413
        %v1726 = vunpack.c.h.b16 %v413
        %v1727 = vunpack.c.l.b16 %v414
        %v1728 = vunpack.c.h.b16 %v414
        %v1729 = vunpack.c.l.b16 %v415
        %v1730 = vunpack.c.h.b16 %v415
        %v1731 = vunpack.c.l.b16 %v416
        %v1732 = vunpack.c.h.b16 %v416
        %v1733 = vunpack.c.l.b16 %v417
        %v1734 = vunpack.c.h.b16 %v417
        %v1735 = vunpack.c.l.b16 %v418
        %v1736 = vunpack.c.h.b16 %v418
        %v1737 = vunpack.c.l.b16 %v419
        %v1738 = vunpack.c.h.b16 %v419
        %v1739 = vunpack.c.l.b16 %v420
        %v1740 = vunpack.c.h.b16 %v420
        %v1741 = vunpack.c.l.b16 %v421
        %v1742 = vunpack.c.h.b16 %v421
        %v1743 = vunpack.c.l.b16 %v422
        %v1744 = vunpack.c.h.b16 %v422
        %v1745 = vunpack.c.l.b16 %v423
        %v1746 = vunpack.c.h.b16 %v423
        %v1747 = vunpack.c.l.b16 %v424
        %v1748 = vunpack.c.h.b16 %v424
        %v1749 = vunpack.c.l.b16 %v425
        %v1750 = vunpack.c.h.b16 %v425
        %v1751 = vunpack.c.l.b16 %v426
        %v1752 = vunpack.c.h.b16 %v426
        %v1753 = vunpack.c.l.b16 %v427
        %v1754 = vunpack.c.h.b16 %v427
        %v1755 = vunpack.c.l.b16 %v428
        %v1756 = vunpack.c.h.b16 %v428
        %v1757 = vunpack.c.l.b16 %v429
        %v1758 = vunpack.c.h.b16 %v429
        %v1759 = vunpack.c.l.b16 %v430
        %v1760 = vunpack.c.h.b16 %v430
        %v1761 = vunpack.c.l.b16 %v431
        %v1762 = vunpack.c.h.b16 %v431
        %v1763 = vunpack.c.l.b16 %v432
        %v1764 = vunpack.c.h.b16 %v432
        %v1765 = vunpack.c.l.b16 %v433
        %v1766 = vunpack.c.h.b16 %v433
        %v1767 = vunpack.c.l.b16 %v434
        %v1768 = vunpack.c.h.b16 %v434
        %v1769 = vunpack.c.l.b16 %v435
        %v1770 = vunpack.c.h.b16 %v435
        %v1771 = vunpack.c.l.b16 %v436
        %v1772 = vunpack.c.h.b16 %v436
        %v1773 = vunpack.c.l.b16 %v437
        %v1774 = vunpack.c.h.b16 %v437
        %v1775 = vunpack.c.l.b16 %v438
        %v1776 = vunpack.c.h.b16 %v438
        %v1777 = vunpack.c.l.b16 %v439
        %v1778 = vunpack.c.h.b16 %v439
        %v1779 = vunpack.c.l.b16 %v440
        %v1780 = vunpack.c.h.b16 %v440
        %v1781 = vunpack.c.l.b16 %v441
        %v1782 = vunpack.c.h.b16 %v441
        %v1783 = vunpack.c.l.b16 %v442
        %v1784 = vunpack.c.h.b16 %v442
        %v1785 = vunpack.c.l.b16 %v443
        %v1786 = vunpack.c.h.b16 %v443
        %v1787 = vunpack.c.l.b16 %v444
        %v1788 = vunpack.c.h.b16 %v444
        %v1789 = vunpack.c.l.b16 %v445
        %v1790 = vunpack.c.h.b16 %v445
        %v1791 = vunpack.c.l.b16 %v446
        %v1792 = vunpack.c.h.b16 %v446
        %v1793 = vunpack.c.l.b16 %v447
        %v1794 = vunpack.c.h.b16 %v447
        %v1795 = vunpack.c.l.b16 %v448
        %v1796 = vunpack.c.h.b16 %v448
        %v1797 = vunpack.c.l.b16 %v449
        %v1798 = vunpack.c.h.b16 %v449
        %v1799 = vunpack.c.l.b16 %v450
        %v1800 = vunpack.c.h.b16 %v450
        %v1801 = vunpack.c.l.b16 %v451
        %v1802 = vunpack.c.h.b16 %v451
        %v1803 = vunpack.c.l.b16 %v452
        %v1804 = vunpack.c.h.b16 %v452
        %v1805 = vunpack.c.l.b16 %v453
        %v1806 = vunpack.c.h.b16 %v453
        %v1807 = vunpack.c.l.b16 %v454
        %v1808 = vunpack.c.h.b16 %v454
        %v1809 = vunpack.c.l.b16 %v455
        %v1810 = vunpack.c.h.b16 %v455
        %v1811 = vunpack.c.l.b16 %v456
        %v1812 = vunpack.c.h.b16 %v456
        %v1813 = vunpack.c.l.b16 %v457
        %v1814 = vunpack.c.h.b16 %v457
        %v1815 = vunpack.c.l.b16 %v458
        %v1816 = vunpack.c.h.b16 %v458
        %v1817 = vunpack.c.l.b16 %v459
        %v1818 = vunpack.c.h.b16 %v459
        %v1819 = vunpack.c.l.b16 %v460
        %v1820 = vunpack.c.h.b16 %v460
        %v1821 = vunpack.c.l.b16 %v461
        %v1822 = vunpack.c.h.b16 %v461
        %v1823 = vunpack.c.l.b16 %v462
        %v1824 = vunpack.c.h.b16 %v462
        %v1825 = vunpack.c.l.b16 %v463
        %v1826 = vunpack.c.h.b16 %v463
        %v1827 = vunpack.c.l.b16 %v464
        %v1828 = vunpack.c.h.b16 %v464
        %v1829 = vunpack.c.l.b16 %v465
        %v1830 = vunpack.c.h.b16 %v465
        %v1831 = vunpack.c.l.b16 %v466
        %v1832 = vunpack.c.h.b16 %v466
        %v1833 = vunpack.c.l.b16 %v467
        %v1834 = vunpack.c.h.b16 %v467
        %v1835 = vunpack.c.l.b16 %v468
        %v1836 = vunpack.c.h.b16 %v468
        %v1837 = vunpack.c.l.b16 %v469
        %v1838 = vunpack.c.h.b16 %v469
        %v1839 = vunpack.c.l.b16 %v470
        %v1840 = vunpack.c.h.b16 %v470
        %v1841 = vunpack.c.l.b16 %v471
        %v1842 = vunpack.c.h.b16 %v471
        %v1843 = vunpack.c.l.b16 %v472
        %v1844 = vunpack.c.h.b16 %v472
        %v1845 = vunpack.c.l.b16 %v473
        %v1846 = vunpack.c.h.b16 %v473
        %v1847 = vunpack.c.l.b16 %v474
        %v1848 = vunpack.c.h.b16 %v474
        %v1849 = vunpack.c.l.b16 %v475
        %v1850 = vunpack.c.h.b16 %v475
        %v1851 = vunpack.c.l.b16 %v476
        %v1852 = vunpack.c.h.b16 %v476
        %v1853 = vunpack.c.l.b16 %v477
        %v1854 = vunpack.c.h.b16 %v477
        %v1855 = vunpack.c.l.b16 %v478
        %v1856 = vunpack.c.h.b16 %v478
        %v1857 = vunpack.c.l.b16 %v479
        %v1858 = vunpack.c.h.b16 %v479
        %v1859 = vunpack.c.l.b16 %v480
        %v1860 = vunpack.c.h.b16 %v480
        %v1861 = vunpack.c.l.b16 %v481
        %v1862 = vunpack.c.h.b16 %v481
        %v1863 = vunpack.c.l.b16 %v482
        %v1864 = vunpack.c.h.b16 %v482
        %v1865 = vunpack.c.l.b16 %v483
        %v1866 = vunpack.c.h.b16 %v483
        %v1867 = vunpack.c.l.b16 %v484
        %v1868 = vunpack.c.h.b16 %v484
        %v1869 = vunpack.c.l.b16 %v485
        %v1870 = vunpack.c.h.b16 %v485
        %v1871 = vunpack.c.l.b16 %v486
        %v1872 = vunpack.c.h.b16 %v486
        %v1873 = vunpack.c.l.b16 %v487
        %v1874 = vunpack.c.h.b16 %v487
        %v1875 = vunpack.c.l.b16 %v488
        %v1876 = vunpack.c.h.b16 %v488
        %v1877 = vunpack.c.l.b16 %v489
        %v1878 = vunpack.c.h.b16 %v489
        %v1879 = vunpack.c.l.b16 %v490
        %v1880 = vunpack.c.h.b16 %v490
        %v1881 = vunpack.c.l.b16 %v491
        %v1882 = vunpack.c.h.b16 %v491
        %v1883 = vunpack.c.l.b16 %v492
        %v1884 = vunpack.c.h.b16 %v492
        %v1885 = vunpack.c.l.b16 %v493
        %v1886 = vunpack.c.h.b16 %v493
        %v1887 = vunpack.c.l.b16 %v494
        %v1888 = vunpack.c.h.b16 %v494
        %v1889 = vunpack.c.l.b16 %v495
        %v1890 = vunpack.c.h.b16 %v495
        %v1891 = vunpack.c.l.b16 %v496
        %v1892 = vunpack.c.h.b16 %v496
        %v1893 = vunpack.c.l.b16 %v497
        %v1894 = vunpack.c.h.b16 %v497
        %v1895 = vunpack.c.l.b16 %v498
        %v1896 = vunpack.c.h.b16 %v498
        %v1897 = vunpack.c.l.b16 %v499
        %v1898 = vunpack.c.h.b16 %v499
        %v1899 = vunpack.c.l.b16 %v500
        %v1900 = vunpack.c.h.b16 %v500
        %v1901 = vunpack.c.l.b16 %v501
        %v1902 = vunpack.c.h.b16 %v501
        %v1903 = vunpack.c.l.b16 %v502
        %v1904 = vunpack.c.h.b16 %v502
        %v1905 = vunpack.c.l.b16 %v503
        %v1906 = vunpack.c.h.b16 %v503
        %v1907 = vunpack.c.l.b16 %v504
        %v1908 = vunpack.c.h.b16 %v504
        %v1909 = vunpack.c.l.b16 %v505
        %v1910 = vunpack.c.h.b16 %v505
        %v1911 = vunpack.c.l.b16 %v506
        %v1912 = vunpack.c.h.b16 %v506
        %v1913 = vunpack.c.l.b16 %v507
        %v1914 = vunpack.c.h.b16 %v507
        %v1915 = vunpack.c.l.b16 %v508
        %v1916 = vunpack.c.h.b16 %v508
        %v1917 = vunpack.c.l.b16 %v509
        %v1918 = vunpack.c.h.b16 %v509
        %v1919 = vunpack.c.l.b16 %v510
        %v1920 = vunpack.c.h.b16 %v510
        %v1921 = vunpack.c.l.b16 %v511
        %v1922 = vunpack.c.h.b16 %v511
        %v1923 = vunpack.c.l.b16 %v512
        %v1924 = vunpack.c.h.b16 %v512
        %v1925 = vunpack.c.l.b16 %v513
        %v1926 = vunpack.c.h.b16 %v513
        %v1927 = vunpack.c.l.b16 %v514
        %v1928 = vunpack.c.h.b16 %v514
        %v1929 = vunpack.c.l.b16 %v515
        %v1930 = vunpack.c.h.b16 %v515
        %v1931 = vunpack.c.l.b16 %v516
        %v1932 = vunpack.c.h.b16 %v516
        %v1933 = vunpack.c.l.b16 %v517
        %v1934 = vunpack.c.h.b16 %v517
        %v1935 = vunpack.c.l.b16 %v518
        %v1936 = vunpack.c.h.b16 %v518
        %v1937 = vunpack.c.l.b16 %v519
        %v1938 = vunpack.c.h.b16 %v519
        %v1939 = vunpack.c.l.b16 %v520
        %v1940 = vunpack.c.h.b16 %v520
        %v1941 = vunpack.c.l.b16 %v521
        %v1942 = vunpack.c.h.b16 %v521
        %v1943 = vunpack.c.l.b16 %v522
        %v1944 = vunpack.c.h.b16 %v522
        %v1945 = vunpack.c.l.b16 %v523
        %v1946 = vunpack.c.h.b16 %v523
        %v1947 = vunpack.c.l.b16 %v524
        %v1948 = vunpack.c.h.b16 %v524
        %v1949 = vunpack.c.l.b16 %v525
        %v1950 = vunpack.c.h.b16 %v525
        %v1951 = vunpack.c.l.b16 %v526
        %v1952 = vunpack.c.h.b16 %v526
        %v1953 = vunpack.c.l.b16 %v527
        %v1954 = vunpack.c.h.b16 %v527
        %v1955 = vunpack.c.l.b16 %v528
        %v1956 = vunpack.c.h.b16 %v528
        %v1957 = vunpack.c.l.b16 %v529
        %v1958 = vunpack.c.h.b16 %v529
        %v1959 = vunpack.c.l.b16 %v530
        %v1960 = vunpack.c.h.b16 %v530
        %v1961 = vunpack.c.l.b16 %v531
        %v1962 = vunpack.c.h.b16 %v531
        %v1963 = vunpack.c.l.b16 %v532
        %v1964 = vunpack.c.h.b16 %v532
        %v1965 = vunpack.c.l.b16 %v533
        %v1966 = vunpack.c.h.b16 %v533
        %v1967 = vunpack.c.l.b16 %v534
        %v1968 = vunpack.c.h.b16 %v534
        %v1969 = vunpack.c.l.b16 %v535
        %v1970 = vunpack.c.h.b16 %v535
        %v1971 = vunpack.c.l.b16 %v536
        %v1972 = vunpack.c.h.b16 %v536
        %v1973 = vunpack.c.l.b16 %v537
        %v1974 = vunpack.c.h.b16 %v537
        %v1975 = vunpack.c.l.b16 %v538
        %v1976 = vunpack.c.h.b16 %v538
        %v1977 = vunpack.c.l.b16 %v539
        %v1978 = vunpack.c.h.b16 %v539
        %v1979 = vunpack.c.l.b16 %v540
        %v1980 = vunpack.c.h.b16 %v540
        %v1981 = vunpack.c.l.b16 %v541
        %v1982 = vunpack.c.h.b16 %v541
        %v1983 = vunpack.c.l.b16 %v542
        %v1984 = vunpack.c.h.b16 %v542
        %v1985 = vunpack.c.l.b16 %v543
        %v1986 = vunpack.c.h.b16 %v543
        %v1987 = vunpack.c.l.b16 %v544
        %v1988 = vunpack.c.h.b16 %v544
        %v1989 = vunpack.c.l.b16 %v545
        %v1990 = vunpack.c.h.b16 %v545
        %v1991 = vunpack.c.l.b16 %v546
        %v1992 = vunpack.c.h.b16 %v546
        %v1993 = vunpack.c.l.b16 %v547
        %v1994 = vunpack.c.h.b16 %v547
        %v1995 = vunpack.c.l.b16 %v548
        %v1996 = vunpack.c.h.b16 %v548
        %v1997 = vunpack.c.l.b16 %v549
        %v1998 = vunpack.c.h.b16 %v549
        %v1999 = vunpack.c.l.b16 %v550
        %v2000 = vunpack.c.h.b16 %v550
        %v2001 = vunpack.c.l.b16 %v551
        %v2002 = vunpack.c.h.b16 %v551
        %v2003 = vunpack.c.l.b16 %v552
        %v2004 = vunpack.c.h.b16 %v552
        %v2005 = vunpack.c.l.b16 %v553
        %v2006 = vunpack.c.h.b16 %v553
        %v2007 = vunpack.c.l.b16 %v554
        %v2008 = vunpack.c.h.b16 %v554
        %v2009 = vunpack.c.l.b16 %v555
        %v2010 = vunpack.c.h.b16 %v555
        %v2011 = vunpack.c.l.b16 %v556
        %v2012 = vunpack.c.h.b16 %v556
        %v2013 = vunpack.c.l.b16 %v557
        %v2014 = vunpack.c.h.b16 %v557
        %v2015 = vunpack.c.l.b16 %v558
        %v2016 = vunpack.c.h.b16 %v558
        %v2017 = vunpack.c.l.b16 %v559
        %v2018 = vunpack.c.h.b16 %v559
        %v2019 = vunpack.c.l.b16 %v560
        %v2020 = vunpack.c.h.b16 %v560
        %v2021 = vunpack.c.l.b16 %v561
        %v2022 = vunpack.c.h.b16 %v561
        %v2023 = vunpack.c.l.b16 %v562
        %v2024 = vunpack.c.h.b16 %v562
        %v2025 = vunpack.c.l.b16 %v563
        %v2026 = vunpack.c.h.b16 %v563
        %v2027 = vunpack.c.l.b16 %v564
        %v2028 = vunpack.c.h.b16 %v564
        %v2029 = vunpack.c.l.b16 %v565
        %v2030 = vunpack.c.h.b16 %v565
        %v2031 = vunpack.c.l.b16 %v566
        %v2032 = vunpack.c.h.b16 %v566
        %v2033 = vunpack.c.l.b16 %v567
        %v2034 = vunpack.c.h.b16 %v567
        %v2035 = vunpack.c.l.b16 %v568
        %v2036 = vunpack.c.h.b16 %v568
        %v2037 = vunpack.c.l.b16 %v569
        %v2038 = vunpack.c.h.b16 %v569
        %v2039 = vunpack.c.l.b16 %v570
        %v2040 = vunpack.c.h.b16 %v570
        %v2041 = vunpack.c.l.b16 %v571
        %v2042 = vunpack.c.h.b16 %v571
        %v2043 = vunpack.c.l.b16 %v572
        %v2044 = vunpack.c.h.b16 %v572
        %v2045 = vunpack.c.l.b16 %v573
        %v2046 = vunpack.c.h.b16 %v573
        %v2047 = vunpack.c.l.b16 %v574
        %v2048 = vunpack.c.h.b16 %v574
        %v2049 = vunpack.c.l.b16 %v575
        %v2050 = vunpack.c.h.b16 %v575
        %v2051 = vunpack.c.l.b16 %v576
        %v2052 = vunpack.c.h.b16 %v576
        %v2053 = vunpack.c.l.b16 %v577
        %v2054 = vunpack.c.h.b16 %v577
        %v2055 = vunpack.c.l.b16 %v578
        %v2056 = vunpack.c.h.b16 %v578
        %v2057 = vunpack.c.l.b16 %v579
        %v2058 = vunpack.c.h.b16 %v579
        %v2059 = vunpack.c.l.b16 %v580
        %v2060 = vunpack.c.h.b16 %v580
        %v2061 = vunpack.c.l.b16 %v581
        %v2062 = vunpack.c.h.b16 %v581
        %v2063 = vunpack.c.l.b16 %v582
        %v2064 = vunpack.c.h.b16 %v582
        %v2065 = vunpack.c.l.b16 %v583
        %v2066 = vunpack.c.h.b16 %v583
        %v2067 = vunpack.c.l.b16 %v584
        %v2068 = vunpack.c.h.b16 %v584
        %v2069 = vunpack.c.l.b16 %v585
        %v2070 = vunpack.c.h.b16 %v585
        %v2071 = vunpack.c.l.b16 %v586
        %v2072 = vunpack.c.h.b16 %v586
        %v2073 = vunpack.c.l.b16 %v587
        %v2074 = vunpack.c.h.b16 %v587
        %v2075 = vunpack.c.l.b16 %v588
        %v2076 = vunpack.c.h.b16 %v588
        %v2077 = vunpack.c.l.b16 %v589
        %v2078 = vunpack.c.h.b16 %v589
        %v2079 = vunpack.c.l.b16 %v590
        %v2080 = vunpack.c.h.b16 %v590
        %v2081 = vunpack.c.l.b16 %v591
        %v2082 = vunpack.c.h.b16 %v591
        %v2083 = vunpack.c.l.b16 %v592
        %v2084 = vunpack.c.h.b16 %v592
        %v2085 = vunpack.c.l.b16 %v593
        %v2086 = vunpack.c.h.b16 %v593
        %v2087 = vunpack.c.l.b16 %v594
        %v2088 = vunpack.c.h.b16 %v594
        %v2089 = vunpack.c.l.b16 %v595
        %v2090 = vunpack.c.h.b16 %v595
        %v2091 = vunpack.c.l.b16 %v596
        %v2092 = vunpack.c.h.b16 %v596
        %v2093 = vunpack.c.l.b16 %v597
        %v2094 = vunpack.c.h.b16 %v597
        %v2095 = vunpack.c.l.b16 %v598
        %v2096 = vunpack.c.h.b16 %v598
        %v2097 = vunpack.c.l.b16 %v599
        %v2098 = vunpack.c.h.b16 %v599
        %v2099 = vunpack.c.l.b16 %v600
        %v2100 = vunpack.c.h.b16 %v600
        %v2101 = vunpack.c.l.b16 %v601
        %v2102 = vunpack.c.h.b16 %v601
        %v2103 = vunpack.c.l.b16 %v602
        %v2104 = vunpack.c.h.b16 %v602
        %v2105 = vunpack.c.l.b16 %v603
        %v2106 = vunpack.c.h.b16 %v603
        %v2107 = vunpack.c.l.b16 %v604
        %v2108 = vunpack.c.h.b16 %v604
        %v2109 = vunpack.c.l.b16 %v605
        %v2110 = vunpack.c.h.b16 %v605
        %v2111 = vunpack.c.l.b16 %v606
        %v2112 = vunpack.c.h.b16 %v606
        %v2113 = vunpack.c.l.b16 %v607
        %v2114 = vunpack.c.h.b16 %v607
        %v2115 = vunpack.c.l.b16 %v608
        %v2116 = vunpack.c.h.b16 %v608
        %v2117 = vunpack.c.l.b16 %v609
        %v2118 = vunpack.c.h.b16 %v609
        %v2119 = vunpack.c.l.b16 %v610
        %v2120 = vunpack.c.h.b16 %v610
        %v2121 = vunpack.c.l.b16 %v611
        %v2122 = vunpack.c.h.b16 %v611
        %v2123 = vunpack.c.l.b16 %v612
        %v2124 = vunpack.c.h.b16 %v612
        %v2125 = vunpack.c.l.b16 %v613
        %v2126 = vunpack.c.h.b16 %v613
        %v2127 = vunpack.c.l.b16 %v614
        %v2128 = vunpack.c.h.b16 %v614
        %v2129 = vunpack.c.l.b16 %v615
        %v2130 = vunpack.c.h.b16 %v615
        %v2131 = vunpack.c.l.b16 %v616
        %v2132 = vunpack.c.h.b16 %v616
        %v2133 = vunpack.c.l.b16 %v617
        %v2134 = vunpack.c.h.b16 %v617
        %v2135 = vunpack.c.l.b16 %v618
        %v2136 = vunpack.c.h.b16 %v618
        %v2137 = vunpack.c.l.b16 %v619
        %v2138 = vunpack.c.h.b16 %v619
        %v2139 = vunpack.c.l.b16 %v620
        %v2140 = vunpack.c.h.b16 %v620
        %v2141 = vunpack.c.l.b16 %v621
        %v2142 = vunpack.c.h.b16 %v621
        %v2143 = vunpack.c.l.b16 %v622
        %v2144 = vunpack.c.h.b16 %v622
        %v2145 = vunpack.c.l.b16 %v623
        %v2146 = vunpack.c.h.b16 %v623
        %v2147 = vunpack.c.l.b16 %v624
        %v2148 = vunpack.c.h.b16 %v624
        %v2149 = vunpack.c.l.b16 %v625
        %v2150 = vunpack.c.h.b16 %v625
        %v2151 = vunpack.c.l.b16 %v626
        %v2152 = vunpack.c.h.b16 %v626
        %v2153 = vunpack.c.l.b16 %v627
        %v2154 = vunpack.c.h.b16 %v627
        %v2155 = vunpack.c.l.b16 %v628
        %v2156 = vunpack.c.h.b16 %v628
        %v2157 = vunpack.c.l.b16 %v629
        %v2158 = vunpack.c.h.b16 %v629
        %v2159 = vunpack.c.l.b16 %v630
        %v2160 = vunpack.c.h.b16 %v630
        %v2161 = vunpack.c.l.b16 %v631
        %v2162 = vunpack.c.h.b16 %v631
        %v2163 = vunpack.c.l.b16 %v632
        %v2164 = vunpack.c.h.b16 %v632
        %v2165 = vunpack.c.l.b16 %v633
        %v2166 = vunpack.c.h.b16 %v633
        %v2167 = vunpack.c.l.b16 %v634
        %v2168 = vunpack.c.h.b16 %v634
        %v2169 = vunpack.c.l.b16 %v635
        %v2170 = vunpack.c.h.b16 %v635
        %v2171 = vunpack.c.l.b16 %v636
        %v2172 = vunpack.c.h.b16 %v636
        %v2173 = vunpack.c.l.b16 %v637
        %v2174 = vunpack.c.h.b16 %v637
        %v2175 = vunpack.c.l.b16 %v638
        %v2176 = vunpack.c.h.b16 %v638
        %v2177 = vunpack.c.l.b16 %v639
        %v2178 = vunpack.c.h.b16 %v639
        %v2179 = vunpack.c.l.b16 %v640
        %v2180 = vunpack.c.h.b16 %v640
        %v2181 = vunpack.c.l.b16 %v641
        %v2182 = vunpack.c.h.b16 %v641
        %v2183 = vunpack.c.l.b16 %v642
        %v2184 = vunpack.c.h.b16 %v642
        %v2185 = vunpack.c.l.b16 %v643
        %v2186 = vunpack.c.h.b16 %v643
        %v2187 = vunpack.c.l.b16 %v644
        %v2188 = vunpack.c.h.b16 %v644
        %v2189 = vunpack.c.l.b16 %v645
        %v2190 = vunpack.c.h.b16 %v645
        %v2191 = vunpack.c.l.b16 %v646
        %v2192 = vunpack.c.h.b16 %v646
        %v2193 = vunpack.c.l.b16 %v647
        %v2194 = vunpack.c.h.b16 %v647
        %v2195 = vunpack.c.l.b16 %v648
        %v2196 = vunpack.c.h.b16 %v648
        %v2197 = vunpack.c.l.b16 %v649
        %v2198 = vunpack.c.h.b16 %v649
        %v2199 = vunpack.c.l.b16 %v650
        %v2200 = vunpack.c.h.b16 %v650
        %v2201 = vunpack.c.l.b16 %v651
        %v2202 = vunpack.c.h.b16 %v651
        %v2203 = vunpack.c.l.b16 %v652
        %v2204 = vunpack.c.h.b16 %v652
        %v2205 = vunpack.c.l.b16 %v653
        %v2206 = vunpack.c.h.b16 %v653
        %v2207 = vunpack.c.l.b16 %v654
        %v2208 = vunpack.c.h.b16 %v654
        %v2209 = vunpack.c.l.b16 %v655
        %v2210 = vunpack.c.h.b16 %v655
        %v2211 = vunpack.c.l.b16 %v656
        %v2212 = vunpack.c.h.b16 %v656
        %v2213 = vunpack.c.l.b16 %v657
        %v2214 = vunpack.c.h.b16 %v657
        %v2215 = vunpack.c.l.b16 %v658
        %v2216 = vunpack.c.h.b16 %v658
        %v2217 = vunpack.c.l.b16 %v659
        %v2218 = vunpack.c.h.b16 %v659
        %v2219 = vunpack.c.l.b16 %v660
        %v2220 = vunpack.c.h.b16 %v660
        %v2221 = vunpack.c.l.b16 %v661
        %v2222 = vunpack.c.h.b16 %v661
        %v2223 = vunpack.c.l.b16 %v662
        %v2224 = vunpack.c.h.b16 %v662
        %v2225 = vunpack.c.l.b16 %v663
        %v2226 = vunpack.c.h.b16 %v663
        %v2227 = vunpack.c.l.b16 %v664
        %v2228 = vunpack.c.h.b16 %v664
        %v2229 = vunpack.c.l.b16 %v665
        %v2230 = vunpack.c.h.b16 %v665
        %v2231 = vunpack.c.l.b16 %v666
        %v2232 = vunpack.c.h.b16 %v666
        %v2233 = vunpack.c.l.b16 %v667
        %v2234 = vunpack.c.h.b16 %v667
        %v2235 = vunpack.c.l.b16 %v668
        %v2236 = vunpack.c.h.b16 %v668
        %v2237 = vunpack.c.l.b16 %v669
        %v2238 = vunpack.c.h.b16 %v669
        %v2239 = vunpack.c.l.b16 %v670
        %v2240 = vunpack.c.h.b16 %v670
        %v2241 = vunpack.c.l.b16 %v671
        %v2242 = vunpack.c.h.b16 %v671
        %v2243 = vunpack.c.l.b16 %v672
        %v2244 = vunpack.c.h.b16 %v672
        %v2245 = vunpack.c.l.b16 %v673
        %v2246 = vunpack.c.h.b16 %v673
        %v2247 = vunpack.c.l.b16 %v674
        %v2248 = vunpack.c.h.b16 %v674
        %v2249 = vunpack.c.l.b16 %v675
        %v2250 = vunpack.c.h.b16 %v675
        %v2251 = vunpack.c.l.b16 %v676
        %v2252 = vunpack.c.h.b16 %v676
        %v2253 = vunpack.c.l.b16 %v677
        %v2254 = vunpack.c.h.b16 %v677
        %v2255 = vunpack.c.l.b16 %v678
        %v2256 = vunpack.c.h.b16 %v678
        %v2257 = vunpack.c.l.b16 %v679
        %v2258 = vunpack.c.h.b16 %v679
        %v2259 = vunpack.c.l.b16 %v680
        %v2260 = vunpack.c.h.b16 %v680
        %v2261 = vunpack.c.l.b16 %v681
        %v2262 = vunpack.c.h.b16 %v681
        %v2263 = vunpack.c.l.b16 %v682
        %v2264 = vunpack.c.h.b16 %v682
        %v2265 = vunpack.c.l.b16 %v683
        %v2266 = vunpack.c.h.b16 %v683
        %v2267 = vunpack.c.l.b16 %v684
        %v2268 = vunpack.c.h.b16 %v684
        %v2269 = vunpack.c.l.b16 %v685
        %v2270 = vunpack.c.h.b16 %v685
        %v2271 = vunpack.c.l.b16 %v686
        %v2272 = vunpack.c.h.b16 %v686
        %v2273 = vunpack.c.l.b16 %v687
        %v2274 = vunpack.c.h.b16 %v687
        %v2275 = vunpack.c.l.b16 %v688
        %v2276 = vunpack.c.h.b16 %v688
        %v2277 = vunpack.c.l.b16 %v689
        %v2278 = vunpack.c.h.b16 %v689
        %v2279 = vunpack.c.l.b16 %v690
        %v2280 = vunpack.c.h.b16 %v690
        %v2281 = vunpack.c.l.b16 %v691
        %v2282 = vunpack.c.h.b16 %v691
        %v2283 = vunpack.c.l.b16 %v692
        %v2284 = vunpack.c.h.b16 %v692
        %v2285 = vunpack.c.l.b16 %v693
        %v2286 = vunpack.c.h.b16 %v693
        %v2287 = vunpack.c.l.b16 %v694
        %v2288 = vunpack.c.h.b16 %v694
        %v2289 = vunpack.c.l.b16 %v695
        %v2290 = vunpack.c.h.b16 %v695
        %v2291 = vunpack.c.l.b16 %v696
        %v2292 = vunpack.c.h.b16 %v696
        %v2293 = vunpack.c.l.b16 %v697
        %v2294 = vunpack.c.h.b16 %v697
        %v2295 = vunpack.c.l.b16 %v698
        %v2296 = vunpack.c.h.b16 %v698
        %v2297 = vunpack.c.l.b16 %v699
        %v2298 = vunpack.c.h.b16 %v699
        %v2299 = vunpack.c.l.b16 %v700
        %v2300 = vunpack.c.h.b16 %v700
        %v2301 = vunpack.c.l.b16 %v701
        %v2302 = vunpack.c.h.b16 %v701
        %v2303 = vunpack.c.l.b16 %v702
        %v2304 = vunpack.c.h.b16 %v702
        %v2305 = vunpack.c.l.b16 %v703
        %v2306 = vunpack.c.h.b16 %v703
        %v2307 = vunpack.c.l.b16 %v704
        %v2308 = vunpack.c.h.b16 %v704
        %v2309 = vunpack.c.l.b16 %v705
        %v2310 = vunpack.c.h.b16 %v705
        %v2311 = vunpack.c.l.b16 %v706
        %v2312 = vunpack.c.h.b16 %v706
        %v2313 = vunpack.c.l.b16 %v707
        %v2314 = vunpack.c.h.b16 %v707
        %v2315 = vunpack.c.l.b16 %v708
        %v2316 = vunpack.c.h.b16 %v708
        %v2317 = vunpack.c.l.b16 %v709
        %v2318 = vunpack.c.h.b16 %v709
        %v2319 = vunpack.c.l.b16 %v710
        %v2320 = vunpack.c.h.b16 %v710
        %v2321 = vunpack.c.l.b16 %v711
        %v2322 = vunpack.c.h.b16 %v711
        %v2323 = vunpack.c.l.b16 %v712
        %v2324 = vunpack.c.h.b16 %v712
        %v2325 = vunpack.c.l.b16 %v713
        %v2326 = vunpack.c.h.b16 %v713
        %v2327 = vunpack.c.l.b16 %v714
        %v2328 = vunpack.c.h.b16 %v714
        %v2329 = vunpack.c.l.b16 %v715
        %v2330 = vunpack.c.h.b16 %v715
        %v2331 = vunpack.c.l.b16 %v716
        %v2332 = vunpack.c.h.b16 %v716
        %v2333 = vunpack.c.l.b16 %v717
        %v2334 = vunpack.c.h.b16 %v717
        %v2335 = vunpack.c.l.b16 %v718
        %v2336 = vunpack.c.h.b16 %v718
        %v2337 = vunpack.c.l.b16 %v719
        %v2338 = vunpack.c.h.b16 %v719
        %v2339 = vunpack.c.l.b16 %v720
        %v2340 = vunpack.c.h.b16 %v720
        %v2341 = vunpack.c.l.b16 %v721
        %v2342 = vunpack.c.h.b16 %v721
        %v2343 = vunpack.c.l.b16 %v722
        %v2344 = vunpack.c.h.b16 %v722
        %v2345 = vunpack.c.l.b16 %v723
        %v2346 = vunpack.c.h.b16 %v723
        %v2347 = vunpack.c.l.b16 %v724
        %v2348 = vunpack.c.h.b16 %v724
        %v2349 = vunpack.c.l.b16 %v725
        %v2350 = vunpack.c.h.b16 %v725
        %v2351 = vunpack.c.l.b16 %v726
        %v2352 = vunpack.c.h.b16 %v726
        %v2353 = vunpack.c.l.b16 %v727
        %v2354 = vunpack.c.h.b16 %v727
        %v2355 = vunpack.c.l.b16 %v728
        %v2356 = vunpack.c.h.b16 %v728
        %v2357 = vunpack.c.l.b16 %v729
        %v2358 = vunpack.c.h.b16 %v729
        %v2359 = vunpack.c.l.b16 %v730
        %v2360 = vunpack.c.h.b16 %v730
        %v2361 = vunpack.c.l.b16 %v731
        %v2362 = vunpack.c.h.b16 %v731
        %v2363 = vunpack.c.l.b16 %v732
        %v2364 = vunpack.c.h.b16 %v732
        %v2365 = vunpack.c.l.b16 %v733
        %v2366 = vunpack.c.h.b16 %v733
        %v2367 = vunpack.c.l.b16 %v734
        %v2368 = vunpack.c.h.b16 %v734
        %v2369 = vunpack.c.l.b16 %v735
        %v2370 = vunpack.c.h.b16 %v735
        %v2371 = vunpack.c.l.b16 %v736
        %v2372 = vunpack.c.h.b16 %v736
        %v2373 = vunpack.c.l.b16 %v737
        %v2374 = vunpack.c.h.b16 %v737
        %v2375 = vunpack.c.l.b16 %v738
        %v2376 = vunpack.c.h.b16 %v738
        %v2377 = vunpack.c.l.b16 %v739
        %v2378 = vunpack.c.h.b16 %v739
        %v2379 = vunpack.c.l.b16 %v740
        %v2380 = vunpack.c.h.b16 %v740
        %v2381 = vunpack.c.l.b16 %v741
        %v2382 = vunpack.c.h.b16 %v741
        %v2383 = vunpack.c.l.b16 %v742
        %v2384 = vunpack.c.h.b16 %v742
        %v2385 = vunpack.c.l.b16 %v743
        %v2386 = vunpack.c.h.b16 %v743
        %v2387 = vunpack.c.l.b16 %v744
        %v2388 = vunpack.c.h.b16 %v744
        %v2389 = vunpack.c.l.b16 %v745
        %v2390 = vunpack.c.h.b16 %v745
        %v2391 = vunpack.c.l.b16 %v746
        %v2392 = vunpack.c.h.b16 %v746
        %v2393 = vunpack.c.l.b16 %v747
        %v2394 = vunpack.c.h.b16 %v747
        %v2395 = vunpack.c.l.b16 %v748
        %v2396 = vunpack.c.h.b16 %v748
        %v2397 = vunpack.c.l.b16 %v749
        %v2398 = vunpack.c.h.b16 %v749
        %v2399 = vunpack.c.l.b16 %v750
        %v2400 = vunpack.c.h.b16 %v750
        %v2401 = vunpack.c.l.b16 %v751
        %v2402 = vunpack.c.h.b16 %v751
        %v2403 = vunpack.c.l.b16 %v752
        %v2404 = vunpack.c.h.b16 %v752
        %v2405 = vunpack.c.l.b16 %v753
        %v2406 = vunpack.c.h.b16 %v753
        %v2407 = vpack.c.b16 %v1387, %v1383
        %v2408 = vpack.c.b16 %v1388, %v1384
        %v2409 = vpack.c.b16 %v1389, %v1385
        %v2410 = vpack.c.b16 %v1390, %v1386
        %v2411 = vpack.c.b16 %v1395, %v1391
        %v2412 = vpack.c.b16 %v1396, %v1392
        %v2413 = vpack.c.b16 %v1397, %v1393
        %v2414 = vpack.c.b16 %v1398, %v1394
        %v2415 = vpack.c.b16 %v1403, %v1399
        %v2416 = vpack.c.b16 %v1404, %v1400
        %v2417 = vpack.c.b16 %v1405, %v1401
        %v2418 = vpack.c.b16 %v1406, %v1402
        %v2419 = vpack.c.b16 %v1411, %v1407
        %v2420 = vpack.c.b16 %v1412, %v1408
        %v2421 = vpack.c.b16 %v1413, %v1409
        %v2422 = vpack.c.b16 %v1414, %v1410
        %v2423 = vpack.c.b16 %v1419, %v1415
        %v2424 = vpack.c.b16 %v1420, %v1416
        %v2425 = vpack.c.b16 %v1421, %v1417
        %v2426 = vpack.c.b16 %v1422, %v1418
        %v2427 = vpack.c.b16 %v1427, %v1423
        %v2428 = vpack.c.b16 %v1428, %v1424
        %v2429 = vpack.c.b16 %v1429, %v1425
        %v2430 = vpack.c.b16 %v1430, %v1426
        %v2431 = vpack.c.b16 %v1435, %v1431
        %v2432 = vpack.c.b16 %v1436, %v1432
        %v2433 = vpack.c.b16 %v1437, %v1433
        %v2434 = vpack.c.b16 %v1438, %v1434
        %v2435 = vpack.c.b16 %v1443, %v1439
        %v2436 = vpack.c.b16 %v1444, %v1440
        %v2437 = vpack.c.b16 %v1445, %v1441
        %v2438 = vpack.c.b16 %v1446, %v1442
        %v2439 = vpack.c.b16 %v1451, %v1447
        %v2440 = vpack.c.b16 %v1452, %v1448
        %v2441 = vpack.c.b16 %v1453, %v1449
        %v2442 = vpack.c.b16 %v1454, %v1450
        %v2443 = vpack.c.b16 %v1459, %v1455
        %v2444 = vpack.c.b16 %v1460, %v1456
        %v2445 = vpack.c.b16 %v1461, %v1457
        %v2446 = vpack.c.b16 %v1462, %v1458
        %v2447 = vpack.c.b16 %v1467, %v1463
        %v2448 = vpack.c.b16 %v1468, %v1464
        %v2449 = vpack.c.b16 %v1469, %v1465
        %v2450 = vpack.c.b16 %v1470, %v1466
        %v2451 = vpack.c.b16 %v1475, %v1471
        %v2452 = vpack.c.b16 %v1476, %v1472
        %v2453 = vpack.c.b16 %v1477, %v1473
        %v2454 = vpack.c.b16 %v1478, %v1474
        %v2455 = vpack.c.b16 %v1483, %v1479
        %v2456 = vpack.c.b16 %v1484, %v1480
        %v2457 = vpack.c.b16 %v1485, %v1481
        %v2458 = vpack.c.b16 %v1486, %v1482
        %v2459 = vpack.c.b16 %v1491, %v1487
        %v2460 = vpack.c.b16 %v1492, %v1488
        %v2461 = vpack.c.b16 %v1493, %v1489
        %v2462 = vpack.c.b16 %v1494, %v1490
        %v2463 = vpack.c.b16 %v1499, %v1495
        %v2464 = vpack.c.b16 %v1500, %v1496
        %v2465 = vpack.c.b16 %v1501, %v1497
        %v2466 = vpack.c.b16 %v1502, %v1498
        %v2467 = vpack.c.b16 %v1507, %v1503
        %v2468 = vpack.c.b16 %v1508, %v1504
        %v2469 = vpack.c.b16 %v1509, %v1505
        %v2470 = vpack.c.b16 %v1510, %v1506
        %v2471 = vpack.c.b16 %v1515, %v1511
        %v2472 = vpack.c.b16 %v1516, %v1512
        %v2473 = vpack.c.b16 %v1517, %v1513
        %v2474 = vpack.c.b16 %v1518, %v1514
        %v2475 = vpack.c.b16 %v1523, %v1519
        %v2476 = vpack.c.b16 %v1524, %v1520
        %v2477 = vpack.c.b16 %v1525, %v1521
        %v2478 = vpack.c.b16 %v1526, %v1522
        %v2479 = vpack.c.b16 %v1531, %v1527
        %v2480 = vpack.c.b16 %v1532, %v1528
        %v2481 = vpack.c.b16 %v1533, %v1529
        %v2482 = vpack.c.b16 %v1534, %v1530
        %v2483 = vpack.c.b16 %v1539, %v1535
        %v2484 = vpack.c.b16 %v1540, %v1536
        %v2485 = vpack.c.b16 %v1541, %v1537
        %v2486 = vpack.c.b16 %v1542, %v1538
        %v2487 = vpack.c.b16 %v1547, %v1543
        %v2488 = vpack.c.b16 %v1548, %v1544
        %v2489 = vpack.c.b16 %v1549, %v1545
        %v2490 = vpack.c.b16 %v1550, %v1546
        %v2491 = vpack.c.b16 %v1555, %v1551
        %v2492 = vpack.c.b16 %v1556, %v1552
        %v2493 = vpack.c.b16 %v1557, %v1553
        %v2494 = vpack.c.b16 %v1558, %v1554
        %v2495 = vpack.c.b16 %v1563, %v1559
        %v2496 = vpack.c.b16 %v1564, %v1560
        %v2497 = vpack.c.b16 %v1565, %v1561
        %v2498 = vpack.c.b16 %v1566, %v1562
        %v2499 = vpack.c.b16 %v1571, %v1567
        %v2500 = vpack.c.b16 %v1572, %v1568
        %v2501 = vpack.c.b16 %v1573, %v1569
        %v2502 = vpack.c.b16 %v1574, %v1570
        %v2503 = vpack.c.b16 %v1579, %v1575
        %v2504 = vpack.c.b16 %v1580, %v1576
        %v2505 = vpack.c.b16 %v1581, %v1577
        %v2506 = vpack.c.b16 %v1582, %v1578
        %v2507 = vpack.c.b16 %v1587, %v1583
        %v2508 = vpack.c.b16 %v1588, %v1584
        %v2509 = vpack.c.b16 %v1589, %v1585
        %v2510 = vpack.c.b16 %v1590, %v1586
        %v2511 = vpack.c.b16 %v1595, %v1591
        %v2512 = vpack.c.b16 %v1596, %v1592
        %v2513 = vpack.c.b16 %v1597, %v1593
        %v2514 = vpack.c.b16 %v1598, %v1594
        %v2515 = vpack.c.b16 %v1603, %v1599
        %v2516 = vpack.c.b16 %v1604, %v1600
        %v2517 = vpack.c.b16 %v1605, %v1601
        %v2518 = vpack.c.b16 %v1606, %v1602
        %v2519 = vpack.c.b16 %v1611, %v1607
        %v2520 = vpack.c.b16 %v1612, %v1608
        %v2521 = vpack.c.b16 %v1613, %v1609
        %v2522 = vpack.c.b16 %v1614, %v1610
        %v2523 = vpack.c.b16 %v1619, %v1615
        %v2524 = vpack.c.b16 %v1620, %v1616
        %v2525 = vpack.c.b16 %v1621, %v1617
        %v2526 = vpack.c.b16 %v1622, %v1618
        %v2527 = vpack.c.b16 %v1627, %v1623
        %v2528 = vpack.c.b16 %v1628, %v1624
        %v2529 = vpack.c.b16 %v1629, %v1625
        %v2530 = vpack.c.b16 %v1630, %v1626
        %v2531 = vpack.c.b16 %v1635, %v1631
        %v2532 = vpack.c.b16 %v1636, %v1632
        %v2533 = vpack.c.b16 %v1637, %v1633
        %v2534 = vpack.c.b16 %v1638, %v1634
        %v2535 = vpack.c.b16 %v1643, %v1639
        %v2536 = vpack.c.b16 %v1644, %v1640
        %v2537 = vpack.c.b16 %v1645, %v1641
        %v2538 = vpack.c.b16 %v1646, %v1642
        %v2539 = vpack.c.b16 %v1651, %v1647
        %v2540 = vpack.c.b16 %v1652, %v1648
        %v2541 = vpack.c.b16 %v1653, %v1649
        %v2542 = vpack.c.b16 %v1654, %v1650
        %v2543 = vpack.c.b16 %v1659, %v1655
        %v2544 = vpack.c.b16 %v1660, %v1656
        %v2545 = vpack.c.b16 %v1661, %v1657
        %v2546 = vpack.c.b16 %v1662, %v1658
        %v2547 = vpack.c.b16 %v1667, %v1663
        %v2548 = vpack.c.b16 %v1668, %v1664
        %v2549 = vpack.c.b16 %v1669, %v1665
        %v2550 = vpack.c.b16 %v1670, %v1666
        %v2551 = vpack.c.b16 %v1675, %v1671
        %v2552 = vpack.c.b16 %v1676, %v1672
        %v2553 = vpack.c.b16 %v1677, %v1673
        %v2554 = vpack.c.b16 %v1678, %v1674
        %v2555 = vpack.c.b16 %v1683, %v1679
        %v2556 = vpack.c.b16 %v1684, %v1680
        %v2557 = vpack.c.b16 %v1685, %v1681
        %v2558 = vpack.c.b16 %v1686, %v1682
        %v2559 = vpack.c.b16 %v1691, %v1687
        %v2560 = vpack.c.b16 %v1692, %v1688
        %v2561 = vpack.c.b16 %v1693, %v1689
        %v2562 = vpack.c.b16 %v1694, %v1690
        %v2563 = vpack.c.b16 %v1699, %v1695
        %v2564 = vpack.c.b16 %v1700, %v1696
        %v2565 = vpack.c.b16 %v1701, %v1697
        %v2566 = vpack.c.b16 %v1702, %v1698
        %v2567 = vpack.c.b16 %v1707, %v1703
        %v2568 = vpack.c.b16 %v1708, %v1704
        %v2569 = vpack.c.b16 %v1709, %v1705
        %v2570 = vpack.c.b16 %v1710, %v1706
        %v2571 = vpack.c.b16 %v1715, %v1711
        %v2572 = vpack.c.b16 %v1716, %v1712
        %v2573 = vpack.c.b16 %v1717, %v1713
        %v2574 = vpack.c.b16 %v1718, %v1714
        %v2575 = vpack.c.b16 %v1723, %v1719
        %v2576 = vpack.c.b16 %v1724, %v1720
        %v2577 = vpack.c.b16 %v1725, %v1721
        %v2578 = vpack.c.b16 %v1726, %v1722
        %v2579 = vpack.c.b16 %v1731, %v1727
        %v2580 = vpack.c.b16 %v1732, %v1728
        %v2581 = vpack.c.b16 %v1733, %v1729
        %v2582 = vpack.c.b16 %v1734, %v1730
        %v2583 = vpack.c.b16 %v1739, %v1735
        %v2584 = vpack.c.b16 %v1740, %v1736
        %v2585 = vpack.c.b16 %v1741, %v1737
        %v2586 = vpack.c.b16 %v1742, %v1738
        %v2587 = vpack.c.b16 %v1747, %v1743
        %v2588 = vpack.c.b16 %v1748, %v1744
        %v2589 = vpack.c.b16 %v1749, %v1745
        %v2590 = vpack.c.b16 %v1750, %v1746
        %v2591 = vpack.c.b16 %v1755, %v1751
        %v2592 = vpack.c.b16 %v1756, %v1752
        %v2593 = vpack.c.b16 %v1757, %v1753
        %v2594 = vpack.c.b16 %v1758, %v1754
        %v2595 = vpack.c.b16 %v1763, %v1759
        %v2596 = vpack.c.b16 %v1764, %v1760
        %v2597 = vpack.c.b16 %v1765, %v1761
        %v2598 = vpack.c.b16 %v1766, %v1762
        %v2599 = vpack.c.b16 %v1771, %v1767
        %v2600 = vpack.c.b16 %v1772, %v1768
        %v2601 = vpack.c.b16 %v1773, %v1769
        %v2602 = vpack.c.b16 %v1774, %v1770
        %v2603 = vpack.c.b16 %v1779, %v1775
        %v2604 = vpack.c.b16 %v1780, %v1776
        %v2605 = vpack.c.b16 %v1781, %v1777
        %v2606 = vpack.c.b16 %v1782, %v1778
        %v2607 = vpack.c.b16 %v1787, %v1783
        %v2608 = vpack.c.b16 %v1788, %v1784
        %v2609 = vpack.c.b16 %v1789, %v1785
        %v2610 = vpack.c.b16 %v1790, %v1786
        %v2611 = vpack.c.b16 %v1795, %v1791
        %v2612 = vpack.c.b16 %v1796, %v1792
        %v2613 = vpack.c.b16 %v1797, %v1793
        %v2614 = vpack.c.b16 %v1798, %v1794
        %v2615 = vpack.c.b16 %v1803, %v1799
        %v2616 = vpack.c.b16 %v1804, %v1800
        %v2617 = vpack.c.b16 %v1805, %v1801
        %v2618 = vpack.c.b16 %v1806, %v1802
        %v2619 = vpack.c.b16 %v1811, %v1807
        %v2620 = vpack.c.b16 %v1812, %v1808
        %v2621 = vpack.c.b16 %v1813, %v1809
        %v2622 = vpack.c.b16 %v1814, %v1810
        %v2623 = vpack.c.b16 %v1819, %v1815
        %v2624 = vpack.c.b16 %v1820, %v1816
        %v2625 = vpack.c.b16 %v1821, %v1817
        %v2626 = vpack.c.b16 %v1822, %v1818
        %v2627 = vpack.c.b16 %v1827, %v1823
        %v2628 = vpack.c.b16 %v1828, %v1824
        %v2629 = vpack.c.b16 %v1829, %v1825
        %v2630 = vpack.c.b16 %v1830, %v1826
        %v2631 = vpack.c.b16 %v1835, %v1831
        %v2632 = vpack.c.b16 %v1836, %v1832
        %v2633 = vpack.c.b16 %v1837, %v1833
        %v2634 = vpack.c.b16 %v1838, %v1834
        %v2635 = vpack.c.b16 %v1843, %v1839
        %v2636 = vpack.c.b16 %v1844, %v1840
        %v2637 = vpack.c.b16 %v1845, %v1841
        %v2638 = vpack.c.b16 %v1846, %v1842
        %v2639 = vpack.c.b16 %v1851, %v1847
        %v2640 = vpack.c.b16 %v1852, %v1848
        %v2641 = vpack.c.b16 %v1853, %v1849
        %v2642 = vpack.c.b16 %v1854, %v1850
        %v2643 = vpack.c.b16 %v1859, %v1855
        %v2644 = vpack.c.b16 %v1860, %v1856
        %v2645 = vpack.c.b16 %v1861, %v1857
        %v2646 = vpack.c.b16 %v1862, %v1858
        %v2647 = vpack.c.b16 %v1867, %v1863
        %v2648 = vpack.c.b16 %v1868, %v1864
        %v2649 = vpack.c.b16 %v1869, %v1865
        %v2650 = vpack.c.b16 %v1870, %v1866
        %v2651 = vpack.c.b16 %v1875, %v1871
        %v2652 = vpack.c.b16 %v1876, %v1872
        %v2653 = vpack.c.b16 %v1877, %v1873
        %v2654 = vpack.c.b16 %v1878, %v1874
        %v2655 = vpack.c.b16 %v1883, %v1879
        %v2656 = vpack.c.b16 %v1884, %v1880
        %v2657 = vpack.c.b16 %v1885, %v1881
        %v2658 = vpack.c.b16 %v1886, %v1882
        %v2659 = vpack.c.b16 %v1891, %v1887
        %v2660 = vpack.c.b16 %v1892, %v1888
        %v2661 = vpack.c.b16 %v1893, %v1889
        %v2662 = vpack.c.b16 %v1894, %v1890
        %v2663 = vpack.c.b16 %v1899, %v1895
        %v2664 = vpack.c.b16 %v1900, %v1896
        %v2665 = vpack.c.b16 %v1901, %v1897
        %v2666 = vpack.c.b16 %v1902, %v1898
        %v2667 = vpack.c.b16 %v1907, %v1903
        %v2668 = vpack.c.b16 %v1908, %v1904
        %v2669 = vpack.c.b16 %v1909, %v1905
        %v2670 = vpack.c.b16 %v1910, %v1906
        %v2671 = vpack.c.b16 %v1915, %v1911
        %v2672 = vpack.c.b16 %v1916, %v1912
        %v2673 = vpack.c.b16 %v1917, %v1913
        %v2674 = vpack.c.b16 %v1918, %v1914
        %v2675 = vpack.c.b16 %v1923, %v1919
        %v2676 = vpack.c.b16 %v1924, %v1920
        %v2677 = vpack.c.b16 %v1925, %v1921
        %v2678 = vpack.c.b16 %v1926, %v1922
        %v2679 = vpack.c.b16 %v1931, %v1927
        %v2680 = vpack.c.b16 %v1932, %v1928
        %v2681 = vpack.c.b16 %v1933, %v1929
        %v2682 = vpack.c.b16 %v1934, %v1930
        %v2683 = vpack.c.b16 %v1939, %v1935
        %v2684 = vpack.c.b16 %v1940, %v1936
        %v2685 = vpack.c.b16 %v1941, %v1937
        %v2686 = vpack.c.b16 %v1942, %v1938
        %v2687 = vpack.c.b16 %v1947, %v1943
        %v2688 = vpack.c.b16 %v1948, %v1944
        %v2689 = vpack.c.b16 %v1949, %v1945
        %v2690 = vpack.c.b16 %v1950, %v1946
        %v2691 = vpack.c.b16 %v1955, %v1951
        %v2692 = vpack.c.b16 %v1956, %v1952
        %v2693 = vpack.c.b16 %v1957, %v1953
        %v2694 = vpack.c.b16 %v1958, %v1954
        %v2695 = vpack.c.b16 %v1963, %v1959
        %v2696 = vpack.c.b16 %v1964, %v1960
        %v2697 = vpack.c.b16 %v1965, %v1961
        %v2698 = vpack.c.b16 %v1966, %v1962
        %v2699 = vpack.c.b16 %v1971, %v1967
        %v2700 = vpack.c.b16 %v1972, %v1968
        %v2701 = vpack.c.b16 %v1973, %v1969
        %v2702 = vpack.c.b16 %v1974, %v1970
        %v2703 = vpack.c.b16 %v1979, %v1975
        %v2704 = vpack.c.b16 %v1980, %v1976
        %v2705 = vpack.c.b16 %v1981, %v1977
        %v2706 = vpack.c.b16 %v1982, %v1978
        %v2707 = vpack.c.b16 %v1987, %v1983
        %v2708 = vpack.c.b16 %v1988, %v1984
        %v2709 = vpack.c.b16 %v1989, %v1985
        %v2710 = vpack.c.b16 %v1990, %v1986
        %v2711 = vpack.c.b16 %v1995, %v1991
        %v2712 = vpack.c.b16 %v1996, %v1992
        %v2713 = vpack.c.b16 %v1997, %v1993
        %v2714 = vpack.c.b16 %v1998, %v1994
        %v2715 = vpack.c.b16 %v2003, %v1999
        %v2716 = vpack.c.b16 %v2004, %v2000
        %v2717 = vpack.c.b16 %v2005, %v2001
        %v2718 = vpack.c.b16 %v2006, %v2002
        %v2719 = vpack.c.b16 %v2011, %v2007
        %v2720 = vpack.c.b16 %v2012, %v2008
        %v2721 = vpack.c.b16 %v2013, %v2009
        %v2722 = vpack.c.b16 %v2014, %v2010
        %v2723 = vpack.c.b16 %v2019, %v2015
        %v2724 = vpack.c.b16 %v2020, %v2016
        %v2725 = vpack.c.b16 %v2021, %v2017
        %v2726 = vpack.c.b16 %v2022, %v2018
        %v2727 = vpack.c.b16 %v2027, %v2023
        %v2728 = vpack.c.b16 %v2028, %v2024
        %v2729 = vpack.c.b16 %v2029, %v2025
        %v2730 = vpack.c.b16 %v2030, %v2026
        %v2731 = vpack.c.b16 %v2035, %v2031
        %v2732 = vpack.c.b16 %v2036, %v2032
        %v2733 = vpack.c.b16 %v2037, %v2033
        %v2734 = vpack.c.b16 %v2038, %v2034
        %v2735 = vpack.c.b16 %v2043, %v2039
        %v2736 = vpack.c.b16 %v2044, %v2040
        %v2737 = vpack.c.b16 %v2045, %v2041
        %v2738 = vpack.c.b16 %v2046, %v2042
        %v2739 = vpack.c.b16 %v2051, %v2047
        %v2740 = vpack.c.b16 %v2052, %v2048
        %v2741 = vpack.c.b16 %v2053, %v2049
        %v2742 = vpack.c.b16 %v2054, %v2050
        %v2743 = vpack.c.b16 %v2059, %v2055
        %v2744 = vpack.c.b16 %v2060, %v2056
        %v2745 = vpack.c.b16 %v2061, %v2057
        %v2746 = vpack.c.b16 %v2062, %v2058
        %v2747 = vpack.c.b16 %v2067, %v2063
        %v2748 = vpack.c.b16 %v2068, %v2064
        %v2749 = vpack.c.b16 %v2069, %v2065
        %v2750 = vpack.c.b16 %v2070, %v2066
        %v2751 = vpack.c.b16 %v2075, %v2071
        %v2752 = vpack.c.b16 %v2076, %v2072
        %v2753 = vpack.c.b16 %v2077, %v2073
        %v2754 = vpack.c.b16 %v2078, %v2074
        %v2755 = vpack.c.b16 %v2083, %v2079
        %v2756 = vpack.c.b16 %v2084, %v2080
        %v2757 = vpack.c.b16 %v2085, %v2081
        %v2758 = vpack.c.b16 %v2086, %v2082
        %v2759 = vpack.c.b16 %v2091, %v2087
        %v2760 = vpack.c.b16 %v2092, %v2088
        %v2761 = vpack.c.b16 %v2093, %v2089
        %v2762 = vpack.c.b16 %v2094, %v2090
        %v2763 = vpack.c.b16 %v2099, %v2095
        %v2764 = vpack.c.b16 %v2100, %v2096
        %v2765 = vpack.c.b16 %v2101, %v2097
        %v2766 = vpack.c.b16 %v2102, %v2098
        %v2767 = vpack.c.b16 %v2107, %v2103
        %v2768 = vpack.c.b16 %v2108, %v2104
        %v2769 = vpack.c.b16 %v2109, %v2105
        %v2770 = vpack.c.b16 %v2110, %v2106
        %v2771 = vpack.c.b16 %v2115, %v2111
        %v2772 = vpack.c.b16 %v2116, %v2112
        %v2773 = vpack.c.b16 %v2117, %v2113
        %v2774 = vpack.c.b16 %v2118, %v2114
        %v2775 = vpack.c.b16 %v2123, %v2119
        %v2776 = vpack.c.b16 %v2124, %v2120
        %v2777 = vpack.c.b16 %v2125, %v2121
        %v2778 = vpack.c.b16 %v2126, %v2122
        %v2779 = vpack.c.b16 %v2131, %v2127
        %v2780 = vpack.c.b16 %v2132, %v2128
        %v2781 = vpack.c.b16 %v2133, %v2129
        %v2782 = vpack.c.b16 %v2134, %v2130
        %v2783 = vpack.c.b16 %v2139, %v2135
        %v2784 = vpack.c.b16 %v2140, %v2136
        %v2785 = vpack.c.b16 %v2141, %v2137
        %v2786 = vpack.c.b16 %v2142, %v2138
        %v2787 = vpack.c.b16 %v2147, %v2143
        %v2788 = vpack.c.b16 %v2148, %v2144
        %v2789 = vpack.c.b16 %v2149, %v2145
        %v2790 = vpack.c.b16 %v2150, %v2146
        %v2791 = vpack.c.b16 %v2155, %v2151
        %v2792 = vpack.c.b16 %v2156, %v2152
        %v2793 = vpack.c.b16 %v2157, %v2153
        %v2794 = vpack.c.b16 %v2158, %v2154
        %v2795 = vpack.c.b16 %v2163, %v2159
        %v2796 = vpack.c.b16 %v2164, %v2160
        %v2797 = vpack.c.b16 %v2165, %v2161
        %v2798 = vpack.c.b16 %v2166, %v2162
        %v2799 = vpack.c.b16 %v2171, %v2167
        %v2800 = vpack.c.b16 %v2172, %v2168
        %v2801 = vpack.c.b16 %v2173, %v2169
        %v2802 = vpack.c.b16 %v2174, %v2170
        %v2803 = vpack.c.b16 %v2179, %v2175
        %v2804 = vpack.c.b16 %v2180, %v2176
        %v2805 = vpack.c.b16 %v2181, %v2177
        %v2806 = vpack.c.b16 %v2182, %v2178
        %v2807 = vpack.c.b16 %v2187, %v2183
        %v2808 = vpack.c.b16 %v2188, %v2184
        %v2809 = vpack.c.b16 %v2189, %v2185
        %v2810 = vpack.c.b16 %v2190, %v2186
        %v2811 = vpack.c.b16 %v2195, %v2191
        %v2812 = vpack.c.b16 %v2196, %v2192
        %v2813 = vpack.c.b16 %v2197, %v2193
        %v2814 = vpack.c.b16 %v2198, %v2194
        %v2815 = vpack.c.b16 %v2203, %v2199
        %v2816 = vpack.c.b16 %v2204, %v2200
        %v2817 = vpack.c.b16 %v2205, %v2201
        %v2818 = vpack.c.b16 %v2206, %v2202
        %v2819 = vpack.c.b16 %v2211, %v2207
        %v2820 = vpack.c.b16 %v2212, %v2208
        %v2821 = vpack.c.b16 %v2213, %v2209
        %v2822 = vpack.c.b16 %v2214, %v2210
        %v2823 = vpack.c.b16 %v2219, %v2215
        %v2824 = vpack.c.b16 %v2220, %v2216
        %v2825 = vpack.c.b16 %v2221, %v2217
        %v2826 = vpack.c.b16 %v2222, %v2218
        %v2827 = vpack.c.b16 %v2227, %v2223
        %v2828 = vpack.c.b16 %v2228, %v2224
        %v2829 = vpack.c.b16 %v2229, %v2225
        %v2830 = vpack.c.b16 %v2230, %v2226
        %v2831 = vpack.c.b16 %v2235, %v2231
        %v2832 = vpack.c.b16 %v2236, %v2232
        %v2833 = vpack.c.b16 %v2237, %v2233
        %v2834 = vpack.c.b16 %v2238, %v2234
        %v2835 = vpack.c.b16 %v2243, %v2239
        %v2836 = vpack.c.b16 %v2244, %v2240
        %v2837 = vpack.c.b16 %v2245, %v2241
        %v2838 = vpack.c.b16 %v2246, %v2242
        %v2839 = vpack.c.b16 %v2251, %v2247
        %v2840 = vpack.c.b16 %v2252, %v2248
        %v2841 = vpack.c.b16 %v2253, %v2249
        %v2842 = vpack.c.b16 %v2254, %v2250
        %v2843 = vpack.c.b16 %v2259, %v2255
        %v2844 = vpack.c.b16 %v2260, %v2256
        %v2845 = vpack.c.b16 %v2261, %v2257
        %v2846 = vpack.c.b16 %v2262, %v2258
        %v2847 = vpack.c.b16 %v2267, %v2263
        %v2848 = vpack.c.b16 %v2268, %v2264
        %v2849 = vpack.c.b16 %v2269, %v2265
        %v2850 = vpack.c.b16 %v2270, %v2266
        %v2851 = vpack.c.b16 %v2275, %v2271
        %v2852 = vpack.c.b16 %v2276, %v2272
        %v2853 = vpack.c.b16 %v2277, %v2273
        %v2854 = vpack.c.b16 %v2278, %v2274
        %v2855 = vpack.c.b16 %v2283, %v2279
        %v2856 = vpack.c.b16 %v2284, %v2280
        %v2857 = vpack.c.b16 %v2285, %v2281
        %v2858 = vpack.c.b16 %v2286, %v2282
        %v2859 = vpack.c.b16 %v2291, %v2287
        %v2860 = vpack.c.b16 %v2292, %v2288
        %v2861 = vpack.c.b16 %v2293, %v2289
        %v2862 = vpack.c.b16 %v2294, %v2290
        %v2863 = vpack.c.b16 %v2299, %v2295
        %v2864 = vpack.c.b16 %v2300, %v2296
        %v2865 = vpack.c.b16 %v2301, %v2297
        %v2866 = vpack.c.b16 %v2302, %v2298
        %v2867 = vpack.c.b16 %v2307, %v2303
        %v2868 = vpack.c.b16 %v2308, %v2304
        %v2869 = vpack.c.b16 %v2309, %v2305
        %v2870 = vpack.c.b16 %v2310, %v2306
        %v2871 = vpack.c.b16 %v2315, %v2311
        %v2872 = vpack.c.b16 %v2316, %v2312
        %v2873 = vpack.c.b16 %v2317, %v2313
        %v2874 = vpack.c.b16 %v2318, %v2314
        %v2875 = vpack.c.b16 %v2323, %v2319
        %v2876 = vpack.c.b16 %v2324, %v2320
        %v2877 = vpack.c.b16 %v2325, %v2321
        %v2878 = vpack.c.b16 %v2326, %v2322
        %v2879 = vpack.c.b16 %v2331, %v2327
        %v2880 = vpack.c.b16 %v2332, %v2328
        %v2881 = vpack.c.b16 %v2333, %v2329
        %v2882 = vpack.c.b16 %v2334, %v2330
        %v2883 = vpack.c.b16 %v2339, %v2335
        %v2884 = vpack.c.b16 %v2340, %v2336
        %v2885 = vpack.c.b16 %v2341, %v2337
        %v2886 = vpack.c.b16 %v2342, %v2338
        %v2887 = vpack.c.b16 %v2347, %v2343
        %v2888 = vpack.c.b16 %v2348, %v2344
        %v2889 = vpack.c.b16 %v2349, %v2345
        %v2890 = vpack.c.b16 %v2350, %v2346
        %v2891 = vpack.c.b16 %v2355, %v2351
        %v2892 = vpack.c.b16 %v2356, %v2352
        %v2893 = vpack.c.b16 %v2357, %v2353
        %v2894 = vpack.c.b16 %v2358, %v2354
        %v2895 = vpack.c.b16 %v2363, %v2359
        %v2896 = vpack.c.b16 %v2364, %v2360
        %v2897 = vpack.c.b16 %v2365, %v2361
        %v2898 = vpack.c.b16 %v2366, %v2362
        %v2899 = vpack.c.b16 %v2371, %v2367
        %v2900 = vpack.c.b16 %v2372, %v2368
        %v2901 = vpack.c.b16 %v2373, %v2369
        %v2902 = vpack.c.b16 %v2374, %v2370
        %v2903 = vpack.c.b16 %v2379, %v2375
        %v2904 = vpack.c.b16 %v2380, %v2376
        %v2905 = vpack.c.b16 %v2381, %v2377
        %v2906 = vpack.c.b16 %v2382, %v2378
        %v2907 = vpack.c.b16 %v2387, %v2383
        %v2908 = vpack.c.b16 %v2388, %v2384
        %v2909 = vpack.c.b16 %v2389, %v2385
        %v2910 = vpack.c.b16 %v2390, %v2386
        %v2911 = vpack.c.b16 %v2395, %v2391
        %v2912 = vpack.c.b16 %v2396, %v2392
        %v2913 = vpack.c.b16 %v2397, %v2393
        %v2914 = vpack.c.b16 %v2398, %v2394
        %v2915 = vpack.c.b16 %v2403, %v2399
        %v2916 = vpack.c.b16 %v2404, %v2400
        %v2917 = vpack.c.b16 %v2405, %v2401
        %v2918 = vpack.c.b16 %v2406, %v2402
        %v3432 = vlaneseq
        %v3433 = vshrl.u32 %v3432, 7
        %v3434 = vsub.s32 0, %v3433
        %v3435 = vrot.slane %v754, %v3434
        %v3436 = vlaneseq
        %v3437 = vshrl.u32 %v3436, 7
        %v3438 = vsub.s32 1, %v3437
        %v3439 = vrot.slane %v754, %v3438
        %v3440 = vlaneseq
        %v3441 = vshrl.u32 %v3440, 7
        %v3442 = vsub.s32 2, %v3441
        %v3443 = vrot.slane %v754, %v3442
        %v3444 = vlaneseq
        %v3445 = vshrl.u32 %v3444, 7
        %v3446 = vsub.s32 3, %v3445
        %v3447 = vrot.slane %v754, %v3446
        %3452 = vmatprep.subr.bf16.mxu0 %v2436
        %3453 = vmatpush1.bf16.msra.mxu0 %v2435
        %3454 = vmatprep.subr.bf16.mxu0 %v2432
        %3455 = vmatpush1.bf16.msra.mxu0 %v2431
        %3456 = vmatprep.subr.bf16.mxu0 %v2428
        %3457 = vmatpush1.bf16.msra.mxu0 %v2427
        %3458 = vmatprep.subr.bf16.mxu0 %v2424
        %3459 = vmatpush1.bf16.msra.mxu0 %v2423
        %3460 = vmatprep.subr.bf16.mxu0 %v2420
        %3461 = vmatpush1.bf16.msra.mxu0 %v2419
        %3462 = vmatprep.subr.bf16.mxu0 %v2416
        %3463 = vmatpush1.bf16.msra.mxu0 %v2415
        %3464 = vmatprep.subr.bf16.mxu0 %v2412
        %3465 = vmatpush1.bf16.msra.mxu0 %v2411
        %3466 = vmatprep.subr.bf16.mxu0 %v2408
        %3467 = vmatpush1.bf16.msra.mxu0 %v2407
        %3468 = vmatprep.subr.bf16.mxu0 %v2468
        %3469 = vmatpush2.bf16.msra.mxu0 %v2467
        %3470 = vmatprep.subr.bf16.mxu0 %v2464
        %3471 = vmatpush2.bf16.msra.mxu0 %v2463
        %3472 = vmatprep.subr.bf16.mxu0 %v2460
        %3473 = vmatpush2.bf16.msra.mxu0 %v2459
        %3474 = vmatprep.subr.bf16.mxu0 %v2456
        %3475 = vmatpush2.bf16.msra.mxu0 %v2455
        %3476 = vmatprep.subr.bf16.mxu0 %v2452
        %3477 = vmatpush2.bf16.msra.mxu0 %v2451
        %3478 = vmatprep.subr.bf16.mxu0 %v2448
        %3479 = vmatpush2.bf16.msra.mxu0 %v2447
        %3480 = vmatprep.subr.bf16.mxu0 %v2444
        %3481 = vmatpush2.bf16.msra.mxu0 %v2443
        %3482 = vmatprep.subr.bf16.mxu0 %v2440
        %3483 = vmatpush2.bf16.msra.mxu0 %v2439
        %3484 = vmatprep.mubr.bf16.mxu0 %v794
        %3485 = vmatmul.mubr.bf16.gmra.mxu0 %v780
        %v3486 = vpop.f32.mrf.mxu0
        %v3487 = vadd.f32 %v3435, %v3486
        %v3488 = vpop.f32.mrf.mxu0
        %v3489 = vadd.f32 %v3439, %v3488
        %v3490 = vpop.f32.mrf.mxu0
        %v3491 = vpop.f32.mrf.mxu0
        %3492 = vdwg.mxu0
        %3493 = vmatprep.subr.bf16.mxu0 %v2500
        %3494 = vmatpush1.bf16.msra.mxu0 %v2499
        %3495 = vmatprep.subr.bf16.mxu0 %v2496
        %3496 = vmatpush1.bf16.msra.mxu0 %v2495
        %3497 = vmatprep.subr.bf16.mxu0 %v2492
        %3498 = vmatpush1.bf16.msra.mxu0 %v2491
        %3499 = vmatprep.subr.bf16.mxu0 %v2488
        %3500 = vmatpush1.bf16.msra.mxu0 %v2487
        %3501 = vmatprep.subr.bf16.mxu0 %v2484
        %3502 = vmatpush1.bf16.msra.mxu0 %v2483
        %3503 = vmatprep.subr.bf16.mxu0 %v2480
        %3504 = vmatpush1.bf16.msra.mxu0 %v2479
        %3505 = vmatprep.subr.bf16.mxu0 %v2476
        %3506 = vmatpush1.bf16.msra.mxu0 %v2475
        %3507 = vmatprep.subr.bf16.mxu0 %v2472
        %3508 = vmatpush1.bf16.msra.mxu0 %v2471
        %3509 = vmatprep.subr.bf16.mxu0 %v2532
        %3510 = vmatpush2.bf16.msra.mxu0 %v2531
        %3511 = vmatprep.subr.bf16.mxu0 %v2528
        %3512 = vmatpush2.bf16.msra.mxu0 %v2527
        %3513 = vmatprep.subr.bf16.mxu0 %v2524
        %3514 = vmatpush2.bf16.msra.mxu0 %v2523
        %3515 = vmatprep.subr.bf16.mxu0 %v2520
        %3516 = vmatpush2.bf16.msra.mxu0 %v2519
        %3517 = vmatprep.subr.bf16.mxu0 %v2516
        %3518 = vmatpush2.bf16.msra.mxu0 %v2515
        %3519 = vmatprep.subr.bf16.mxu0 %v2512
        %3520 = vmatpush2.bf16.msra.mxu0 %v2511
        %3521 = vmatprep.subr.bf16.mxu0 %v2508
        %3522 = vmatpush2.bf16.msra.mxu0 %v2507
        %3523 = vmatprep.subr.bf16.mxu0 %v2504
        %3524 = vmatpush2.bf16.msra.mxu0 %v2503
        %3525 = vmatprep.mubr.bf16.mxu0 %v804
        %3526 = vmatmul.mubr.bf16.gmra.mxu0 %v802
        %v3527 = vpop.f32.mrf.mxu0
        %v3528 = vadd.f32 %v3487, %v3527
        %v3529 = vpop.f32.mrf.mxu0
        %v3530 = vadd.f32 %v3489, %v3529
        %v3531 = vpop.f32.mrf.mxu0
        %v3532 = vpop.f32.mrf.mxu0
        %3533 = vdwg.mxu0
        %3534 = vmatprep.subr.bf16.mxu0 %v2564
        %3535 = vmatpush1.bf16.msra.mxu0 %v2563
        %3536 = vmatprep.subr.bf16.mxu0 %v2560
        %3537 = vmatpush1.bf16.msra.mxu0 %v2559
        %3538 = vmatprep.subr.bf16.mxu0 %v2556
        %3539 = vmatpush1.bf16.msra.mxu0 %v2555
        %3540 = vmatprep.subr.bf16.mxu0 %v2552
        %3541 = vmatpush1.bf16.msra.mxu0 %v2551
        %3542 = vmatprep.subr.bf16.mxu0 %v2548
        %3543 = vmatpush1.bf16.msra.mxu0 %v2547
        %3544 = vmatprep.subr.bf16.mxu0 %v2544
        %3545 = vmatpush1.bf16.msra.mxu0 %v2543
        %3546 = vmatprep.subr.bf16.mxu0 %v2540
        %3547 = vmatpush1.bf16.msra.mxu0 %v2539
        %3548 = vmatprep.subr.bf16.mxu0 %v2536
        %3549 = vmatpush1.bf16.msra.mxu0 %v2535
        %3550 = vmatprep.subr.bf16.mxu0 %v2596
        %3551 = vmatpush2.bf16.msra.mxu0 %v2595
        %3552 = vmatprep.subr.bf16.mxu0 %v2592
        %3553 = vmatpush2.bf16.msra.mxu0 %v2591
        %3554 = vmatprep.subr.bf16.mxu0 %v2588
        %3555 = vmatpush2.bf16.msra.mxu0 %v2587
        %3556 = vmatprep.subr.bf16.mxu0 %v2584
        %3557 = vmatpush2.bf16.msra.mxu0 %v2583
        %3558 = vmatprep.subr.bf16.mxu0 %v2580
        %3559 = vmatpush2.bf16.msra.mxu0 %v2579
        %3560 = vmatprep.subr.bf16.mxu0 %v2576
        %3561 = vmatpush2.bf16.msra.mxu0 %v2575
        %3562 = vmatprep.subr.bf16.mxu0 %v2572
        %3563 = vmatpush2.bf16.msra.mxu0 %v2571
        %3564 = vmatprep.subr.bf16.mxu0 %v2568
        %3565 = vmatpush2.bf16.msra.mxu0 %v2567
        %3566 = vmatprep.mubr.bf16.mxu0 %v801
        %3567 = vmatmul.mubr.bf16.gmra.mxu0 %v787
        %v3568 = vpop.f32.mrf.mxu0
        %v3569 = vadd.f32 %v3528, %v3568
        %v3570 = vpop.f32.mrf.mxu0
        %v3571 = vadd.f32 %v3530, %v3570
        %v3572 = vpop.f32.mrf.mxu0
        %v3573 = vpop.f32.mrf.mxu0
        %3574 = vdwg.mxu0
        %3575 = vmatprep.subr.bf16.mxu0 %v2628
        %3576 = vmatpush1.bf16.msra.mxu0 %v2627
        %3577 = vmatprep.subr.bf16.mxu0 %v2624
        %3578 = vmatpush1.bf16.msra.mxu0 %v2623
        %3579 = vmatprep.subr.bf16.mxu0 %v2620
        %3580 = vmatpush1.bf16.msra.mxu0 %v2619
        %3581 = vmatprep.subr.bf16.mxu0 %v2616
        %3582 = vmatpush1.bf16.msra.mxu0 %v2615
        %3583 = vmatprep.subr.bf16.mxu0 %v2612
        %3584 = vmatpush1.bf16.msra.mxu0 %v2611
        %3585 = vmatprep.subr.bf16.mxu0 %v2608
        %3586 = vmatpush1.bf16.msra.mxu0 %v2607
        %3587 = vmatprep.subr.bf16.mxu0 %v2604
        %3588 = vmatpush1.bf16.msra.mxu0 %v2603
        %3589 = vmatprep.subr.bf16.mxu0 %v2600
        %3590 = vmatpush1.bf16.msra.mxu0 %v2599
        %3591 = vmatprep.subr.bf16.mxu0 %v2660
        %3592 = vmatpush2.bf16.msra.mxu0 %v2659
        %3593 = vmatprep.subr.bf16.mxu0 %v2656
        %3594 = vmatpush2.bf16.msra.mxu0 %v2655
        %3595 = vmatprep.subr.bf16.mxu0 %v2652
        %3596 = vmatpush2.bf16.msra.mxu0 %v2651
        %3597 = vmatprep.subr.bf16.mxu0 %v2648
        %3598 = vmatpush2.bf16.msra.mxu0 %v2647
        %3599 = vmatprep.subr.bf16.mxu0 %v2644
        %3600 = vmatpush2.bf16.msra.mxu0 %v2643
        %3601 = vmatprep.subr.bf16.mxu0 %v2640
        %3602 = vmatpush2.bf16.msra.mxu0 %v2639
        %3603 = vmatprep.subr.bf16.mxu0 %v2636
        %3604 = vmatpush2.bf16.msra.mxu0 %v2635
        %3605 = vmatprep.subr.bf16.mxu0 %v2632
        %3606 = vmatpush2.bf16.msra.mxu0 %v2631
        %3607 = vmatprep.mubr.bf16.mxu0 %v805
        %3608 = vmatmul.mubr.bf16.gmra.mxu0 %v803
        %v3609 = vpop.f32.mrf.mxu0
        %v3610 = vadd.f32 %v3569, %v3609
        %v3611 = vpop.f32.mrf.mxu0
        %v3612 = vadd.f32 %v3571, %v3611
        %v3613 = vpop.f32.mrf.mxu0
        %v3614 = vpop.f32.mrf.mxu0
        %3615 = vdwg.mxu0
        %3616 = vmatprep.subr.bf16.mxu0 %v2692
        %3617 = vmatpush1.bf16.msra.mxu0 %v2691
        %3618 = vmatprep.subr.bf16.mxu0 %v2688
        %3619 = vmatpush1.bf16.msra.mxu0 %v2687
        %3620 = vmatprep.subr.bf16.mxu0 %v2684
        %3621 = vmatpush1.bf16.msra.mxu0 %v2683
        %3622 = vmatprep.subr.bf16.mxu0 %v2680
        %3623 = vmatpush1.bf16.msra.mxu0 %v2679
        %3624 = vmatprep.subr.bf16.mxu0 %v2676
        %3625 = vmatpush1.bf16.msra.mxu0 %v2675
        %3626 = vmatprep.subr.bf16.mxu0 %v2672
        %3627 = vmatpush1.bf16.msra.mxu0 %v2671
        %3628 = vmatprep.subr.bf16.mxu0 %v2668
        %3629 = vmatpush1.bf16.msra.mxu0 %v2667
        %3630 = vmatprep.subr.bf16.mxu0 %v2664
        %3631 = vmatpush1.bf16.msra.mxu0 %v2663
        %3632 = vmatprep.subr.bf16.mxu0 %v2724
        %3633 = vmatpush2.bf16.msra.mxu0 %v2723
        %3634 = vmatprep.subr.bf16.mxu0 %v2720
        %3635 = vmatpush2.bf16.msra.mxu0 %v2719
        %3636 = vmatprep.subr.bf16.mxu0 %v2716
        %3637 = vmatpush2.bf16.msra.mxu0 %v2715
        %3638 = vmatprep.subr.bf16.mxu0 %v2712
        %3639 = vmatpush2.bf16.msra.mxu0 %v2711
        %3640 = vmatprep.subr.bf16.mxu0 %v2708
        %3641 = vmatpush2.bf16.msra.mxu0 %v2707
        %3642 = vmatprep.subr.bf16.mxu0 %v2704
        %3643 = vmatpush2.bf16.msra.mxu0 %v2703
        %3644 = vmatprep.subr.bf16.mxu0 %v2700
        %3645 = vmatpush2.bf16.msra.mxu0 %v2699
        %3646 = vmatprep.subr.bf16.mxu0 %v2696
        %3647 = vmatpush2.bf16.msra.mxu0 %v2695
        %3648 = vmatprep.mubr.bf16.mxu0 %v843
        %3649 = vmatmul.mubr.bf16.gmra.mxu0 %v829
        %v3650 = vpop.f32.mrf.mxu0
        %v3651 = vadd.f32 %v3610, %v3650
        %v3652 = vpop.f32.mrf.mxu0
        %v3653 = vadd.f32 %v3612, %v3652
        %v3654 = vpop.f32.mrf.mxu0
        %v3655 = vpop.f32.mrf.mxu0
        %3656 = vdwg.mxu0
        %3657 = vmatprep.subr.bf16.mxu0 %v2756
        %3658 = vmatpush1.bf16.msra.mxu0 %v2755
        %3659 = vmatprep.subr.bf16.mxu0 %v2752
        %3660 = vmatpush1.bf16.msra.mxu0 %v2751
        %3661 = vmatprep.subr.bf16.mxu0 %v2748
        %3662 = vmatpush1.bf16.msra.mxu0 %v2747
        %3663 = vmatprep.subr.bf16.mxu0 %v2744
        %3664 = vmatpush1.bf16.msra.mxu0 %v2743
        %3665 = vmatprep.subr.bf16.mxu0 %v2740
        %3666 = vmatpush1.bf16.msra.mxu0 %v2739
        %3667 = vmatprep.subr.bf16.mxu0 %v2736
        %3668 = vmatpush1.bf16.msra.mxu0 %v2735
        %3669 = vmatprep.subr.bf16.mxu0 %v2732
        %3670 = vmatpush1.bf16.msra.mxu0 %v2731
        %3671 = vmatprep.subr.bf16.mxu0 %v2728
        %3672 = vmatpush1.bf16.msra.mxu0 %v2727
        %3673 = vmatprep.subr.bf16.mxu0 %v2788
        %3674 = vmatpush2.bf16.msra.mxu0 %v2787
        %3675 = vmatprep.subr.bf16.mxu0 %v2784
        %3676 = vmatpush2.bf16.msra.mxu0 %v2783
        %3677 = vmatprep.subr.bf16.mxu0 %v2780
        %3678 = vmatpush2.bf16.msra.mxu0 %v2779
        %3679 = vmatprep.subr.bf16.mxu0 %v2776
        %3680 = vmatpush2.bf16.msra.mxu0 %v2775
        %3681 = vmatprep.subr.bf16.mxu0 %v2772
        %3682 = vmatpush2.bf16.msra.mxu0 %v2771
        %3683 = vmatprep.subr.bf16.mxu0 %v2768
        %3684 = vmatpush2.bf16.msra.mxu0 %v2767
        %3685 = vmatprep.subr.bf16.mxu0 %v2764
        %3686 = vmatpush2.bf16.msra.mxu0 %v2763
        %3687 = vmatprep.subr.bf16.mxu0 %v2760
        %3688 = vmatpush2.bf16.msra.mxu0 %v2759
        %3689 = vmatprep.mubr.bf16.mxu0 %v853
        %3690 = vmatmul.mubr.bf16.gmra.mxu0 %v851
        %v3691 = vpop.f32.mrf.mxu0
        %v3692 = vadd.f32 %v3651, %v3691
        %v3693 = vpop.f32.mrf.mxu0
        %v3694 = vadd.f32 %v3653, %v3693
        %v3695 = vpop.f32.mrf.mxu0
        %v3696 = vpop.f32.mrf.mxu0
        %3697 = vdwg.mxu0
        %3698 = vmatprep.subr.bf16.mxu0 %v2820
        %3699 = vmatpush1.bf16.msra.mxu0 %v2819
        %3700 = vmatprep.subr.bf16.mxu0 %v2816
        %3701 = vmatpush1.bf16.msra.mxu0 %v2815
        %3702 = vmatprep.subr.bf16.mxu0 %v2812
        %3703 = vmatpush1.bf16.msra.mxu0 %v2811
        %3704 = vmatprep.subr.bf16.mxu0 %v2808
        %3705 = vmatpush1.bf16.msra.mxu0 %v2807
        %3706 = vmatprep.subr.bf16.mxu0 %v2804
        %3707 = vmatpush1.bf16.msra.mxu0 %v2803
        %3708 = vmatprep.subr.bf16.mxu0 %v2800
        %3709 = vmatpush1.bf16.msra.mxu0 %v2799
        %3710 = vmatprep.subr.bf16.mxu0 %v2796
        %3711 = vmatpush1.bf16.msra.mxu0 %v2795
        %3712 = vmatprep.subr.bf16.mxu0 %v2792
        %3713 = vmatpush1.bf16.msra.mxu0 %v2791
        %3714 = vmatprep.subr.bf16.mxu0 %v2852
        %3715 = vmatpush2.bf16.msra.mxu0 %v2851
        %3716 = vmatprep.subr.bf16.mxu0 %v2848
        %3717 = vmatpush2.bf16.msra.mxu0 %v2847
        %3718 = vmatprep.subr.bf16.mxu0 %v2844
        %3719 = vmatpush2.bf16.msra.mxu0 %v2843
        %3720 = vmatprep.subr.bf16.mxu0 %v2840
        %3721 = vmatpush2.bf16.msra.mxu0 %v2839
        %3722 = vmatprep.subr.bf16.mxu0 %v2836
        %3723 = vmatpush2.bf16.msra.mxu0 %v2835
        %3724 = vmatprep.subr.bf16.mxu0 %v2832
        %3725 = vmatpush2.bf16.msra.mxu0 %v2831
        %3726 = vmatprep.subr.bf16.mxu0 %v2828
        %3727 = vmatpush2.bf16.msra.mxu0 %v2827
        %3728 = vmatprep.subr.bf16.mxu0 %v2824
        %3729 = vmatpush2.bf16.msra.mxu0 %v2823
        %3730 = vmatprep.mubr.bf16.mxu0 %v850
        %3731 = vmatmul.mubr.bf16.gmra.mxu0 %v836
        %v3732 = vpop.f32.mrf.mxu0
        %v3733 = vadd.f32 %v3692, %v3732
        %v3734 = vpop.f32.mrf.mxu0
        %v3735 = vadd.f32 %v3694, %v3734
        %v3736 = vpop.f32.mrf.mxu0
        %v3737 = vpop.f32.mrf.mxu0
        %3738 = vdwg.mxu0
        %3739 = vmatprep.subr.bf16.mxu0 %v2884
        %3740 = vmatpush1.bf16.msra.mxu0 %v2883
        %3741 = vmatprep.subr.bf16.mxu0 %v2880
        %3742 = vmatpush1.bf16.msra.mxu0 %v2879
        %3743 = vmatprep.subr.bf16.mxu0 %v2876
        %3744 = vmatpush1.bf16.msra.mxu0 %v2875
        %3745 = vmatprep.subr.bf16.mxu0 %v2872
        %3746 = vmatpush1.bf16.msra.mxu0 %v2871
        %3747 = vmatprep.subr.bf16.mxu0 %v2868
        %3748 = vmatpush1.bf16.msra.mxu0 %v2867
        %3749 = vmatprep.subr.bf16.mxu0 %v2864
        %3750 = vmatpush1.bf16.msra.mxu0 %v2863
        %3751 = vmatprep.subr.bf16.mxu0 %v2860
        %3752 = vmatpush1.bf16.msra.mxu0 %v2859
        %3753 = vmatprep.subr.bf16.mxu0 %v2856
        %3754 = vmatpush1.bf16.msra.mxu0 %v2855
        %3755 = vmatprep.subr.bf16.mxu0 %v2916
        %3756 = vmatpush2.bf16.msra.mxu0 %v2915
        %3757 = vmatprep.subr.bf16.mxu0 %v2912
        %3758 = vmatpush2.bf16.msra.mxu0 %v2911
        %3759 = vmatprep.subr.bf16.mxu0 %v2908
        %3760 = vmatpush2.bf16.msra.mxu0 %v2907
        %3761 = vmatprep.subr.bf16.mxu0 %v2904
        %3762 = vmatpush2.bf16.msra.mxu0 %v2903
        %3763 = vmatprep.subr.bf16.mxu0 %v2900
        %3764 = vmatpush2.bf16.msra.mxu0 %v2899
        %3765 = vmatprep.subr.bf16.mxu0 %v2896
        %3766 = vmatpush2.bf16.msra.mxu0 %v2895
        %3767 = vmatprep.subr.bf16.mxu0 %v2892
        %3768 = vmatpush2.bf16.msra.mxu0 %v2891
        %3769 = vmatprep.subr.bf16.mxu0 %v2888
        %3770 = vmatpush2.bf16.msra.mxu0 %v2887
        %3771 = vmatprep.mubr.bf16.mxu0 %v854
        %3772 = vmatmul.mubr.bf16.gmra.mxu0 %v852
        %v3773 = vpop.f32.mrf.mxu0
        %v3774 = vadd.f32 %v3733, %v3773
        %v3775 = vpop.f32.mrf.mxu0
        %v3776 = vadd.f32 %v3735, %v3775
        %v3777 = vpop.f32.mrf.mxu0
        %v3778 = vpop.f32.mrf.mxu0
        %3779 = vdwg.mxu0
        %3780 = vmatprep.subr.bf16.mxu0 %v2438
        %3781 = vmatpush1.bf16.msra.mxu0 %v2437
        %3782 = vmatprep.subr.bf16.mxu0 %v2434
        %3783 = vmatpush1.bf16.msra.mxu0 %v2433
        %3784 = vmatprep.subr.bf16.mxu0 %v2430
        %3785 = vmatpush1.bf16.msra.mxu0 %v2429
        %3786 = vmatprep.subr.bf16.mxu0 %v2426
        %3787 = vmatpush1.bf16.msra.mxu0 %v2425
        %3788 = vmatprep.subr.bf16.mxu0 %v2422
        %3789 = vmatpush1.bf16.msra.mxu0 %v2421
        %3790 = vmatprep.subr.bf16.mxu0 %v2418
        %3791 = vmatpush1.bf16.msra.mxu0 %v2417
        %3792 = vmatprep.subr.bf16.mxu0 %v2414
        %3793 = vmatpush1.bf16.msra.mxu0 %v2413
        %3794 = vmatprep.subr.bf16.mxu0 %v2410
        %3795 = vmatpush1.bf16.msra.mxu0 %v2409
        %3796 = vmatprep.subr.bf16.mxu0 %v2470
        %3797 = vmatpush2.bf16.msra.mxu0 %v2469
        %3798 = vmatprep.subr.bf16.mxu0 %v2466
        %3799 = vmatpush2.bf16.msra.mxu0 %v2465
        %3800 = vmatprep.subr.bf16.mxu0 %v2462
        %3801 = vmatpush2.bf16.msra.mxu0 %v2461
        %3802 = vmatprep.subr.bf16.mxu0 %v2458
        %3803 = vmatpush2.bf16.msra.mxu0 %v2457
        %3804 = vmatprep.subr.bf16.mxu0 %v2454
        %3805 = vmatpush2.bf16.msra.mxu0 %v2453
        %3806 = vmatprep.subr.bf16.mxu0 %v2450
        %3807 = vmatpush2.bf16.msra.mxu0 %v2449
        %3808 = vmatprep.subr.bf16.mxu0 %v2446
        %3809 = vmatpush2.bf16.msra.mxu0 %v2445
        %3810 = vmatprep.subr.bf16.mxu0 %v2442
        %3811 = vmatpush2.bf16.msra.mxu0 %v2441
        %3812 = vmatprep.mubr.bf16.mxu0 %v794
        %3813 = vmatmul.mubr.bf16.gmra.mxu0 %v780
        %v3814 = vpop.f32.mrf.mxu0
        %v3815 = vadd.f32 %v3443, %v3814
        %v3816 = vpop.f32.mrf.mxu0
        %v3817 = vadd.f32 %v3447, %v3816
        %v3818 = vpop.f32.mrf.mxu0
        %v3819 = vpop.f32.mrf.mxu0
        %3820 = vdwg.mxu0
        %3821 = vmatprep.subr.bf16.mxu0 %v2502
        %3822 = vmatpush1.bf16.msra.mxu0 %v2501
        %3823 = vmatprep.subr.bf16.mxu0 %v2498
        %3824 = vmatpush1.bf16.msra.mxu0 %v2497
        %3825 = vmatprep.subr.bf16.mxu0 %v2494
        %3826 = vmatpush1.bf16.msra.mxu0 %v2493
        %3827 = vmatprep.subr.bf16.mxu0 %v2490
        %3828 = vmatpush1.bf16.msra.mxu0 %v2489
        %3829 = vmatprep.subr.bf16.mxu0 %v2486
        %3830 = vmatpush1.bf16.msra.mxu0 %v2485
        %3831 = vmatprep.subr.bf16.mxu0 %v2482
        %3832 = vmatpush1.bf16.msra.mxu0 %v2481
        %3833 = vmatprep.subr.bf16.mxu0 %v2478
        %3834 = vmatpush1.bf16.msra.mxu0 %v2477
        %3835 = vmatprep.subr.bf16.mxu0 %v2474
        %3836 = vmatpush1.bf16.msra.mxu0 %v2473
        %3837 = vmatprep.subr.bf16.mxu0 %v2534
        %3838 = vmatpush2.bf16.msra.mxu0 %v2533
        %3839 = vmatprep.subr.bf16.mxu0 %v2530
        %3840 = vmatpush2.bf16.msra.mxu0 %v2529
        %3841 = vmatprep.subr.bf16.mxu0 %v2526
        %3842 = vmatpush2.bf16.msra.mxu0 %v2525
        %3843 = vmatprep.subr.bf16.mxu0 %v2522
        %3844 = vmatpush2.bf16.msra.mxu0 %v2521
        %3845 = vmatprep.subr.bf16.mxu0 %v2518
        %3846 = vmatpush2.bf16.msra.mxu0 %v2517
        %3847 = vmatprep.subr.bf16.mxu0 %v2514
        %3848 = vmatpush2.bf16.msra.mxu0 %v2513
        %3849 = vmatprep.subr.bf16.mxu0 %v2510
        %3850 = vmatpush2.bf16.msra.mxu0 %v2509
        %3851 = vmatprep.subr.bf16.mxu0 %v2506
        %3852 = vmatpush2.bf16.msra.mxu0 %v2505
        %3853 = vmatprep.mubr.bf16.mxu0 %v804
        %3854 = vmatmul.mubr.bf16.gmra.mxu0 %v802
        %v3855 = vpop.f32.mrf.mxu0
        %v3856 = vadd.f32 %v3815, %v3855
        %v3857 = vpop.f32.mrf.mxu0
        %v3858 = vadd.f32 %v3817, %v3857
        %v3859 = vpop.f32.mrf.mxu0
        %v3860 = vpop.f32.mrf.mxu0
        %3861 = vdwg.mxu0
        %3862 = vmatprep.subr.bf16.mxu0 %v2566
        %3863 = vmatpush1.bf16.msra.mxu0 %v2565
        %3864 = vmatprep.subr.bf16.mxu0 %v2562
        %3865 = vmatpush1.bf16.msra.mxu0 %v2561
        %3866 = vmatprep.subr.bf16.mxu0 %v2558
        %3867 = vmatpush1.bf16.msra.mxu0 %v2557
        %3868 = vmatprep.subr.bf16.mxu0 %v2554
        %3869 = vmatpush1.bf16.msra.mxu0 %v2553
        %3870 = vmatprep.subr.bf16.mxu0 %v2550
        %3871 = vmatpush1.bf16.msra.mxu0 %v2549
        %3872 = vmatprep.subr.bf16.mxu0 %v2546
        %3873 = vmatpush1.bf16.msra.mxu0 %v2545
        %3874 = vmatprep.subr.bf16.mxu0 %v2542
        %3875 = vmatpush1.bf16.msra.mxu0 %v2541
        %3876 = vmatprep.subr.bf16.mxu0 %v2538
        %3877 = vmatpush1.bf16.msra.mxu0 %v2537
        %3878 = vmatprep.subr.bf16.mxu0 %v2598
        %3879 = vmatpush2.bf16.msra.mxu0 %v2597
        %3880 = vmatprep.subr.bf16.mxu0 %v2594
        %3881 = vmatpush2.bf16.msra.mxu0 %v2593
        %3882 = vmatprep.subr.bf16.mxu0 %v2590
        %3883 = vmatpush2.bf16.msra.mxu0 %v2589
        %3884 = vmatprep.subr.bf16.mxu0 %v2586
        %3885 = vmatpush2.bf16.msra.mxu0 %v2585
        %3886 = vmatprep.subr.bf16.mxu0 %v2582
        %3887 = vmatpush2.bf16.msra.mxu0 %v2581
        %3888 = vmatprep.subr.bf16.mxu0 %v2578
        %3889 = vmatpush2.bf16.msra.mxu0 %v2577
        %3890 = vmatprep.subr.bf16.mxu0 %v2574
        %3891 = vmatpush2.bf16.msra.mxu0 %v2573
        %3892 = vmatprep.subr.bf16.mxu0 %v2570
        %3893 = vmatpush2.bf16.msra.mxu0 %v2569
        %3894 = vmatprep.mubr.bf16.mxu0 %v801
        %3895 = vmatmul.mubr.bf16.gmra.mxu0 %v787
        %v3896 = vpop.f32.mrf.mxu0
        %v3897 = vadd.f32 %v3856, %v3896
        %v3898 = vpop.f32.mrf.mxu0
        %v3899 = vadd.f32 %v3858, %v3898
        %v3900 = vpop.f32.mrf.mxu0
        %v3901 = vpop.f32.mrf.mxu0
        %3902 = vdwg.mxu0
        %3903 = vmatprep.subr.bf16.mxu0 %v2630
        %3904 = vmatpush1.bf16.msra.mxu0 %v2629
        %3905 = vmatprep.subr.bf16.mxu0 %v2626
        %3906 = vmatpush1.bf16.msra.mxu0 %v2625
        %3907 = vmatprep.subr.bf16.mxu0 %v2622
        %3908 = vmatpush1.bf16.msra.mxu0 %v2621
        %3909 = vmatprep.subr.bf16.mxu0 %v2618
        %3910 = vmatpush1.bf16.msra.mxu0 %v2617
        %3911 = vmatprep.subr.bf16.mxu0 %v2614
        %3912 = vmatpush1.bf16.msra.mxu0 %v2613
        %3913 = vmatprep.subr.bf16.mxu0 %v2610
        %3914 = vmatpush1.bf16.msra.mxu0 %v2609
        %3915 = vmatprep.subr.bf16.mxu0 %v2606
        %3916 = vmatpush1.bf16.msra.mxu0 %v2605
        %3917 = vmatprep.subr.bf16.mxu0 %v2602
        %3918 = vmatpush1.bf16.msra.mxu0 %v2601
        %3919 = vmatprep.subr.bf16.mxu0 %v2662
        %3920 = vmatpush2.bf16.msra.mxu0 %v2661
        %3921 = vmatprep.subr.bf16.mxu0 %v2658
        %3922 = vmatpush2.bf16.msra.mxu0 %v2657
        %3923 = vmatprep.subr.bf16.mxu0 %v2654
        %3924 = vmatpush2.bf16.msra.mxu0 %v2653
        %3925 = vmatprep.subr.bf16.mxu0 %v2650
        %3926 = vmatpush2.bf16.msra.mxu0 %v2649
        %3927 = vmatprep.subr.bf16.mxu0 %v2646
        %3928 = vmatpush2.bf16.msra.mxu0 %v2645
        %3929 = vmatprep.subr.bf16.mxu0 %v2642
        %3930 = vmatpush2.bf16.msra.mxu0 %v2641
        %3931 = vmatprep.subr.bf16.mxu0 %v2638
        %3932 = vmatpush2.bf16.msra.mxu0 %v2637
        %3933 = vmatprep.subr.bf16.mxu0 %v2634
        %3934 = vmatpush2.bf16.msra.mxu0 %v2633
        %3935 = vmatprep.mubr.bf16.mxu0 %v805
        %3936 = vmatmul.mubr.bf16.gmra.mxu0 %v803
        %v3937 = vpop.f32.mrf.mxu0
        %v3938 = vadd.f32 %v3897, %v3937
        %v3939 = vpop.f32.mrf.mxu0
        %v3940 = vadd.f32 %v3899, %v3939
        %v3941 = vpop.f32.mrf.mxu0
        %v3942 = vpop.f32.mrf.mxu0
        %3943 = vdwg.mxu0
        %3944 = vmatprep.subr.bf16.mxu0 %v2694
        %3945 = vmatpush1.bf16.msra.mxu0 %v2693
        %3946 = vmatprep.subr.bf16.mxu0 %v2690
        %3947 = vmatpush1.bf16.msra.mxu0 %v2689
        %3948 = vmatprep.subr.bf16.mxu0 %v2686
        %3949 = vmatpush1.bf16.msra.mxu0 %v2685
        %3950 = vmatprep.subr.bf16.mxu0 %v2682
        %3951 = vmatpush1.bf16.msra.mxu0 %v2681
        %3952 = vmatprep.subr.bf16.mxu0 %v2678
        %3953 = vmatpush1.bf16.msra.mxu0 %v2677
        %3954 = vmatprep.subr.bf16.mxu0 %v2674
        %3955 = vmatpush1.bf16.msra.mxu0 %v2673
        %3956 = vmatprep.subr.bf16.mxu0 %v2670
        %3957 = vmatpush1.bf16.msra.mxu0 %v2669
        %3958 = vmatprep.subr.bf16.mxu0 %v2666
        %3959 = vmatpush1.bf16.msra.mxu0 %v2665
        %3960 = vmatprep.subr.bf16.mxu0 %v2726
        %3961 = vmatpush2.bf16.msra.mxu0 %v2725
        %3962 = vmatprep.subr.bf16.mxu0 %v2722
        %3963 = vmatpush2.bf16.msra.mxu0 %v2721
        %3964 = vmatprep.subr.bf16.mxu0 %v2718
        %3965 = vmatpush2.bf16.msra.mxu0 %v2717
        %3966 = vmatprep.subr.bf16.mxu0 %v2714
        %3967 = vmatpush2.bf16.msra.mxu0 %v2713
        %3968 = vmatprep.subr.bf16.mxu0 %v2710
        %3969 = vmatpush2.bf16.msra.mxu0 %v2709
        %3970 = vmatprep.subr.bf16.mxu0 %v2706
        %3971 = vmatpush2.bf16.msra.mxu0 %v2705
        %3972 = vmatprep.subr.bf16.mxu0 %v2702
        %3973 = vmatpush2.bf16.msra.mxu0 %v2701
        %3974 = vmatprep.subr.bf16.mxu0 %v2698
        %3975 = vmatpush2.bf16.msra.mxu0 %v2697
        %3976 = vmatprep.mubr.bf16.mxu0 %v843
        %3977 = vmatmul.mubr.bf16.gmra.mxu0 %v829
        %v3978 = vpop.f32.mrf.mxu0
        %v3979 = vadd.f32 %v3938, %v3978
        %v3980 = vpop.f32.mrf.mxu0
        %v3981 = vadd.f32 %v3940, %v3980
        %v3982 = vpop.f32.mrf.mxu0
        %v3983 = vpop.f32.mrf.mxu0
        %3984 = vdwg.mxu0
        %3985 = vmatprep.subr.bf16.mxu0 %v2758
        %3986 = vmatpush1.bf16.msra.mxu0 %v2757
        %3987 = vmatprep.subr.bf16.mxu0 %v2754
        %3988 = vmatpush1.bf16.msra.mxu0 %v2753
        %3989 = vmatprep.subr.bf16.mxu0 %v2750
        %3990 = vmatpush1.bf16.msra.mxu0 %v2749
        %3991 = vmatprep.subr.bf16.mxu0 %v2746
        %3992 = vmatpush1.bf16.msra.mxu0 %v2745
        %3993 = vmatprep.subr.bf16.mxu0 %v2742
        %3994 = vmatpush1.bf16.msra.mxu0 %v2741
        %3995 = vmatprep.subr.bf16.mxu0 %v2738
        %3996 = vmatpush1.bf16.msra.mxu0 %v2737
        %3997 = vmatprep.subr.bf16.mxu0 %v2734
        %3998 = vmatpush1.bf16.msra.mxu0 %v2733
        %3999 = vmatprep.subr.bf16.mxu0 %v2730
        %4000 = vmatpush1.bf16.msra.mxu0 %v2729
        %4001 = vmatprep.subr.bf16.mxu0 %v2790
        %4002 = vmatpush2.bf16.msra.mxu0 %v2789
        %4003 = vmatprep.subr.bf16.mxu0 %v2786
        %4004 = vmatpush2.bf16.msra.mxu0 %v2785
        %4005 = vmatprep.subr.bf16.mxu0 %v2782
        %4006 = vmatpush2.bf16.msra.mxu0 %v2781
        %4007 = vmatprep.subr.bf16.mxu0 %v2778
        %4008 = vmatpush2.bf16.msra.mxu0 %v2777
        %4009 = vmatprep.subr.bf16.mxu0 %v2774
        %4010 = vmatpush2.bf16.msra.mxu0 %v2773
        %4011 = vmatprep.subr.bf16.mxu0 %v2770
        %4012 = vmatpush2.bf16.msra.mxu0 %v2769
        %4013 = vmatprep.subr.bf16.mxu0 %v2766
        %4014 = vmatpush2.bf16.msra.mxu0 %v2765
        %4015 = vmatprep.subr.bf16.mxu0 %v2762
        %4016 = vmatpush2.bf16.msra.mxu0 %v2761
        %4017 = vmatprep.mubr.bf16.mxu0 %v853
        %4018 = vmatmul.mubr.bf16.gmra.mxu0 %v851
        %v4019 = vpop.f32.mrf.mxu0
        %v4020 = vadd.f32 %v3979, %v4019
        %v4021 = vpop.f32.mrf.mxu0
        %v4022 = vadd.f32 %v3981, %v4021
        %v4023 = vpop.f32.mrf.mxu0
        %v4024 = vpop.f32.mrf.mxu0
        %4025 = vdwg.mxu0
        %4026 = vmatprep.subr.bf16.mxu0 %v2822
        %4027 = vmatpush1.bf16.msra.mxu0 %v2821
        %4028 = vmatprep.subr.bf16.mxu0 %v2818
        %4029 = vmatpush1.bf16.msra.mxu0 %v2817
        %4030 = vmatprep.subr.bf16.mxu0 %v2814
        %4031 = vmatpush1.bf16.msra.mxu0 %v2813
        %4032 = vmatprep.subr.bf16.mxu0 %v2810
        %4033 = vmatpush1.bf16.msra.mxu0 %v2809
        %4034 = vmatprep.subr.bf16.mxu0 %v2806
        %4035 = vmatpush1.bf16.msra.mxu0 %v2805
        %4036 = vmatprep.subr.bf16.mxu0 %v2802
        %4037 = vmatpush1.bf16.msra.mxu0 %v2801
        %4038 = vmatprep.subr.bf16.mxu0 %v2798
        %4039 = vmatpush1.bf16.msra.mxu0 %v2797
        %4040 = vmatprep.subr.bf16.mxu0 %v2794
        %4041 = vmatpush1.bf16.msra.mxu0 %v2793
        %4042 = vmatprep.subr.bf16.mxu0 %v2854
        %4043 = vmatpush2.bf16.msra.mxu0 %v2853
        %4044 = vmatprep.subr.bf16.mxu0 %v2850
        %4045 = vmatpush2.bf16.msra.mxu0 %v2849
        %4046 = vmatprep.subr.bf16.mxu0 %v2846
        %4047 = vmatpush2.bf16.msra.mxu0 %v2845
        %4048 = vmatprep.subr.bf16.mxu0 %v2842
        %4049 = vmatpush2.bf16.msra.mxu0 %v2841
        %4050 = vmatprep.subr.bf16.mxu0 %v2838
        %4051 = vmatpush2.bf16.msra.mxu0 %v2837
        %4052 = vmatprep.subr.bf16.mxu0 %v2834
        %4053 = vmatpush2.bf16.msra.mxu0 %v2833
        %4054 = vmatprep.subr.bf16.mxu0 %v2830
        %4055 = vmatpush2.bf16.msra.mxu0 %v2829
        %4056 = vmatprep.subr.bf16.mxu0 %v2826
        %4057 = vmatpush2.bf16.msra.mxu0 %v2825
        %4058 = vmatprep.mubr.bf16.mxu0 %v850
        %4059 = vmatmul.mubr.bf16.gmra.mxu0 %v836
        %v4060 = vpop.f32.mrf.mxu0
        %v4061 = vadd.f32 %v4020, %v4060
        %v4062 = vpop.f32.mrf.mxu0
        %v4063 = vadd.f32 %v4022, %v4062
        %v4064 = vpop.f32.mrf.mxu0
        %v4065 = vpop.f32.mrf.mxu0
        %4066 = vdwg.mxu0
        %4067 = vmatprep.subr.bf16.mxu0 %v2886
        %4068 = vmatpush1.bf16.msra.mxu0 %v2885
        %4069 = vmatprep.subr.bf16.mxu0 %v2882
        %4070 = vmatpush1.bf16.msra.mxu0 %v2881
        %4071 = vmatprep.subr.bf16.mxu0 %v2878
        %4072 = vmatpush1.bf16.msra.mxu0 %v2877
        %4073 = vmatprep.subr.bf16.mxu0 %v2874
        %4074 = vmatpush1.bf16.msra.mxu0 %v2873
        %4075 = vmatprep.subr.bf16.mxu0 %v2870
        %4076 = vmatpush1.bf16.msra.mxu0 %v2869
        %4077 = vmatprep.subr.bf16.mxu0 %v2866
        %4078 = vmatpush1.bf16.msra.mxu0 %v2865
        %4079 = vmatprep.subr.bf16.mxu0 %v2862
        %4080 = vmatpush1.bf16.msra.mxu0 %v2861
        %4081 = vmatprep.subr.bf16.mxu0 %v2858
        %4082 = vmatpush1.bf16.msra.mxu0 %v2857
        %4083 = vmatprep.subr.bf16.mxu0 %v2918
        %4084 = vmatpush2.bf16.msra.mxu0 %v2917
        %4085 = vmatprep.subr.bf16.mxu0 %v2914
        %4086 = vmatpush2.bf16.msra.mxu0 %v2913
        %4087 = vmatprep.subr.bf16.mxu0 %v2910
        %4088 = vmatpush2.bf16.msra.mxu0 %v2909
        %4089 = vmatprep.subr.bf16.mxu0 %v2906
        %4090 = vmatpush2.bf16.msra.mxu0 %v2905
        %4091 = vmatprep.subr.bf16.mxu0 %v2902
        %4092 = vmatpush2.bf16.msra.mxu0 %v2901
        %4093 = vmatprep.subr.bf16.mxu0 %v2898
        %4094 = vmatpush2.bf16.msra.mxu0 %v2897
        %4095 = vmatprep.subr.bf16.mxu0 %v2894
        %4096 = vmatpush2.bf16.msra.mxu0 %v2893
        %4097 = vmatprep.subr.bf16.mxu0 %v2890
        %4098 = vmatpush2.bf16.msra.mxu0 %v2889
        %4099 = vmatprep.mubr.bf16.mxu0 %v854
        %4100 = vmatmul.mubr.bf16.gmra.mxu0 %v852
        %v4101 = vpop.f32.mrf.mxu0
        %v4102 = vadd.f32 %v4061, %v4101
        %v4103 = vpop.f32.mrf.mxu0
        %v4104 = vadd.f32 %v4063, %v4103
        %v4105 = vpop.f32.mrf.mxu0
        %v4106 = vpop.f32.mrf.mxu0
        %4107 = vdwg.mxu0
        %v4112 = vcombine.low %v3774, %v3776
        %v4113 = vcombine.low %v4102, %v4104
        %v4115 = vunpack.c.l.s4 1966171168
        %v4116 = vunpack.c.0.s8 %v4115
        %v4117 = vlaneseq
        %v4118 = vshrl.u32 %v4117, 7
        %v4119 = vsub.s32 %v4116, %v4118
        %v4120 = vrot.slane %v4112, %v4119
        %v4122 = vunpack.c.l.s4 1966171168
        %v4123 = vunpack.c.0.s8 %v4122
        %v4124 = vlaneseq
        %v4125 = vshrl.u32 %v4124, 7
        %v4126 = vsub.s32 %v4123, %v4125
        %v4127 = vrot.slane %v4113, %v4126
        %v4128 = vcombine.low %v4120, %v4127
        %v4130 = vunpack.c.l.s4 1966171168
        %v4131 = vunpack.c.0.s8 %v4130
        %v4132 = vlaneseq
        %v4133 = vshrl.u32 %v4132, 7
        %v4134 = vsub.s32 %v4131, %v4133
        %v4135 = vrot.slane %v4128, %v4134
        %v4137 = vlaneseq
        %vm4138 = vcmp.ge.s32.totalorder %v4137, 0
        %vm4139 = vcmp.lt.s32.totalorder %v4137, 512
        %vm4140 = vmand %vm4138, %vm4139
        %4141 = vst.msk [vmem:[%s236] sm:$0xf] %vm4140, %v4135
        %s4142 = sand.u32 %s102, 1
        %s4143 = scalar_lea.sflag [#allocation4], %s4142
        %s4144 = sand.u32 %s102, 1
        %s4145 = smul.addr %s4144, 4
        %s4146 = scalar_lea.vmem [#allocation8], %s4145
        // Predicated region
        $region45: #{tpu_custom_call.1} parent=31 // pred_check
          %p4147 = pneg %p112
        $region46: #{tpu_custom_call.1} parent=31 // pred_check_branch
          %4149 = sbr.rel (%p4147) target = $region48
        $region47: #{tpu_custom_call.1} parent=31 // pred_region
          %s4150 = smul.u32 4, %s21
          %s4152 = ssub.s32 64, 64
          %4153 = vsyncadd %s4143, %s4152
          %s4154 = smul.addr %s4150, 16
          %s4155 = scalar_lea.hbm %s3, %s4154
          %s4157 = sshll.u32 %s4146, 4
          %s4158 = int_to_ptr.vmem [resolvable:$true] %s4157
          %4160 = dma.vmem_to_hbm [thread:$0]  %s4158, 64, %s4155, %s4143
        $region48: #{tpu_custom_call.1} parent=31 // pred_fallthru
          _
      $region32: #{tpu_custom_call.1} parent=5 // pred_fallthru
        _
      %p4161 = scmp.le.s32.totalorder 2, %s16
      // Predicated region
      $region49: #{tpu_custom_call.1} parent=5 // pred_check
        %p4162 = pneg %p4161
      $region50: #{tpu_custom_call.1} parent=5 // pred_check_branch
        %4164 = sbr.rel (%p4162) target = $region52
      $region51: #{tpu_custom_call.1} parent=5 // pred_region
        %s4165 = ssub.s32 %s16, 2
        // Predicated region
        $region53: #{tpu_custom_call.1} parent=51 // pred_check
          %p4166 = pneg %p118
        $region54: #{tpu_custom_call.1} parent=51 // pred_check_branch
          %4168 = sbr.rel (%p4166) target = $region56
        $region55: #{tpu_custom_call.1} parent=51 // pred_region
          %s4169 = sand.u32 %s103, 1
          %s4170 = scalar_lea.sflag [#allocation4], %s4169
          %s4171 = sand.u32 %s103, 1
          %s4172 = smul.addr %s4171, 4
          %s4173 = scalar_lea.vmem [#allocation8], %s4172
          %4174 = dma.done %s4170, 64
        $region56: #{tpu_custom_call.1} parent=51 // pred_fallthru
          _
      $region52: #{tpu_custom_call.1} parent=5 // pred_fallthru
        _
    $region6: #{tpu_custom_call.1} parent=1 // loop_footer
      %s20 = sadd.s32 1, %s16
    $region7: #{tpu_custom_call.1} parent=1 // loop_footer_branch
      %15 = sbr.rel target = $region3
    $region8: #{tpu_custom_call.1} parent=1 // loop_exit
      _
    %4175 = vsyncpa [#allocation3], 1
    %s4176 = scalar_lea.sflag [#allocation3], 1
    %4177 = vsyncpa %s4176, 1
    %4178 = vsyncpa [#allocation6], 1
    %s4179 = scalar_lea.sflag [#allocation6], 1
    %4180 = vsyncpa %s4179, 1
    %4181 = vsyncpa [#allocation4], 1
    %s4182 = scalar_lea.sflag [#allocation4], 1
    %4183 = vsyncpa %s4182, 1

</llo_original>
